<compile_context>
chip_gen: v6e
topology: v6e:2x2x1
jax: 0.10.0
libtpu: 0.0.40
codegen_flags: <defaults>
</compile_context>

<pallas_src>
import functools

import jax
import jax.numpy as jnp
from jax import lax
from jax.experimental import pallas as pl
from jax.experimental.pallas import tpu as pltpu


# ---------------------------------------------------------------------------
# Fused Pallas kernel: one grid step == WB windows (all heads)
# ---------------------------------------------------------------------------
def _fused_window_attention_kernel(
    x_ref,       # VMEM (WB, N, C)  : window tokens
    wqkv_ref,    # VMEM (C, 3C)     : [Wq * scale * alpha | Wk | Wv]
    bqkv_ref,    # VMEM (1, 3C)     : [bq * scale * alpha | bk | bv]
    wproj_ref,   # VMEM (C, C)
    bproj_ref,   # VMEM (1, C)
    bias_ref,    # VMEM (H, N, N)   : relative-position bias (resident)
    o_ref,       # VMEM (WB, N, C)
    *,
    num_heads,
    head_dim,
    windows_per_step,
    tokens_per_window,
):
    C = num_heads * head_dim
    wb = windows_per_step
    n = tokens_per_window
    m = wb * n

    # Single fused QKV projection on the stacked slab: (WB*N, C) @ (C, 3C) + (1, 3C).
    # The Q columns already carry qk_scale * alpha (folded at param-prep time).
    x2d = x_ref[...].reshape(m, C)
    qkv = (
        jnp.dot(x2d, wqkv_ref[...], preferred_element_type=jnp.float32)
        + bqkv_ref[...]
    )

    dn_qk = (((2,), (2,)), ((0,), (0,)))   # q . k^T, batched over the WB windows
    dn_pv = (((2,), (1,)), ((0,), (0,)))   # p . v,   batched over the WB windows

    head_out = []
    for h in range(num_heads):             # static unroll; only one head's (WB,N,N)
        lo = h * head_dim                  # score/probability temporaries live at a time
        # NOTE: head_dim < 128 keeps these sub-tile lane slices; a fully head-batched
        # (WB,H,N,D) layout would need a 4-D transpose whose relayout is costlier at
        # this size, so the split stays per-head while windows are batched.
        qh = qkv[:, lo:lo + head_dim].reshape(wb, n, head_dim)
        kh = qkv[:, C + lo:C + lo + head_dim].reshape(wb, n, head_dim)
        vh = qkv[:, 2 * C + lo:2 * C + lo + head_dim].reshape(wb, n, head_dim)

        s = lax.dot_general(qh, kh, dn_qk, preferred_element_type=jnp.float32)  # (WB,N,N)
        s = s + bias_ref[h][None, :, :]
        s = s - jnp.max(s, axis=-1, keepdims=True)          # numerically-safe softmax
        p = jnp.exp(s)
        inv = pl.reciprocal(jnp.sum(p, axis=-1, keepdims=True))                 # exact
        oh = lax.dot_general(p, vh, dn_pv, preferred_element_type=jnp.float32) * inv
        head_out.append(oh.reshape(m, head_dim))

    # Single output projection on the concatenated head outputs (K = C, not head_dim).
    o2d = jnp.concatenate(head_out, axis=-1)                                    # (WB*N, C)
    y = (
        jnp.dot(o2d, wproj_ref[...], preferred_element_type=jnp.float32)
        + bproj_ref[...]
    )
    o_ref[...] = y.reshape(wb, n, C).astype(o_ref.dtype)


# ---------------------------------------------------------------------------
# Relative-position bias (precomputed once per module)
# ---------------------------------------------------------------------------
def relative_position_index(win_h, win_w):
    coords_h = jnp.arange(win_h)
    coords_w = jnp.arange(win_w)
    coords = jnp.stack(jnp.meshgrid(coords_h, coords_w, indexing="ij"))   # (2, wh, ww)
    coords_flat = coords.reshape(2, -1)                                   # (2, N)
    rel = coords_flat[:, :, None] - coords_flat[:, None, :]               # (2, N, N)
    rel = rel.transpose(1, 2, 0)                                          # (N, N, 2)
    rel = rel.at[:, :, 0].add(win_h - 1)
    rel = rel.at[:, :, 1].add(win_w - 1)
    rel = rel.at[:, :, 0].multiply(2 * win_w - 1)
    return rel.sum(-1)                                                    # (N, N)


def precompute_relative_position_bias(rpb_table, win_size, num_heads):
    """(H, N, N) relative-position bias. Compute ONCE per module, reuse per call."""
    N = win_size[0] * win_size[1]
    rel_idx = relative_position_index(*win_size)
    bias = rpb_table[rel_idx.reshape(-1)].reshape(N, N, num_heads)
    return bias.transpose(2, 0, 1)                                        # (H, N, N)


# ---------------------------------------------------------------------------
# Parameter prep (amortized, once per module) + wrapper
# ---------------------------------------------------------------------------
def prepare_window_attention_params(params, *, win_size, num_heads):
    """Fold qk_scale * alpha into the Q weight/bias, fuse [Wq|Wk|Wv], and build the
    relative-position bias table ONCE per module (amortized across forward calls)."""
    C = params["wq"].shape[0]
    head_dim = C // num_heads
    q_scale = (head_dim ** -0.5) * params["alpha"]
    wqkv = jnp.concatenate([params["wq"] * q_scale, params["wkv"]], axis=1)   # (C, 3C)
    bqkv = jnp.concatenate([params["bq"] * q_scale, params["bkv"]], axis=0)   # (3C,)
    bias = precompute_relative_position_bias(params["rpb_table"], win_size, num_heads)
    return {
        "wqkv": wqkv.astype(jnp.float32),
        "bqkv": bqkv.reshape(1, 3 * C).astype(jnp.float32),
        "wproj": params["wproj"].astype(jnp.float32),
        "bproj": params["bproj"].reshape(1, C).astype(jnp.float32),
        "bias": bias.astype(jnp.float32),
    }


def _pick_windows_per_step(num_windows, tokens_per_window, target_rows=256, max_wb=16):
    """Smallest divisor of num_windows whose stacked slab reaches target_rows
    (v6e/v7x MXU height; >=128 also covers v5e); else the largest divisor <= max_wb."""
    best = 1
    for wb in range(1, min(num_windows, max_wb) + 1):
        if num_windows % wb != 0:
            continue
        best = wb
        if wb * tokens_per_window >= target_rows:
            break
    return best


def _vmem_limit_bytes(wb, n, c, num_heads, in_itemsize):
    resident = 4 * (c * 3 * c + 3 * c + c * c + c) + 4 * num_heads * n * n
    io_blocks = 2 * 2 * wb * n * c * in_itemsize          # double-buffered in + out blocks
    temps = 4 * (wb * n * 3 * c + 2 * wb * n * n + 2 * wb * n * c)
    est = resident + io_blocks + temps
    # Generous headroom, but stay at/below the smallest default scoped limit family
    # (safe on v5e's 16 MiB default and on v7x's 64 MiB physical VMEM).
    return int(min(max(3 * est, 16 * 1024 * 1024), 32 * 1024 * 1024))


def window_attention_forward(x, prepared, *, windows_per_step=None):
    """Fused Pallas implementation of WindowAttention.forward (mask=None, ratio=1)."""
    B_, N, C = x.shape
    num_heads = prepared["bias"].shape[0]
    head_dim = C // num_heads

    wb = windows_per_step if windows_per_step is not None else _pick_windows_per_step(B_, N)
    assert B_ % wb == 0, (B_, wb)

    kernel = functools.partial(
        _fused_window_attention_kernel,
        num_heads=num_heads,
        head_dim=head_dim,
        windows_per_step=wb,
        tokens_per_window=N,
    )

    out = pl.pallas_call(
        kernel,
        out_shape=jax.ShapeDtypeStruct((B_, N, C), x.dtype),
        grid=(B_ // wb,),
        in_specs=[
            pl.BlockSpec((wb, N, C), lambda b: (b, 0, 0)),                 # x (WB windows)
            pl.BlockSpec((C, 3 * C), lambda b: (0, 0)),                    # wqkv (resident)
            pl.BlockSpec((1, 3 * C), lambda b: (0, 0)),                    # bqkv (resident)
            pl.BlockSpec((C, C), lambda b: (0, 0)),                        # wproj (resident)
            pl.BlockSpec((1, C), lambda b: (0, 0)),                        # bproj (resident)
            pl.BlockSpec((num_heads, N, N), lambda b: (0, 0, 0)),          # bias (resident)
        ],
        out_specs=pl.BlockSpec((wb, N, C), lambda b: (b, 0, 0)),
        compiler_params=pltpu.CompilerParams(
            dimension_semantics=("parallel",),                             # shard window axis
            vmem_limit_bytes=_vmem_limit_bytes(wb, N, C, num_heads, x.dtype.itemsize),
        ),
    )(
        x,
        prepared["wqkv"],
        prepared["bqkv"],
        prepared["wproj"],
        prepared["bproj"],
        prepared["bias"],
    )
    return out
    # TODO(synk): mask-path (nW additive mask + ratio>1 repeat), attn_drop/proj_drop
    # (p=0.0 -> identity), se_layer=False and token_projection='conv'
    # (SepConv2d/DeformConv2d/SpatialAttention) are not implemented here.


# ---------------------------------------------------------------------------
# Pure-JAX reference mirroring the PyTorch math
# ---------------------------------------------------------------------------
def reference_forward(x, params, *, win_size, num_heads):
    B_, N, C = x.shape
    hd = C // num_heads
    scale = hd ** -0.5
    q = (x @ params["wq"] + params["bq"]).reshape(B_, N, num_heads, hd).transpose(0, 2, 1, 3)
    kv = (x @ params["wkv"] + params["bkv"]).reshape(B_, N, 2, num_heads, hd).transpose(2, 0, 3, 1, 4)
    k, v = kv[0], kv[1]
    q = q * scale
    attn = jnp.einsum("bhnd,bhmd->bhnm", q, k) * params["alpha"]
    bias = precompute_relative_position_bias(params["rpb_table"], win_size, num_heads)
    attn = attn + bias[None]
    attn = jax.nn.softmax(attn, axis=-1)
    out = jnp.einsum("bhnm,bhmd->bhnd", attn, v).transpose(0, 2, 1, 3).reshape(B_, N, C)
    return out @ params["wproj"] + params["bproj"]


# ---------------------------------------------------------------------------
# Main
# ---------------------------------------------------------------------------
if __name__ == "__main__":
    dim = 32
    num_heads = 4
    win_size = (8, 8)
    N = win_size[0] * win_size[1]     # 64 tokens per window
    B_ = 2                            # number of windows * batch

    key = jax.random.PRNGKey(0)
    k_x, k_wq, k_bq, k_wkv, k_bkv, k_wp, k_bp, k_rpb = jax.random.split(key, 8)

    params = {
        # weights stored as (in, out) so y = x @ W + b (equivalent to torch Linear)
        "wq": 0.02 * jax.random.normal(k_wq, (dim, dim), jnp.float32),
        "bq": 0.02 * jax.random.normal(k_bq, (dim,), jnp.float32),
        "wkv": 0.02 * jax.random.normal(k_wkv, (dim, 2 * dim), jnp.float32),
        "bkv": 0.02 * jax.random.normal(k_bkv, (2 * dim,), jnp.float32),
        "wproj": 0.02 * jax.random.normal(k_wp, (dim, dim), jnp.float32),
        "bproj": 0.02 * jax.random.normal(k_bp, (dim,), jnp.float32),
        # trunc_normal_(std=0.02) approximated by normal * 0.02 (deterministic)
        "rpb_table": 0.02 * jax.random.normal(
            k_rpb, ((2 * win_size[0] - 1) * (2 * win_size[1] - 1), num_heads), jnp.float32
        ),
        "alpha": jnp.ones((1,), jnp.float32)[0],   # nn.Parameter(torch.ones(1))
    }

    x = jax.random.normal(k_x, (B_, N, dim), jnp.float32)

    # Fold scale*alpha into Wq/bq, fuse QKV, build bias table — once per module.
    prepared = prepare_window_attention_params(params, win_size=win_size, num_heads=num_heads)

    out = window_attention_forward(x, prepared)
    out = jax.block_until_ready(out)

    ref = reference_forward(x, params, win_size=win_size, num_heads=num_heads)
    ref = jax.block_until_ready(ref)

    assert out.shape == (B_, N, dim)
    assert jnp.allclose(out, ref, rtol=2e-3, atol=2e-5), float(jnp.max(jnp.abs(out - ref)))

    print("KERNEL_OK")
</pallas_src>

<mosaic_0001>
module attributes {stable_mosaic.version = 11 : i64} {
  func.func @_fused_window_attention_kernel(%arg0: i32, %arg1: memref<2x64x32xf32, #tpu.memory_space<vmem>>, %arg2: memref<32x96xf32, #tpu.memory_space<vmem>>, %arg3: memref<1x96xf32, #tpu.memory_space<vmem>>, %arg4: memref<32x32xf32, #tpu.memory_space<vmem>>, %arg5: memref<1x32xf32, #tpu.memory_space<vmem>>, %arg6: memref<4x64x64xf32, #tpu.memory_space<vmem>>, %arg7: memref<2x64x32xf32, #tpu.memory_space<vmem>>) attributes {dimension_semantics = [#tpu.dimension_semantics<parallel>], iteration_bounds = array<i64: 1>, scalar_prefetch = 0 : i64, scratch_operands = 0 : i64, tpu.core_type = #tpu.core_type<tc>, window_params = [{transform_indices = @transform_0, window_bounds = array<i64: 2, 64, 32>}, {pipeline_mode = #tpu.pipeline_mode<synchronous>, transform_indices = @transform_1, window_bounds = array<i64: 32, 96>}, {pipeline_mode = #tpu.pipeline_mode<synchronous>, transform_indices = @transform_2, window_bounds = array<i64: 1, 96>}, {pipeline_mode = #tpu.pipeline_mode<synchronous>, transform_indices = @transform_3, window_bounds = array<i64: 32, 32>}, {pipeline_mode = #tpu.pipeline_mode<synchronous>, transform_indices = @transform_4, window_bounds = array<i64: 1, 32>}, {pipeline_mode = #tpu.pipeline_mode<synchronous>, transform_indices = @transform_5, window_bounds = array<i64: 4, 64, 64>}, {transform_indices = @transform_6, window_bounds = array<i64: 2, 64, 32>}]} {
    %c0 = arith.constant 0 : index
    %c0_0 = arith.constant 0 : index
    %c0_1 = arith.constant 0 : index
    %0 = vector.load %arg1[%c0, %c0_0, %c0_1] : memref<2x64x32xf32, #tpu.memory_space<vmem>>, vector<2x64x32xf32>
    %1 = vector.shape_cast %0 : vector<2x64x32xf32> to vector<128x32xf32>
    %c0_2 = arith.constant 0 : index
    %c0_3 = arith.constant 0 : index
    %2 = vector.load %arg2[%c0_2, %c0_3] : memref<32x96xf32, #tpu.memory_space<vmem>>, vector<32x96xf32>
    %cst = arith.constant dense<0.000000e+00> : vector<128x96xf32>
    %3 = tpu.matmul %1, %2, %cst {dimension_numbers = #tpu.dot_dimension_numbers<[1], [0], [0], [1], [0, 0, 1, 1], [], []>} : vector<128x32xf32>, vector<32x96xf32>, vector<128x96xf32> -> vector<128x96xf32>
    %c0_4 = arith.constant 0 : index
    %c0_5 = arith.constant 0 : index
    %4 = vector.load %arg3[%c0_4, %c0_5] : memref<1x96xf32, #tpu.memory_space<vmem>>, vector<1x96xf32>
    %5 = vector.broadcast %4 : vector<1x96xf32> to vector<128x96xf32>
    %6 = arith.addf %3, %5 : vector<128x96xf32>
    %7 = vector.extract_strided_slice %6 {offsets = [0, 0], sizes = [128, 8], strides = [1, 1]} : vector<128x96xf32> to vector<128x8xf32>
    %8 = vector.shape_cast %7 : vector<128x8xf32> to vector<2x64x8xf32>
    %9 = vector.extract_strided_slice %6 {offsets = [0, 32], sizes = [128, 8], strides = [1, 1]} : vector<128x96xf32> to vector<128x8xf32>
    %10 = vector.shape_cast %9 : vector<128x8xf32> to vector<2x64x8xf32>
    %11 = vector.extract_strided_slice %6 {offsets = [0, 64], sizes = [128, 8], strides = [1, 1]} : vector<128x96xf32> to vector<128x8xf32>
    %12 = vector.shape_cast %11 : vector<128x8xf32> to vector<2x64x8xf32>
    %cst_6 = arith.constant dense<0.000000e+00> : vector<2x64x64xf32>
    %13 = tpu.matmul %8, %10, %cst_6 {dimension_numbers = #tpu.dot_dimension_numbers<[2], [2], [1], [1], [0, 0, 0, 1, 1, 1], [0], [0]>} : vector<2x64x8xf32>, vector<2x64x8xf32>, vector<2x64x64xf32> -> vector<2x64x64xf32>
    %c0_7 = arith.constant 0 : index
    %c0_8 = arith.constant 0 : index
    %c0_9 = arith.constant 0 : index
    %14 = vector.load %arg6[%c0_7, %c0_8, %c0_9] : memref<4x64x64xf32, #tpu.memory_space<vmem>>, vector<1x64x64xf32>
    %15 = vector.shape_cast %14 : vector<1x64x64xf32> to vector<64x64xf32>
    %16 = vector.shape_cast %15 : vector<64x64xf32> to vector<1x64x64xf32>
    %17 = vector.broadcast %16 : vector<1x64x64xf32> to vector<2x64x64xf32>
    %18 = arith.addf %13, %17 : vector<2x64x64xf32>
    %cst_10 = arith.constant dense<0xFF800000> : vector<2x64xf32>
    %19 = vector.multi_reduction <maximumf>, %18, %cst_10 [2] : vector<2x64x64xf32> to vector<2x64xf32>
    %20 = vector.shape_cast %19 : vector<2x64xf32> to vector<2x64x1xf32>
    %21 = vector.broadcast %20 : vector<2x64x1xf32> to vector<2x64x64xf32>
    %22 = arith.subf %18, %21 : vector<2x64x64xf32>
    %23 = math.exp %22 : vector<2x64x64xf32>
    %cst_11 = arith.constant dense<0.000000e+00> : vector<2x64xf32>
    %24 = vector.multi_reduction <add>, %23, %cst_11 [2] : vector<2x64x64xf32> to vector<2x64xf32>
    %25 = vector.shape_cast %24 : vector<2x64xf32> to vector<2x64x1xf32>
    %26 = tpu.reciprocal %25 : vector<2x64x1xf32> -> vector<2x64x1xf32>
    %cst_12 = arith.constant dense<0.000000e+00> : vector<2x64x8xf32>
    %27 = tpu.matmul %23, %12, %cst_12 {dimension_numbers = #tpu.dot_dimension_numbers<[2], [1], [1], [2], [0, 0, 0, 1, 1, 2], [0], [0]>} : vector<2x64x64xf32>, vector<2x64x8xf32>, vector<2x64x8xf32> -> vector<2x64x8xf32>
    %28 = vector.broadcast %26 : vector<2x64x1xf32> to vector<2x64x8xf32>
    %29 = arith.mulf %27, %28 : vector<2x64x8xf32>
    %30 = vector.shape_cast %29 : vector<2x64x8xf32> to vector<128x8xf32>
    %31 = vector.extract_strided_slice %6 {offsets = [0, 8], sizes = [128, 8], strides = [1, 1]} : vector<128x96xf32> to vector<128x8xf32>
    %32 = vector.shape_cast %31 : vector<128x8xf32> to vector<2x64x8xf32>
    %33 = vector.extract_strided_slice %6 {offsets = [0, 40], sizes = [128, 8], strides = [1, 1]} : vector<128x96xf32> to vector<128x8xf32>
    %34 = vector.shape_cast %33 : vector<128x8xf32> to vector<2x64x8xf32>
    %35 = vector.extract_strided_slice %6 {offsets = [0, 72], sizes = [128, 8], strides = [1, 1]} : vector<128x96xf32> to vector<128x8xf32>
    %36 = vector.shape_cast %35 : vector<128x8xf32> to vector<2x64x8xf32>
    %cst_13 = arith.constant dense<0.000000e+00> : vector<2x64x64xf32>
    %37 = tpu.matmul %32, %34, %cst_13 {dimension_numbers = #tpu.dot_dimension_numbers<[2], [2], [1], [1], [0, 0, 0, 1, 1, 1], [0], [0]>} : vector<2x64x8xf32>, vector<2x64x8xf32>, vector<2x64x64xf32> -> vector<2x64x64xf32>
    %c1 = arith.constant 1 : index
    %c0_14 = arith.constant 0 : index
    %c0_15 = arith.constant 0 : index
    %38 = vector.load %arg6[%c1, %c0_14, %c0_15] : memref<4x64x64xf32, #tpu.memory_space<vmem>>, vector<1x64x64xf32>
    %39 = vector.shape_cast %38 : vector<1x64x64xf32> to vector<64x64xf32>
    %40 = vector.shape_cast %39 : vector<64x64xf32> to vector<1x64x64xf32>
    %41 = vector.broadcast %40 : vector<1x64x64xf32> to vector<2x64x64xf32>
    %42 = arith.addf %37, %41 : vector<2x64x64xf32>
    %cst_16 = arith.constant dense<0xFF800000> : vector<2x64xf32>
    %43 = vector.multi_reduction <maximumf>, %42, %cst_16 [2] : vector<2x64x64xf32> to vector<2x64xf32>
    %44 = vector.shape_cast %43 : vector<2x64xf32> to vector<2x64x1xf32>
    %45 = vector.broadcast %44 : vector<2x64x1xf32> to vector<2x64x64xf32>
    %46 = arith.subf %42, %45 : vector<2x64x64xf32>
    %47 = math.exp %46 : vector<2x64x64xf32>
    %cst_17 = arith.constant dense<0.000000e+00> : vector<2x64xf32>
    %48 = vector.multi_reduction <add>, %47, %cst_17 [2] : vector<2x64x64xf32> to vector<2x64xf32>
    %49 = vector.shape_cast %48 : vector<2x64xf32> to vector<2x64x1xf32>
    %50 = tpu.reciprocal %49 : vector<2x64x1xf32> -> vector<2x64x1xf32>
    %cst_18 = arith.constant dense<0.000000e+00> : vector<2x64x8xf32>
    %51 = tpu.matmul %47, %36, %cst_18 {dimension_numbers = #tpu.dot_dimension_numbers<[2], [1], [1], [2], [0, 0, 0, 1, 1, 2], [0], [0]>} : vector<2x64x64xf32>, vector<2x64x8xf32>, vector<2x64x8xf32> -> vector<2x64x8xf32>
    %52 = vector.broadcast %50 : vector<2x64x1xf32> to vector<2x64x8xf32>
    %53 = arith.mulf %51, %52 : vector<2x64x8xf32>
    %54 = vector.shape_cast %53 : vector<2x64x8xf32> to vector<128x8xf32>
    %55 = vector.extract_strided_slice %6 {offsets = [0, 16], sizes = [128, 8], strides = [1, 1]} : vector<128x96xf32> to vector<128x8xf32>
    %56 = vector.shape_cast %55 : vector<128x8xf32> to vector<2x64x8xf32>
    %57 = vector.extract_strided_slice %6 {offsets = [0, 48], sizes = [128, 8], strides = [1, 1]} : vector<128x96xf32> to vector<128x8xf32>
    %58 = vector.shape_cast %57 : vector<128x8xf32> to vector<2x64x8xf32>
    %59 = vector.extract_strided_slice %6 {offsets = [0, 80], sizes = [128, 8], strides = [1, 1]} : vector<128x96xf32> to vector<128x8xf32>
    %60 = vector.shape_cast %59 : vector<128x8xf32> to vector<2x64x8xf32>
    %cst_19 = arith.constant dense<0.000000e+00> : vector<2x64x64xf32>
    %61 = tpu.matmul %56, %58, %cst_19 {dimension_numbers = #tpu.dot_dimension_numbers<[2], [2], [1], [1], [0, 0, 0, 1, 1, 1], [0], [0]>} : vector<2x64x8xf32>, vector<2x64x8xf32>, vector<2x64x64xf32> -> vector<2x64x64xf32>
    %c2 = arith.constant 2 : index
    %c0_20 = arith.constant 0 : index
    %c0_21 = arith.constant 0 : index
    %62 = vector.load %arg6[%c2, %c0_20, %c0_21] : memref<4x64x64xf32, #tpu.memory_space<vmem>>, vector<1x64x64xf32>
    %63 = vector.shape_cast %62 : vector<1x64x64xf32> to vector<64x64xf32>
    %64 = vector.shape_cast %63 : vector<64x64xf32> to vector<1x64x64xf32>
    %65 = vector.broadcast %64 : vector<1x64x64xf32> to vector<2x64x64xf32>
    %66 = arith.addf %61, %65 : vector<2x64x64xf32>
    %cst_22 = arith.constant dense<0xFF800000> : vector<2x64xf32>
    %67 = vector.multi_reduction <maximumf>, %66, %cst_22 [2] : vector<2x64x64xf32> to vector<2x64xf32>
    %68 = vector.shape_cast %67 : vector<2x64xf32> to vector<2x64x1xf32>
    %69 = vector.broadcast %68 : vector<2x64x1xf32> to vector<2x64x64xf32>
    %70 = arith.subf %66, %69 : vector<2x64x64xf32>
    %71 = math.exp %70 : vector<2x64x64xf32>
    %cst_23 = arith.constant dense<0.000000e+00> : vector<2x64xf32>
    %72 = vector.multi_reduction <add>, %71, %cst_23 [2] : vector<2x64x64xf32> to vector<2x64xf32>
    %73 = vector.shape_cast %72 : vector<2x64xf32> to vector<2x64x1xf32>
    %74 = tpu.reciprocal %73 : vector<2x64x1xf32> -> vector<2x64x1xf32>
    %cst_24 = arith.constant dense<0.000000e+00> : vector<2x64x8xf32>
    %75 = tpu.matmul %71, %60, %cst_24 {dimension_numbers = #tpu.dot_dimension_numbers<[2], [1], [1], [2], [0, 0, 0, 1, 1, 2], [0], [0]>} : vector<2x64x64xf32>, vector<2x64x8xf32>, vector<2x64x8xf32> -> vector<2x64x8xf32>
    %76 = vector.broadcast %74 : vector<2x64x1xf32> to vector<2x64x8xf32>
    %77 = arith.mulf %75, %76 : vector<2x64x8xf32>
    %78 = vector.shape_cast %77 : vector<2x64x8xf32> to vector<128x8xf32>
    %79 = vector.extract_strided_slice %6 {offsets = [0, 24], sizes = [128, 8], strides = [1, 1]} : vector<128x96xf32> to vector<128x8xf32>
    %80 = vector.shape_cast %79 : vector<128x8xf32> to vector<2x64x8xf32>
    %81 = vector.extract_strided_slice %6 {offsets = [0, 56], sizes = [128, 8], strides = [1, 1]} : vector<128x96xf32> to vector<128x8xf32>
    %82 = vector.shape_cast %81 : vector<128x8xf32> to vector<2x64x8xf32>
    %83 = vector.extract_strided_slice %6 {offsets = [0, 88], sizes = [128, 8], strides = [1, 1]} : vector<128x96xf32> to vector<128x8xf32>
    %84 = vector.shape_cast %83 : vector<128x8xf32> to vector<2x64x8xf32>
    %cst_25 = arith.constant dense<0.000000e+00> : vector<2x64x64xf32>
    %85 = tpu.matmul %80, %82, %cst_25 {dimension_numbers = #tpu.dot_dimension_numbers<[2], [2], [1], [1], [0, 0, 0, 1, 1, 1], [0], [0]>} : vector<2x64x8xf32>, vector<2x64x8xf32>, vector<2x64x64xf32> -> vector<2x64x64xf32>
    %c3 = arith.constant 3 : index
    %c0_26 = arith.constant 0 : index
    %c0_27 = arith.constant 0 : index
    %86 = vector.load %arg6[%c3, %c0_26, %c0_27] : memref<4x64x64xf32, #tpu.memory_space<vmem>>, vector<1x64x64xf32>
    %87 = vector.shape_cast %86 : vector<1x64x64xf32> to vector<64x64xf32>
    %88 = vector.shape_cast %87 : vector<64x64xf32> to vector<1x64x64xf32>
    %89 = vector.broadcast %88 : vector<1x64x64xf32> to vector<2x64x64xf32>
    %90 = arith.addf %85, %89 : vector<2x64x64xf32>
    %cst_28 = arith.constant dense<0xFF800000> : vector<2x64xf32>
    %91 = vector.multi_reduction <maximumf>, %90, %cst_28 [2] : vector<2x64x64xf32> to vector<2x64xf32>
    %92 = vector.shape_cast %91 : vector<2x64xf32> to vector<2x64x1xf32>
    %93 = vector.broadcast %92 : vector<2x64x1xf32> to vector<2x64x64xf32>
    %94 = arith.subf %90, %93 : vector<2x64x64xf32>
    %95 = math.exp %94 : vector<2x64x64xf32>
    %cst_29 = arith.constant dense<0.000000e+00> : vector<2x64xf32>
    %96 = vector.multi_reduction <add>, %95, %cst_29 [2] : vector<2x64x64xf32> to vector<2x64xf32>
    %97 = vector.shape_cast %96 : vector<2x64xf32> to vector<2x64x1xf32>
    %98 = tpu.reciprocal %97 : vector<2x64x1xf32> -> vector<2x64x1xf32>
    %cst_30 = arith.constant dense<0.000000e+00> : vector<2x64x8xf32>
    %99 = tpu.matmul %95, %84, %cst_30 {dimension_numbers = #tpu.dot_dimension_numbers<[2], [1], [1], [2], [0, 0, 0, 1, 1, 2], [0], [0]>} : vector<2x64x64xf32>, vector<2x64x8xf32>, vector<2x64x8xf32> -> vector<2x64x8xf32>
    %100 = vector.broadcast %98 : vector<2x64x1xf32> to vector<2x64x8xf32>
    %101 = arith.mulf %99, %100 : vector<2x64x8xf32>
    %102 = vector.shape_cast %101 : vector<2x64x8xf32> to vector<128x8xf32>
    %103 = tpu.concatenate %30, %54, %78, %102 in 1 : vector<128x8xf32>, vector<128x8xf32>, vector<128x8xf32>, vector<128x8xf32> -> vector<128x32xf32>
    %c0_31 = arith.constant 0 : index
    %c0_32 = arith.constant 0 : index
    %104 = vector.load %arg4[%c0_31, %c0_32] : memref<32x32xf32, #tpu.memory_space<vmem>>, vector<32x32xf32>
    %cst_33 = arith.constant dense<0.000000e+00> : vector<128x32xf32>
    %105 = tpu.matmul %103, %104, %cst_33 {dimension_numbers = #tpu.dot_dimension_numbers<[1], [0], [0], [1], [0, 0, 1, 1], [], []>} : vector<128x32xf32>, vector<32x32xf32>, vector<128x32xf32> -> vector<128x32xf32>
    %c0_34 = arith.constant 0 : index
    %c0_35 = arith.constant 0 : index
    %106 = vector.load %arg5[%c0_34, %c0_35] : memref<1x32xf32, #tpu.memory_space<vmem>>, vector<1x32xf32>
    %107 = vector.broadcast %106 : vector<1x32xf32> to vector<128x32xf32>
    %108 = arith.addf %105, %107 : vector<128x32xf32>
    %109 = vector.shape_cast %108 : vector<128x32xf32> to vector<2x64x32xf32>
    %c0_36 = arith.constant 0 : index
    %c0_37 = arith.constant 0 : index
    %c0_38 = arith.constant 0 : index
    %110 = vector.load %arg7[%c0_36, %c0_37, %c0_38] : memref<2x64x32xf32, #tpu.memory_space<vmem>>, vector<2x64x32xf32>
    tpu.vector_store %arg7[%c0_36, %c0_37, %c0_38], %109 {strides = array<i32>} : memref<2x64x32xf32, #tpu.memory_space<vmem>>, vector<2x64x32xf32>,
    return
  }
  func.func @transform_0(%arg0: i32) -> (i32, i32, i32) {
    %c0_i32 = arith.constant 0 : i32
    %c0_i32_0 = arith.constant 0 : i32
    %c0_i32_1 = arith.constant 0 : i32
    return %arg0, %c0_i32, %c0_i32_0 : i32, i32, i32
  }
  func.func @transform_1(%arg0: i32) -> (i32, i32) {
    %c0_i32 = arith.constant 0 : i32
    %c0_i32_0 = arith.constant 0 : i32
    %c0_i32_1 = arith.constant 0 : i32
    return %c0_i32, %c0_i32_0 : i32, i32
  }
  func.func @transform_2(%arg0: i32) -> (i32, i32) {
    %c0_i32 = arith.constant 0 : i32
    %c0_i32_0 = arith.constant 0 : i32
    %c0_i32_1 = arith.constant 0 : i32
    return %c0_i32, %c0_i32_0 : i32, i32
  }
  func.func @transform_3(%arg0: i32) -> (i32, i32) {
    %c0_i32 = arith.constant 0 : i32
    %c0_i32_0 = arith.constant 0 : i32
    %c0_i32_1 = arith.constant 0 : i32
    return %c0_i32, %c0_i32_0 : i32, i32
  }
  func.func @transform_4(%arg0: i32) -> (i32, i32) {
    %c0_i32 = arith.constant 0 : i32
    %c0_i32_0 = arith.constant 0 : i32
    %c0_i32_1 = arith.constant 0 : i32
    return %c0_i32, %c0_i32_0 : i32, i32
  }
  func.func @transform_5(%arg0: i32) -> (i32, i32, i32) {
    %c0_i32 = arith.constant 0 : i32
    %c0_i32_0 = arith.constant 0 : i32
    %c0_i32_1 = arith.constant 0 : i32
    %c0_i32_2 = arith.constant 0 : i32
    return %c0_i32, %c0_i32_0, %c0_i32_1 : i32, i32, i32
  }
  func.func @transform_6(%arg0: i32) -> (i32, i32, i32) {
    %c0_i32 = arith.constant 0 : i32
    %c0_i32_0 = arith.constant 0 : i32
    %c0_i32_1 = arith.constant 0 : i32
    return %arg0, %c0_i32, %c0_i32_0 : i32, i32, i32
  }
}

</mosaic_0001>

<llo_original>
// kernel: tpu_custom_call.1
$region0: #{tpu_custom_call.1}
  #allocation0 [shape = 'u32[]', space=smem, size = 0x4, offset = 0x4, fixed_abs, tag = 'smem constant byte address 0x4 - core index']
  #allocation1 [shape = 'u32[144,128]{1,0:T(1,128)}', space=vmem, size = 0x12000, scoped, tag = 'internal scratch']
  %s0 = inlined_call_operand.vmem [shape: f32[2,64,32], index: 0, kind: input, shape index: {}]
  %s1 = inlined_call_operand.vmem [shape: f32[32,96], index: 1, kind: input, shape index: {}]
  %s2 = inlined_call_operand.vmem [shape: f32[1,96], index: 2, kind: input, shape index: {}]
  %s3 = inlined_call_operand.vmem [shape: f32[32,32], index: 3, kind: input, shape index: {}]
  %s4 = inlined_call_operand.vmem [shape: f32[1,32], index: 4, kind: input, shape index: {}]
  %s5 = inlined_call_operand.hbm [shape: f32[4,64,64], index: 5, kind: input, shape index: {}]
  %s6 = inlined_call_operand.vmem [shape: f32[2,64,32], index: 6, kind: output, shape index: {}]
  %s7 = sld [smem:[#allocation0]]
  $region38: #{tpu_custom_call.1} parent=0
    _
  %s9 = ssub.s32 1, %s7
  %s10 = scalar_select 0, %s9, %s7
  $region1: #{tpu_custom_call.1} parent=0
    #allocation2 [shape = 'u8[131072]{0}', space=vmem, size = 0x20000, scoped, tag = 'input window, operand 5, single buffered']
    #allocation3 [shape = 's32[1]{0}', space=sflag, size = 0x4, scoped, tag = 'scoped memory for tpu_custom_call.1']
    %11 = vsyncpa [#allocation3], 0
    // Predicated region
    $region2: #{tpu_custom_call.1} parent=1 // pred_check
      _
    $region3: #{tpu_custom_call.1} parent=1 // pred_check_branch
      %13 = sbr.rel (0) target = $region5
    $region4: #{tpu_custom_call.1} parent=1 // pred_region
      _
    $region5: #{tpu_custom_call.1} parent=1 // pred_fallthru
      _
    // Predicated region
    $region6: #{tpu_custom_call.1} parent=1 // pred_check
      _
    $region7: #{tpu_custom_call.1} parent=1 // pred_check_branch
      %15 = sbr.rel (0) target = $region9
    $region8: #{tpu_custom_call.1} parent=1 // pred_region
      _
    $region9: #{tpu_custom_call.1} parent=1 // pred_fallthru
      _
    // Predicated region
    $region10: #{tpu_custom_call.1} parent=1 // pred_check
      _
    $region11: #{tpu_custom_call.1} parent=1 // pred_check_branch
      %17 = sbr.rel (0) target = $region13
    $region12: #{tpu_custom_call.1} parent=1 // pred_region
      _
    $region13: #{tpu_custom_call.1} parent=1 // pred_fallthru
      _
    // Predicated region
    $region14: #{tpu_custom_call.1} parent=1 // pred_check
      _
    $region15: #{tpu_custom_call.1} parent=1 // pred_check_branch
      %19 = sbr.rel (0) target = $region17
    $region16: #{tpu_custom_call.1} parent=1 // pred_region
      _
    $region17: #{tpu_custom_call.1} parent=1 // pred_fallthru
      _
    // Predicated region
    $region18: #{tpu_custom_call.1} parent=1 // pred_check
      _
    $region19: #{tpu_custom_call.1} parent=1 // pred_check_branch
      %21 = sbr.rel (0) target = $region21
    $region20: #{tpu_custom_call.1} parent=1 // pred_region
      _
    $region21: #{tpu_custom_call.1} parent=1 // pred_fallthru
      _
    // Predicated region
    $region22: #{tpu_custom_call.1} parent=1 // pred_check
      _
    $region23: #{tpu_custom_call.1} parent=1 // pred_check_branch
      %23 = sbr.rel (0) target = $region25
    $region24: #{tpu_custom_call.1} parent=1 // pred_region
      %s25 = ssub.s32 4096, 4096
      %26 = vsyncadd [#allocation3], %s25
      %s27 = sshll.u32 [#allocation2], 4
      %s28 = int_to_ptr.vmem [resolvable:$true] %s27
      %33 = dma.hbm_to_vmem [thread:$0]  %s5, 4096, %s28, [#allocation3], 128, 128, 8
    $region25: #{tpu_custom_call.1} parent=1 // pred_fallthru
      _
    // Predicated region
    $region26: #{tpu_custom_call.1} parent=1 // pred_check
      _
    $region27: #{tpu_custom_call.1} parent=1 // pred_check_branch
      %35 = sbr.rel (0) target = $region29
    $region28: #{tpu_custom_call.1} parent=1 // pred_region
      %36 = dma.done [#allocation3], 4096
    $region29: #{tpu_custom_call.1} parent=1 // pred_fallthru
      _
    %v37 = vld [vmem:[%s0] sm:$0xff]
    %v38 = vld [vmem:[%s0 + $0x8] sm:$0xff]
    %v39 = vld [vmem:[%s0 + $0x10] sm:$0xff]
    %v40 = vld [vmem:[%s0 + $0x18] sm:$0xff]
    %v41 = vld [vmem:[%s0 + $0x20] sm:$0xff]
    %v42 = vld [vmem:[%s0 + $0x28] sm:$0xff]
    %v43 = vld [vmem:[%s0 + $0x30] sm:$0xff]
    %v44 = vld [vmem:[%s0 + $0x38] sm:$0xff]
    %v45 = vld [vmem:[%s0 + $0x40] sm:$0xff]
    %v46 = vld [vmem:[%s0 + $0x48] sm:$0xff]
    %v47 = vld [vmem:[%s0 + $0x50] sm:$0xff]
    %v48 = vld [vmem:[%s0 + $0x58] sm:$0xff]
    %v49 = vld [vmem:[%s0 + $0x60] sm:$0xff]
    %v50 = vld [vmem:[%s0 + $0x68] sm:$0xff]
    %v51 = vld [vmem:[%s0 + $0x70] sm:$0xff]
    %v52 = vld [vmem:[%s0 + $0x78] sm:$0xff]
    %v53 = vld [vmem:[%s1] sm:$0xff]
    %v54 = vld [vmem:[%s1 + $0x8] sm:$0xff]
    %v55 = vld [vmem:[%s1 + $0x10] sm:$0xff]
    %v56 = vld [vmem:[%s1 + $0x18] sm:$0xff]
    %v57 = vld [vmem:[%s2] sm:$0x1]
    %v59 = vlaneseq
    %v60 = vshrl.u32 %v59, 7
    %v61 = vsub.s32 0, %v60
    %v62 = vrot.slane %v57, %v61
    %vm64 = vcmask 261120
    %v66 = vsel %vm64, %v37, 0
    %v69 = vsel %vm64, %v38, 0
    %v72 = vsel %vm64, %v39, 0
    %v75 = vsel %vm64, %v40, 0
    %v78 = vsel %vm64, %v41, 0
    %v81 = vsel %vm64, %v42, 0
    %v84 = vsel %vm64, %v43, 0
    %v87 = vsel %vm64, %v44, 0
    %v90 = vsel %vm64, %v45, 0
    %v93 = vsel %vm64, %v46, 0
    %v96 = vsel %vm64, %v47, 0
    %v99 = vsel %vm64, %v48, 0
    %v102 = vsel %vm64, %v49, 0
    %v105 = vsel %vm64, %v50, 0
    %v108 = vsel %vm64, %v51, 0
    %v111 = vsel %vm64, %v52, 0
    %113 = vmatprep.subr.mxu0 0.0
    %114 = vmatpush1.msra.mxu0 0.0
    %115 = vmatprep.subr.mxu0 0.0
    %116 = vmatpush1.msra.mxu0 0.0
    %117 = vmatprep.subr.mxu0 0.0
    %118 = vmatpush1.msra.mxu0 0.0
    %119 = vmatprep.subr.mxu0 0.0
    %120 = vmatpush1.msra.mxu0 0.0
    %121 = vmatprep.subr.mxu0 0.0
    %122 = vmatpush1.msra.mxu0 0.0
    %123 = vmatprep.subr.mxu0 0.0
    %124 = vmatpush1.msra.mxu0 0.0
    %125 = vmatprep.subr.mxu0 0.0
    %126 = vmatpush1.msra.mxu0 0.0
    %127 = vmatprep.subr.mxu0 0.0
    %128 = vmatpush1.msra.mxu0 0.0
    %129 = vmatprep.subr.mxu0 0.0
    %130 = vmatpush1.msra.mxu0 0.0
    %131 = vmatprep.subr.mxu0 0.0
    %132 = vmatpush1.msra.mxu0 0.0
    %133 = vmatprep.subr.mxu0 0.0
    %134 = vmatpush1.msra.mxu0 0.0
    %135 = vmatprep.subr.mxu0 0.0
    %136 = vmatpush1.msra.mxu0 0.0
    %137 = vmatprep.subr.mxu0 0.0
    %138 = vmatpush1.msra.mxu0 %v56
    %139 = vmatprep.subr.mxu0 0.0
    %140 = vmatpush1.msra.mxu0 %v55
    %141 = vmatprep.subr.mxu0 0.0
    %142 = vmatpush1.msra.mxu0 %v54
    %143 = vmatprep.subr.mxu0 0.0
    %144 = vmatpush1.msra.mxu0 %v53
    %145 = vmatprep.subr.mxu0 0.0
    %146 = vmatpush2.msra.mxu0 0.0
    %147 = vmatprep.subr.mxu0 0.0
    %148 = vmatpush2.msra.mxu0 0.0
    %149 = vmatprep.subr.mxu0 0.0
    %150 = vmatpush2.msra.mxu0 0.0
    %151 = vmatprep.subr.mxu0 0.0
    %152 = vmatpush2.msra.mxu0 0.0
    %153 = vmatprep.subr.mxu0 0.0
    %154 = vmatpush2.msra.mxu0 0.0
    %155 = vmatprep.subr.mxu0 0.0
    %156 = vmatpush2.msra.mxu0 0.0
    %157 = vmatprep.subr.mxu0 0.0
    %158 = vmatpush2.msra.mxu0 0.0
    %159 = vmatprep.subr.mxu0 0.0
    %160 = vmatpush2.msra.mxu0 0.0
    %161 = vmatprep.subr.mxu0 0.0
    %162 = vmatpush2.msra.mxu0 0.0
    %163 = vmatprep.subr.mxu0 0.0
    %164 = vmatpush2.msra.mxu0 0.0
    %165 = vmatprep.subr.mxu0 0.0
    %166 = vmatpush2.msra.mxu0 0.0
    %167 = vmatprep.subr.mxu0 0.0
    %168 = vmatpush2.msra.mxu0 0.0
    %169 = vmatprep.subr.mxu0 0.0
    %170 = vmatpush2.msra.mxu0 0.0
    %171 = vmatprep.subr.mxu0 0.0
    %172 = vmatpush2.msra.mxu0 0.0
    %173 = vmatprep.subr.mxu0 0.0
    %174 = vmatpush2.msra.mxu0 0.0
    %175 = vmatprep.subr.mxu0 0.0
    %176 = vmatpush2.msra.mxu0 0.0
    %177 = vmatprep.mubr.f32.mxu0 0.0
    %178 = vmatmul.mubr.f32.gmra.mxu0 %v66
    %v179 = vpop.f32.mrf.mxu0
    %v180 = vadd.f32 %v62, %v179
    %v181 = vpop.f32.mrf.mxu0
    %182 = vmatprep.mubr.f32.mxu0 0.0
    %183 = vmatmul.mubr.f32.gmra.mxu0 %v69
    %v184 = vpop.f32.mrf.mxu0
    %v185 = vadd.f32 %v62, %v184
    %v186 = vpop.f32.mrf.mxu0
    %187 = vmatprep.mubr.f32.mxu0 0.0
    %188 = vmatmul.mubr.f32.gmra.mxu0 %v72
    %v189 = vpop.f32.mrf.mxu0
    %v190 = vadd.f32 %v62, %v189
    %v191 = vpop.f32.mrf.mxu0
    %192 = vmatprep.mubr.f32.mxu0 0.0
    %193 = vmatmul.mubr.f32.gmra.mxu0 %v75
    %v194 = vpop.f32.mrf.mxu0
    %v195 = vadd.f32 %v62, %v194
    %v196 = vpop.f32.mrf.mxu0
    %197 = vmatprep.mubr.f32.mxu0 0.0
    %198 = vmatmul.mubr.f32.gmra.mxu0 %v78
    %v199 = vpop.f32.mrf.mxu0
    %v200 = vadd.f32 %v62, %v199
    %v201 = vpop.f32.mrf.mxu0
    %202 = vmatprep.mubr.f32.mxu0 0.0
    %203 = vmatmul.mubr.f32.gmra.mxu0 %v81
    %v204 = vpop.f32.mrf.mxu0
    %v205 = vadd.f32 %v62, %v204
    %v206 = vpop.f32.mrf.mxu0
    %207 = vmatprep.mubr.f32.mxu0 0.0
    %208 = vmatmul.mubr.f32.gmra.mxu0 %v84
    %v209 = vpop.f32.mrf.mxu0
    %v210 = vadd.f32 %v62, %v209
    %v211 = vpop.f32.mrf.mxu0
    %212 = vmatprep.mubr.f32.mxu0 0.0
    %213 = vmatmul.mubr.f32.gmra.mxu0 %v87
    %v214 = vpop.f32.mrf.mxu0
    %v215 = vadd.f32 %v62, %v214
    %v216 = vpop.f32.mrf.mxu0
    %217 = vmatprep.mubr.f32.mxu0 0.0
    %218 = vmatmul.mubr.f32.gmra.mxu0 %v90
    %v219 = vpop.f32.mrf.mxu0
    %v220 = vadd.f32 %v62, %v219
    %v221 = vpop.f32.mrf.mxu0
    %222 = vmatprep.mubr.f32.mxu0 0.0
    %223 = vmatmul.mubr.f32.gmra.mxu0 %v93
    %v224 = vpop.f32.mrf.mxu0
    %v225 = vadd.f32 %v62, %v224
    %v226 = vpop.f32.mrf.mxu0
    %227 = vmatprep.mubr.f32.mxu0 0.0
    %228 = vmatmul.mubr.f32.gmra.mxu0 %v96
    %v229 = vpop.f32.mrf.mxu0
    %v230 = vadd.f32 %v62, %v229
    %v231 = vpop.f32.mrf.mxu0
    %232 = vmatprep.mubr.f32.mxu0 0.0
    %233 = vmatmul.mubr.f32.gmra.mxu0 %v99
    %v234 = vpop.f32.mrf.mxu0
    %v235 = vadd.f32 %v62, %v234
    %v236 = vpop.f32.mrf.mxu0
    %237 = vmatprep.mubr.f32.mxu0 0.0
    %238 = vmatmul.mubr.f32.gmra.mxu0 %v102
    %v239 = vpop.f32.mrf.mxu0
    %v240 = vadd.f32 %v62, %v239
    %v241 = vpop.f32.mrf.mxu0
    %242 = vmatprep.mubr.f32.mxu0 0.0
    %243 = vmatmul.mubr.f32.gmra.mxu0 %v105
    %v244 = vpop.f32.mrf.mxu0
    %v245 = vadd.f32 %v62, %v244
    %v246 = vpop.f32.mrf.mxu0
    %247 = vmatprep.mubr.f32.mxu0 0.0
    %248 = vmatmul.mubr.f32.gmra.mxu0 %v108
    %v249 = vpop.f32.mrf.mxu0
    %v250 = vadd.f32 %v62, %v249
    %v251 = vpop.f32.mrf.mxu0
    %252 = vmatprep.mubr.f32.mxu0 0.0
    %253 = vmatmul.mubr.f32.gmra.mxu0 %v111
    %v254 = vpop.f32.mrf.mxu0
    %v255 = vadd.f32 %v62, %v254
    %v256 = vpop.f32.mrf.mxu0
    %257 = vdwg.mxu0
    %v258 = vld [vmem:[#allocation2] sm:$0xff]
    %v259 = vld [vmem:[#allocation2 + $0x8] sm:$0xff]
    %v260 = vld [vmem:[#allocation2 + $0x10] sm:$0xff]
    %v261 = vld [vmem:[#allocation2 + $0x18] sm:$0xff]
    %v262 = vld [vmem:[#allocation2 + $0x20] sm:$0xff]
    %v263 = vld [vmem:[#allocation2 + $0x28] sm:$0xff]
    %v264 = vld [vmem:[#allocation2 + $0x30] sm:$0xff]
    %v265 = vld [vmem:[#allocation2 + $0x38] sm:$0xff]
    %274 = vrot.lane.b32.xlu0 %v180, 96
    %v275 = vpop.permute.xlu0 %274
    %276 = vrot.lane.b32.xlu0 %v185, 96
    %v277 = vpop.permute.xlu0 %276
    %278 = vrot.lane.b32.xlu0 %v190, 96
    %v279 = vpop.permute.xlu0 %278
    %280 = vrot.lane.b32.xlu0 %v195, 96
    %v281 = vpop.permute.xlu0 %280
    %282 = vrot.lane.b32.xlu0 %v200, 96
    %v283 = vpop.permute.xlu0 %282
    %284 = vrot.lane.b32.xlu0 %v205, 96
    %v285 = vpop.permute.xlu0 %284
    %286 = vrot.lane.b32.xlu0 %v210, 96
    %v287 = vpop.permute.xlu0 %286
    %288 = vrot.lane.b32.xlu0 %v215, 96
    %v289 = vpop.permute.xlu0 %288
    %vm290 = vcmask 64512
    %v291 = vsel %vm290, %v180, 0
    %v293 = vsel %vm290, %v185, 0
    %v295 = vsel %vm290, %v190, 0
    %v297 = vsel %vm290, %v195, 0
    %v299 = vsel %vm290, %v200, 0
    %v301 = vsel %vm290, %v205, 0
    %v303 = vsel %vm290, %v210, 0
    %v305 = vsel %vm290, %v215, 0
    %v307 = vsel %vm290, %v275, 0
    %v309 = vsel %vm290, %v277, 0
    %v311 = vsel %vm290, %v279, 0
    %v313 = vsel %vm290, %v281, 0
    %v315 = vsel %vm290, %v283, 0
    %v317 = vsel %vm290, %v285, 0
    %v319 = vsel %vm290, %v287, 0
    %v321 = vsel %vm290, %v289, 0
    %323 = vmatprep.subr.mxu0 0.0
    %324 = vmatpush1.xpose.msra.mxu0 0.0
    %325 = vmatprep.subr.mxu0 0.0
    %326 = vmatpush1.xpose.msra.mxu0 0.0
    %327 = vmatprep.subr.mxu0 0.0
    %328 = vmatpush1.xpose.msra.mxu0 0.0
    %329 = vmatprep.subr.mxu0 0.0
    %330 = vmatpush1.xpose.msra.mxu0 0.0
    %331 = vmatprep.subr.mxu0 0.0
    %332 = vmatpush1.xpose.msra.mxu0 0.0
    %333 = vmatprep.subr.mxu0 0.0
    %334 = vmatpush1.xpose.msra.mxu0 0.0
    %335 = vmatprep.subr.mxu0 0.0
    %336 = vmatpush1.xpose.msra.mxu0 0.0
    %337 = vmatprep.subr.mxu0 0.0
    %338 = vmatpush1.xpose.msra.mxu0 0.0
    %339 = vmatprep.subr.mxu0 0.0
    %340 = vmatpush1.xpose.msra.mxu0 %v321
    %341 = vmatprep.subr.mxu0 0.0
    %342 = vmatpush1.xpose.msra.mxu0 %v319
    %343 = vmatprep.subr.mxu0 0.0
    %344 = vmatpush1.xpose.msra.mxu0 %v317
    %345 = vmatprep.subr.mxu0 0.0
    %346 = vmatpush1.xpose.msra.mxu0 %v315
    %347 = vmatprep.subr.mxu0 0.0
    %348 = vmatpush1.xpose.msra.mxu0 %v313
    %349 = vmatprep.subr.mxu0 0.0
    %350 = vmatpush1.xpose.msra.mxu0 %v311
    %351 = vmatprep.subr.mxu0 0.0
    %352 = vmatpush1.xpose.msra.mxu0 %v309
    %353 = vmatprep.subr.mxu0 0.0
    %354 = vmatpush1.xpose.msra.mxu0 %v307
    %355 = vmatprep.subr.mxu0 0.0
    %356 = vmatpush2.xpose.msra.mxu0 0.0
    %357 = vmatprep.subr.mxu0 0.0
    %358 = vmatpush2.xpose.msra.mxu0 0.0
    %359 = vmatprep.subr.mxu0 0.0
    %360 = vmatpush2.xpose.msra.mxu0 0.0
    %361 = vmatprep.subr.mxu0 0.0
    %362 = vmatpush2.xpose.msra.mxu0 0.0
    %363 = vmatprep.subr.mxu0 0.0
    %364 = vmatpush2.xpose.msra.mxu0 0.0
    %365 = vmatprep.subr.mxu0 0.0
    %366 = vmatpush2.xpose.msra.mxu0 0.0
    %367 = vmatprep.subr.mxu0 0.0
    %368 = vmatpush2.xpose.msra.mxu0 0.0
    %369 = vmatprep.subr.mxu0 0.0
    %370 = vmatpush2.xpose.msra.mxu0 0.0
    %371 = vmatprep.subr.mxu0 0.0
    %372 = vmatpush2.xpose.msra.mxu0 0.0
    %373 = vmatprep.subr.mxu0 0.0
    %374 = vmatpush2.xpose.msra.mxu0 0.0
    %375 = vmatprep.subr.mxu0 0.0
    %376 = vmatpush2.xpose.msra.mxu0 0.0
    %377 = vmatprep.subr.mxu0 0.0
    %378 = vmatpush2.xpose.msra.mxu0 0.0
    %379 = vmatprep.subr.mxu0 0.0
    %380 = vmatpush2.xpose.msra.mxu0 0.0
    %381 = vmatprep.subr.mxu0 0.0
    %382 = vmatpush2.xpose.msra.mxu0 0.0
    %383 = vmatprep.subr.mxu0 0.0
    %384 = vmatpush2.xpose.msra.mxu0 0.0
    %385 = vmatprep.subr.mxu0 0.0
    %386 = vmatpush2.xpose.msra.mxu0 0.0
    %387 = vmatprep.mubr.f32.mxu0 0.0
    %388 = vmatmul.mubr.f32.gmra.mxu0 %v291
    %v389 = vpop.f32.mrf.mxu0
    %v390 = vadd.f32 %v258, %v389
    %v391 = vpop.f32.mrf.mxu0
    %392 = vmatprep.mubr.f32.mxu0 0.0
    %393 = vmatmul.mubr.f32.gmra.mxu0 %v293
    %v394 = vpop.f32.mrf.mxu0
    %v395 = vadd.f32 %v259, %v394
    %v396 = vpop.f32.mrf.mxu0
    %397 = vmatprep.mubr.f32.mxu0 0.0
    %398 = vmatmul.mubr.f32.gmra.mxu0 %v295
    %v399 = vpop.f32.mrf.mxu0
    %v400 = vadd.f32 %v260, %v399
    %v401 = vpop.f32.mrf.mxu0
    %402 = vmatprep.mubr.f32.mxu0 0.0
    %403 = vmatmul.mubr.f32.gmra.mxu0 %v297
    %v404 = vpop.f32.mrf.mxu0
    %v405 = vadd.f32 %v261, %v404
    %v406 = vpop.f32.mrf.mxu0
    %407 = vmatprep.mubr.f32.mxu0 0.0
    %408 = vmatmul.mubr.f32.gmra.mxu0 %v299
    %v409 = vpop.f32.mrf.mxu0
    %v410 = vadd.f32 %v262, %v409
    %v411 = vpop.f32.mrf.mxu0
    %412 = vmatprep.mubr.f32.mxu0 0.0
    %413 = vmatmul.mubr.f32.gmra.mxu0 %v301
    %v414 = vpop.f32.mrf.mxu0
    %v415 = vadd.f32 %v263, %v414
    %v416 = vpop.f32.mrf.mxu0
    %417 = vmatprep.mubr.f32.mxu0 0.0
    %418 = vmatmul.mubr.f32.gmra.mxu0 %v303
    %v419 = vpop.f32.mrf.mxu0
    %v420 = vadd.f32 %v264, %v419
    %v421 = vpop.f32.mrf.mxu0
    %422 = vmatprep.mubr.f32.mxu0 0.0
    %423 = vmatmul.mubr.f32.gmra.mxu0 %v305
    %v424 = vpop.f32.mrf.mxu0
    %v425 = vadd.f32 %v265, %v424
    %v426 = vpop.f32.mrf.mxu0
    %427 = vdwg.mxu0
    %436 = vrot.lane.b32.xlu0 %v220, 96
    %v437 = vpop.permute.xlu0 %436
    %438 = vrot.lane.b32.xlu0 %v225, 96
    %v439 = vpop.permute.xlu0 %438
    %440 = vrot.lane.b32.xlu0 %v230, 96
    %v441 = vpop.permute.xlu0 %440
    %442 = vrot.lane.b32.xlu0 %v235, 96
    %v443 = vpop.permute.xlu0 %442
    %444 = vrot.lane.b32.xlu0 %v240, 96
    %v445 = vpop.permute.xlu0 %444
    %446 = vrot.lane.b32.xlu0 %v245, 96
    %v447 = vpop.permute.xlu0 %446
    %448 = vrot.lane.b32.xlu0 %v250, 96
    %v449 = vpop.permute.xlu0 %448
    %450 = vrot.lane.b32.xlu0 %v255, 96
    %v451 = vpop.permute.xlu0 %450
    %v452 = vsel %vm290, %v220, 0
    %v454 = vsel %vm290, %v225, 0
    %v456 = vsel %vm290, %v230, 0
    %v458 = vsel %vm290, %v235, 0
    %v460 = vsel %vm290, %v240, 0
    %v462 = vsel %vm290, %v245, 0
    %v464 = vsel %vm290, %v250, 0
    %v466 = vsel %vm290, %v255, 0
    %v468 = vsel %vm290, %v437, 0
    %v470 = vsel %vm290, %v439, 0
    %v472 = vsel %vm290, %v441, 0
    %v474 = vsel %vm290, %v443, 0
    %v476 = vsel %vm290, %v445, 0
    %v478 = vsel %vm290, %v447, 0
    %v480 = vsel %vm290, %v449, 0
    %v482 = vsel %vm290, %v451, 0
    %484 = vmatprep.subr.mxu0 0.0
    %485 = vmatpush1.xpose.msra.mxu0 0.0
    %486 = vmatprep.subr.mxu0 0.0
    %487 = vmatpush1.xpose.msra.mxu0 0.0
    %488 = vmatprep.subr.mxu0 0.0
    %489 = vmatpush1.xpose.msra.mxu0 0.0
    %490 = vmatprep.subr.mxu0 0.0
    %491 = vmatpush1.xpose.msra.mxu0 0.0
    %492 = vmatprep.subr.mxu0 0.0
    %493 = vmatpush1.xpose.msra.mxu0 0.0
    %494 = vmatprep.subr.mxu0 0.0
    %495 = vmatpush1.xpose.msra.mxu0 0.0
    %496 = vmatprep.subr.mxu0 0.0
    %497 = vmatpush1.xpose.msra.mxu0 0.0
    %498 = vmatprep.subr.mxu0 0.0
    %499 = vmatpush1.xpose.msra.mxu0 0.0
    %500 = vmatprep.subr.mxu0 0.0
    %501 = vmatpush1.xpose.msra.mxu0 %v482
    %502 = vmatprep.subr.mxu0 0.0
    %503 = vmatpush1.xpose.msra.mxu0 %v480
    %504 = vmatprep.subr.mxu0 0.0
    %505 = vmatpush1.xpose.msra.mxu0 %v478
    %506 = vmatprep.subr.mxu0 0.0
    %507 = vmatpush1.xpose.msra.mxu0 %v476
    %508 = vmatprep.subr.mxu0 0.0
    %509 = vmatpush1.xpose.msra.mxu0 %v474
    %510 = vmatprep.subr.mxu0 0.0
    %511 = vmatpush1.xpose.msra.mxu0 %v472
    %512 = vmatprep.subr.mxu0 0.0
    %513 = vmatpush1.xpose.msra.mxu0 %v470
    %514 = vmatprep.subr.mxu0 0.0
    %515 = vmatpush1.xpose.msra.mxu0 %v468
    %516 = vmatprep.subr.mxu0 0.0
    %517 = vmatpush2.xpose.msra.mxu0 0.0
    %518 = vmatprep.subr.mxu0 0.0
    %519 = vmatpush2.xpose.msra.mxu0 0.0
    %520 = vmatprep.subr.mxu0 0.0
    %521 = vmatpush2.xpose.msra.mxu0 0.0
    %522 = vmatprep.subr.mxu0 0.0
    %523 = vmatpush2.xpose.msra.mxu0 0.0
    %524 = vmatprep.subr.mxu0 0.0
    %525 = vmatpush2.xpose.msra.mxu0 0.0
    %526 = vmatprep.subr.mxu0 0.0
    %527 = vmatpush2.xpose.msra.mxu0 0.0
    %528 = vmatprep.subr.mxu0 0.0
    %529 = vmatpush2.xpose.msra.mxu0 0.0
    %530 = vmatprep.subr.mxu0 0.0
    %531 = vmatpush2.xpose.msra.mxu0 0.0
    %532 = vmatprep.subr.mxu0 0.0
    %533 = vmatpush2.xpose.msra.mxu0 0.0
    %534 = vmatprep.subr.mxu0 0.0
    %535 = vmatpush2.xpose.msra.mxu0 0.0
    %536 = vmatprep.subr.mxu0 0.0
    %537 = vmatpush2.xpose.msra.mxu0 0.0
    %538 = vmatprep.subr.mxu0 0.0
    %539 = vmatpush2.xpose.msra.mxu0 0.0
    %540 = vmatprep.subr.mxu0 0.0
    %541 = vmatpush2.xpose.msra.mxu0 0.0
    %542 = vmatprep.subr.mxu0 0.0
    %543 = vmatpush2.xpose.msra.mxu0 0.0
    %544 = vmatprep.subr.mxu0 0.0
    %545 = vmatpush2.xpose.msra.mxu0 0.0
    %546 = vmatprep.subr.mxu0 0.0
    %547 = vmatpush2.xpose.msra.mxu0 0.0
    %548 = vmatprep.mubr.f32.mxu0 0.0
    %549 = vmatmul.mubr.f32.gmra.mxu0 %v452
    %v550 = vpop.f32.mrf.mxu0
    %v551 = vadd.f32 %v258, %v550
    %v552 = vpop.f32.mrf.mxu0
    %553 = vmatprep.mubr.f32.mxu0 0.0
    %554 = vmatmul.mubr.f32.gmra.mxu0 %v454
    %v555 = vpop.f32.mrf.mxu0
    %v556 = vadd.f32 %v259, %v555
    %v557 = vpop.f32.mrf.mxu0
    %558 = vmatprep.mubr.f32.mxu0 0.0
    %559 = vmatmul.mubr.f32.gmra.mxu0 %v456
    %v560 = vpop.f32.mrf.mxu0
    %v561 = vadd.f32 %v260, %v560
    %v562 = vpop.f32.mrf.mxu0
    %563 = vmatprep.mubr.f32.mxu0 0.0
    %564 = vmatmul.mubr.f32.gmra.mxu0 %v458
    %v565 = vpop.f32.mrf.mxu0
    %v566 = vadd.f32 %v261, %v565
    %v567 = vpop.f32.mrf.mxu0
    %568 = vmatprep.mubr.f32.mxu0 0.0
    %569 = vmatmul.mubr.f32.gmra.mxu0 %v460
    %v570 = vpop.f32.mrf.mxu0
    %v571 = vadd.f32 %v262, %v570
    %v572 = vpop.f32.mrf.mxu0
    %573 = vmatprep.mubr.f32.mxu0 0.0
    %574 = vmatmul.mubr.f32.gmra.mxu0 %v462
    %v575 = vpop.f32.mrf.mxu0
    %v576 = vadd.f32 %v263, %v575
    %v577 = vpop.f32.mrf.mxu0
    %578 = vmatprep.mubr.f32.mxu0 0.0
    %579 = vmatmul.mubr.f32.gmra.mxu0 %v464
    %v580 = vpop.f32.mrf.mxu0
    %v581 = vadd.f32 %v264, %v580
    %v582 = vpop.f32.mrf.mxu0
    %583 = vmatprep.mubr.f32.mxu0 0.0
    %584 = vmatmul.mubr.f32.gmra.mxu0 %v466
    %v585 = vpop.f32.mrf.mxu0
    %v586 = vadd.f32 %v265, %v585
    %v587 = vpop.f32.mrf.mxu0
    %588 = vdwg.mxu0
    %vm589 = vcmask 523264
    %v590 = vsel %vm589, %v390, -inf
    %591 = vmax.xlane.f32.xlu0 %v590
    %v592 = vpop.xlane.xlu0 %591
    %v593 = vsel %vm589, %v395, -inf
    %594 = vmax.xlane.f32.xlu0 %v593
    %v595 = vpop.xlane.xlu0 %594
    %v596 = vsel %vm589, %v400, -inf
    %597 = vmax.xlane.f32.xlu0 %v596
    %v598 = vpop.xlane.xlu0 %597
    %v599 = vsel %vm589, %v405, -inf
    %600 = vmax.xlane.f32.xlu0 %v599
    %v601 = vpop.xlane.xlu0 %600
    %v602 = vsel %vm589, %v410, -inf
    %603 = vmax.xlane.f32.xlu0 %v602
    %v604 = vpop.xlane.xlu0 %603
    %v605 = vsel %vm589, %v415, -inf
    %606 = vmax.xlane.f32.xlu0 %v605
    %v607 = vpop.xlane.xlu0 %606
    %v608 = vsel %vm589, %v420, -inf
    %609 = vmax.xlane.f32.xlu0 %v608
    %v610 = vpop.xlane.xlu0 %609
    %v611 = vsel %vm589, %v425, -inf
    %612 = vmax.xlane.f32.xlu0 %v611
    %v613 = vpop.xlane.xlu0 %612
    %v614 = vsel %vm589, %v551, -inf
    %615 = vmax.xlane.f32.xlu0 %v614
    %v616 = vpop.xlane.xlu0 %615
    %v617 = vsel %vm589, %v556, -inf
    %618 = vmax.xlane.f32.xlu0 %v617
    %v619 = vpop.xlane.xlu0 %618
    %v620 = vsel %vm589, %v561, -inf
    %621 = vmax.xlane.f32.xlu0 %v620
    %v622 = vpop.xlane.xlu0 %621
    %v623 = vsel %vm589, %v566, -inf
    %624 = vmax.xlane.f32.xlu0 %v623
    %v625 = vpop.xlane.xlu0 %624
    %v626 = vsel %vm589, %v571, -inf
    %627 = vmax.xlane.f32.xlu0 %v626
    %v628 = vpop.xlane.xlu0 %627
    %v629 = vsel %vm589, %v576, -inf
    %630 = vmax.xlane.f32.xlu0 %v629
    %v631 = vpop.xlane.xlu0 %630
    %v632 = vsel %vm589, %v581, -inf
    %633 = vmax.xlane.f32.xlu0 %v632
    %v634 = vpop.xlane.xlu0 %633
    %v635 = vsel %vm589, %v586, -inf
    %636 = vmax.xlane.f32.xlu0 %v635
    %v637 = vpop.xlane.xlu0 %636
    %v638 = vsub.f32 %v390, %v592
    %v639 = vsub.f32 %v395, %v595
    %v640 = vsub.f32 %v400, %v598
    %v641 = vsub.f32 %v405, %v601
    %v642 = vsub.f32 %v410, %v604
    %v643 = vsub.f32 %v415, %v607
    %v644 = vsub.f32 %v420, %v610
    %v645 = vsub.f32 %v425, %v613
    %v646 = vsub.f32 %v551, %v616
    %v647 = vsub.f32 %v556, %v619
    %v648 = vsub.f32 %v561, %v622
    %v649 = vsub.f32 %v566, %v625
    %v650 = vsub.f32 %v571, %v628
    %v651 = vsub.f32 %v576, %v631
    %v652 = vsub.f32 %v581, %v634
    %v653 = vsub.f32 %v586, %v637
    %v654 = vmul.f32 %v638, 1.442695
    %v655 = vpow.pop %v654
    %v656 = vmul.f32 %v639, 1.442695
    %v657 = vpow.pop %v656
    %v658 = vmul.f32 %v640, 1.442695
    %v659 = vpow.pop %v658
    %v660 = vmul.f32 %v641, 1.442695
    %v661 = vpow.pop %v660
    %v662 = vmul.f32 %v642, 1.442695
    %v663 = vpow.pop %v662
    %v664 = vmul.f32 %v643, 1.442695
    %v665 = vpow.pop %v664
    %v666 = vmul.f32 %v644, 1.442695
    %v667 = vpow.pop %v666
    %v668 = vmul.f32 %v645, 1.442695
    %v669 = vpow.pop %v668
    %v670 = vmul.f32 %v646, 1.442695
    %v671 = vpow.pop %v670
    %v672 = vmul.f32 %v647, 1.442695
    %v673 = vpow.pop %v672
    %v674 = vmul.f32 %v648, 1.442695
    %v675 = vpow.pop %v674
    %v676 = vmul.f32 %v649, 1.442695
    %v677 = vpow.pop %v676
    %v678 = vmul.f32 %v650, 1.442695
    %v679 = vpow.pop %v678
    %v680 = vmul.f32 %v651, 1.442695
    %v681 = vpow.pop %v680
    %v682 = vmul.f32 %v652, 1.442695
    %v683 = vpow.pop %v682
    %v684 = vmul.f32 %v653, 1.442695
    %v685 = vpow.pop %v684
    %v686 = vsel %vm589, %v655, 0.0
    %687 = vadd.xlane.f32.xlu0 %v686
    %v688 = vpop.xlane.xlu0 %687
    %v689 = vsel %vm589, %v657, 0.0
    %690 = vadd.xlane.f32.xlu0 %v689
    %v691 = vpop.xlane.xlu0 %690
    %v692 = vsel %vm589, %v659, 0.0
    %693 = vadd.xlane.f32.xlu0 %v692
    %v694 = vpop.xlane.xlu0 %693
    %v695 = vsel %vm589, %v661, 0.0
    %696 = vadd.xlane.f32.xlu0 %v695
    %v697 = vpop.xlane.xlu0 %696
    %v698 = vsel %vm589, %v663, 0.0
    %699 = vadd.xlane.f32.xlu0 %v698
    %v700 = vpop.xlane.xlu0 %699
    %v701 = vsel %vm589, %v665, 0.0
    %702 = vadd.xlane.f32.xlu0 %v701
    %v703 = vpop.xlane.xlu0 %702
    %v704 = vsel %vm589, %v667, 0.0
    %705 = vadd.xlane.f32.xlu0 %v704
    %v706 = vpop.xlane.xlu0 %705
    %v707 = vsel %vm589, %v669, 0.0
    %708 = vadd.xlane.f32.xlu0 %v707
    %v709 = vpop.xlane.xlu0 %708
    %v710 = vsel %vm589, %v671, 0.0
    %711 = vadd.xlane.f32.xlu0 %v710
    %v712 = vpop.xlane.xlu0 %711
    %v713 = vsel %vm589, %v673, 0.0
    %714 = vadd.xlane.f32.xlu0 %v713
    %v715 = vpop.xlane.xlu0 %714
    %v716 = vsel %vm589, %v675, 0.0
    %717 = vadd.xlane.f32.xlu0 %v716
    %v718 = vpop.xlane.xlu0 %717
    %v719 = vsel %vm589, %v677, 0.0
    %720 = vadd.xlane.f32.xlu0 %v719
    %v721 = vpop.xlane.xlu0 %720
    %v722 = vsel %vm589, %v679, 0.0
    %723 = vadd.xlane.f32.xlu0 %v722
    %v724 = vpop.xlane.xlu0 %723
    %v725 = vsel %vm589, %v681, 0.0
    %726 = vadd.xlane.f32.xlu0 %v725
    %v727 = vpop.xlane.xlu0 %726
    %v728 = vsel %vm589, %v683, 0.0
    %729 = vadd.xlane.f32.xlu0 %v728
    %v730 = vpop.xlane.xlu0 %729
    %v731 = vsel %vm589, %v685, 0.0
    %732 = vadd.xlane.f32.xlu0 %v731
    %v733 = vpop.xlane.xlu0 %732
    %v734 = vrcp.pop %v688
    %v735 = vrcp.pop %v691
    %v736 = vrcp.pop %v694
    %v737 = vrcp.pop %v697
    %v738 = vrcp.pop %v700
    %v739 = vrcp.pop %v703
    %v740 = vrcp.pop %v706
    %v741 = vrcp.pop %v709
    %v742 = vrcp.pop %v712
    %v743 = vrcp.pop %v715
    %v744 = vrcp.pop %v718
    %v745 = vrcp.pop %v721
    %v746 = vrcp.pop %v724
    %v747 = vrcp.pop %v727
    %v748 = vrcp.pop %v730
    %v749 = vrcp.pop %v733
    %750 = vrot.lane.b32.xlu0 %v180, 64
    %v751 = vpop.permute.xlu0 %750
    %752 = vrot.lane.b32.xlu0 %v185, 64
    %v753 = vpop.permute.xlu0 %752
    %754 = vrot.lane.b32.xlu0 %v190, 64
    %v755 = vpop.permute.xlu0 %754
    %756 = vrot.lane.b32.xlu0 %v195, 64
    %v757 = vpop.permute.xlu0 %756
    %758 = vrot.lane.b32.xlu0 %v200, 64
    %v759 = vpop.permute.xlu0 %758
    %760 = vrot.lane.b32.xlu0 %v205, 64
    %v761 = vpop.permute.xlu0 %760
    %762 = vrot.lane.b32.xlu0 %v210, 64
    %v763 = vpop.permute.xlu0 %762
    %764 = vrot.lane.b32.xlu0 %v215, 64
    %v765 = vpop.permute.xlu0 %764
    %v775 = vsel %vm589, %v655, 0
    %v778 = vsel %vm589, %v657, 0
    %v781 = vsel %vm589, %v659, 0
    %v784 = vsel %vm589, %v661, 0
    %v787 = vsel %vm589, %v663, 0
    %v790 = vsel %vm589, %v665, 0
    %v793 = vsel %vm589, %v667, 0
    %v796 = vsel %vm589, %v669, 0
    %798 = vmatprep.subr.mxu0 0.0
    %799 = vmatpush1.msra.mxu0 0.0
    %800 = vmatprep.subr.mxu0 0.0
    %801 = vmatpush1.msra.mxu0 0.0
    %802 = vmatprep.subr.mxu0 0.0
    %803 = vmatpush1.msra.mxu0 0.0
    %804 = vmatprep.subr.mxu0 0.0
    %805 = vmatpush1.msra.mxu0 0.0
    %806 = vmatprep.subr.mxu0 0.0
    %807 = vmatpush1.msra.mxu0 0.0
    %808 = vmatprep.subr.mxu0 0.0
    %809 = vmatpush1.msra.mxu0 0.0
    %810 = vmatprep.subr.mxu0 0.0
    %811 = vmatpush1.msra.mxu0 0.0
    %812 = vmatprep.subr.mxu0 0.0
    %813 = vmatpush1.msra.mxu0 0.0
    %814 = vmatprep.subr.mxu0 0.0
    %815 = vmatpush1.msra.mxu0 %v765
    %816 = vmatprep.subr.mxu0 0.0
    %817 = vmatpush1.msra.mxu0 %v763
    %818 = vmatprep.subr.mxu0 0.0
    %819 = vmatpush1.msra.mxu0 %v761
    %820 = vmatprep.subr.mxu0 0.0
    %821 = vmatpush1.msra.mxu0 %v759
    %822 = vmatprep.subr.mxu0 0.0
    %823 = vmatpush1.msra.mxu0 %v757
    %824 = vmatprep.subr.mxu0 0.0
    %825 = vmatpush1.msra.mxu0 %v755
    %826 = vmatprep.subr.mxu0 0.0
    %827 = vmatpush1.msra.mxu0 %v753
    %828 = vmatprep.subr.mxu0 0.0
    %829 = vmatpush1.msra.mxu0 %v751
    %830 = vmatprep.subr.mxu0 0.0
    %831 = vmatpush2.msra.mxu0 0.0
    %832 = vmatprep.subr.mxu0 0.0
    %833 = vmatpush2.msra.mxu0 0.0
    %834 = vmatprep.subr.mxu0 0.0
    %835 = vmatpush2.msra.mxu0 0.0
    %836 = vmatprep.subr.mxu0 0.0
    %837 = vmatpush2.msra.mxu0 0.0
    %838 = vmatprep.subr.mxu0 0.0
    %839 = vmatpush2.msra.mxu0 0.0
    %840 = vmatprep.subr.mxu0 0.0
    %841 = vmatpush2.msra.mxu0 0.0
    %842 = vmatprep.subr.mxu0 0.0
    %843 = vmatpush2.msra.mxu0 0.0
    %844 = vmatprep.subr.mxu0 0.0
    %845 = vmatpush2.msra.mxu0 0.0
    %846 = vmatprep.subr.mxu0 0.0
    %847 = vmatpush2.msra.mxu0 0.0
    %848 = vmatprep.subr.mxu0 0.0
    %849 = vmatpush2.msra.mxu0 0.0
    %850 = vmatprep.subr.mxu0 0.0
    %851 = vmatpush2.msra.mxu0 0.0
    %852 = vmatprep.subr.mxu0 0.0
    %853 = vmatpush2.msra.mxu0 0.0
    %854 = vmatprep.subr.mxu0 0.0
    %855 = vmatpush2.msra.mxu0 0.0
    %856 = vmatprep.subr.mxu0 0.0
    %857 = vmatpush2.msra.mxu0 0.0
    %858 = vmatprep.subr.mxu0 0.0
    %859 = vmatpush2.msra.mxu0 0.0
    %860 = vmatprep.subr.mxu0 0.0
    %861 = vmatpush2.msra.mxu0 0.0
    %862 = vmatprep.mubr.f32.mxu0 0.0
    %863 = vmatmul.mubr.f32.gmra.mxu0 %v775
    %v864 = vpop.f32.mrf.mxu0
    %v865 = vadd.f32 0.0, %v864
    %v866 = vpop.f32.mrf.mxu0
    %867 = vmatprep.mubr.f32.mxu0 0.0
    %868 = vmatmul.mubr.f32.gmra.mxu0 %v778
    %v869 = vpop.f32.mrf.mxu0
    %v870 = vadd.f32 0.0, %v869
    %v871 = vpop.f32.mrf.mxu0
    %872 = vmatprep.mubr.f32.mxu0 0.0
    %873 = vmatmul.mubr.f32.gmra.mxu0 %v781
    %v874 = vpop.f32.mrf.mxu0
    %v875 = vadd.f32 0.0, %v874
    %v876 = vpop.f32.mrf.mxu0
    %877 = vmatprep.mubr.f32.mxu0 0.0
    %878 = vmatmul.mubr.f32.gmra.mxu0 %v784
    %v879 = vpop.f32.mrf.mxu0
    %v880 = vadd.f32 0.0, %v879
    %v881 = vpop.f32.mrf.mxu0
    %882 = vmatprep.mubr.f32.mxu0 0.0
    %883 = vmatmul.mubr.f32.gmra.mxu0 %v787
    %v884 = vpop.f32.mrf.mxu0
    %v885 = vadd.f32 0.0, %v884
    %v886 = vpop.f32.mrf.mxu0
    %887 = vmatprep.mubr.f32.mxu0 0.0
    %888 = vmatmul.mubr.f32.gmra.mxu0 %v790
    %v889 = vpop.f32.mrf.mxu0
    %v890 = vadd.f32 0.0, %v889
    %v891 = vpop.f32.mrf.mxu0
    %892 = vmatprep.mubr.f32.mxu0 0.0
    %893 = vmatmul.mubr.f32.gmra.mxu0 %v793
    %v894 = vpop.f32.mrf.mxu0
    %v895 = vadd.f32 0.0, %v894
    %v896 = vpop.f32.mrf.mxu0
    %897 = vmatprep.mubr.f32.mxu0 0.0
    %898 = vmatmul.mubr.f32.gmra.mxu0 %v796
    %v899 = vpop.f32.mrf.mxu0
    %v900 = vadd.f32 0.0, %v899
    %v901 = vpop.f32.mrf.mxu0
    %902 = vdwg.mxu0
    %903 = vrot.lane.b32.xlu0 %v220, 64
    %v904 = vpop.permute.xlu0 %903
    %905 = vrot.lane.b32.xlu0 %v225, 64
    %v906 = vpop.permute.xlu0 %905
    %907 = vrot.lane.b32.xlu0 %v230, 64
    %v908 = vpop.permute.xlu0 %907
    %909 = vrot.lane.b32.xlu0 %v235, 64
    %v910 = vpop.permute.xlu0 %909
    %911 = vrot.lane.b32.xlu0 %v240, 64
    %v912 = vpop.permute.xlu0 %911
    %913 = vrot.lane.b32.xlu0 %v245, 64
    %v914 = vpop.permute.xlu0 %913
    %915 = vrot.lane.b32.xlu0 %v250, 64
    %v916 = vpop.permute.xlu0 %915
    %917 = vrot.lane.b32.xlu0 %v255, 64
    %v918 = vpop.permute.xlu0 %917
    %v928 = vsel %vm589, %v671, 0
    %v931 = vsel %vm589, %v673, 0
    %v934 = vsel %vm589, %v675, 0
    %v937 = vsel %vm589, %v677, 0
    %v940 = vsel %vm589, %v679, 0
    %v943 = vsel %vm589, %v681, 0
    %v946 = vsel %vm589, %v683, 0
    %v949 = vsel %vm589, %v685, 0
    %951 = vmatprep.subr.mxu0 0.0
    %952 = vmatpush1.msra.mxu0 0.0
    %953 = vmatprep.subr.mxu0 0.0
    %954 = vmatpush1.msra.mxu0 0.0
    %955 = vmatprep.subr.mxu0 0.0
    %956 = vmatpush1.msra.mxu0 0.0
    %957 = vmatprep.subr.mxu0 0.0
    %958 = vmatpush1.msra.mxu0 0.0
    %959 = vmatprep.subr.mxu0 0.0
    %960 = vmatpush1.msra.mxu0 0.0
    %961 = vmatprep.subr.mxu0 0.0
    %962 = vmatpush1.msra.mxu0 0.0
    %963 = vmatprep.subr.mxu0 0.0
    %964 = vmatpush1.msra.mxu0 0.0
    %965 = vmatprep.subr.mxu0 0.0
    %966 = vmatpush1.msra.mxu0 0.0
    %967 = vmatprep.subr.mxu0 0.0
    %968 = vmatpush1.msra.mxu0 %v918
    %969 = vmatprep.subr.mxu0 0.0
    %970 = vmatpush1.msra.mxu0 %v916
    %971 = vmatprep.subr.mxu0 0.0
    %972 = vmatpush1.msra.mxu0 %v914
    %973 = vmatprep.subr.mxu0 0.0
    %974 = vmatpush1.msra.mxu0 %v912
    %975 = vmatprep.subr.mxu0 0.0
    %976 = vmatpush1.msra.mxu0 %v910
    %977 = vmatprep.subr.mxu0 0.0
    %978 = vmatpush1.msra.mxu0 %v908
    %979 = vmatprep.subr.mxu0 0.0
    %980 = vmatpush1.msra.mxu0 %v906
    %981 = vmatprep.subr.mxu0 0.0
    %982 = vmatpush1.msra.mxu0 %v904
    %983 = vmatprep.subr.mxu0 0.0
    %984 = vmatpush2.msra.mxu0 0.0
    %985 = vmatprep.subr.mxu0 0.0
    %986 = vmatpush2.msra.mxu0 0.0
    %987 = vmatprep.subr.mxu0 0.0
    %988 = vmatpush2.msra.mxu0 0.0
    %989 = vmatprep.subr.mxu0 0.0
    %990 = vmatpush2.msra.mxu0 0.0
    %991 = vmatprep.subr.mxu0 0.0
    %992 = vmatpush2.msra.mxu0 0.0
    %993 = vmatprep.subr.mxu0 0.0
    %994 = vmatpush2.msra.mxu0 0.0
    %995 = vmatprep.subr.mxu0 0.0
    %996 = vmatpush2.msra.mxu0 0.0
    %997 = vmatprep.subr.mxu0 0.0
    %998 = vmatpush2.msra.mxu0 0.0
    %999 = vmatprep.subr.mxu0 0.0
    %1000 = vmatpush2.msra.mxu0 0.0
    %1001 = vmatprep.subr.mxu0 0.0
    %1002 = vmatpush2.msra.mxu0 0.0
    %1003 = vmatprep.subr.mxu0 0.0
    %1004 = vmatpush2.msra.mxu0 0.0
    %1005 = vmatprep.subr.mxu0 0.0
    %1006 = vmatpush2.msra.mxu0 0.0
    %1007 = vmatprep.subr.mxu0 0.0
    %1008 = vmatpush2.msra.mxu0 0.0
    %1009 = vmatprep.subr.mxu0 0.0
    %1010 = vmatpush2.msra.mxu0 0.0
    %1011 = vmatprep.subr.mxu0 0.0
    %1012 = vmatpush2.msra.mxu0 0.0
    %1013 = vmatprep.subr.mxu0 0.0
    %1014 = vmatpush2.msra.mxu0 0.0
    %1015 = vmatprep.mubr.f32.mxu0 0.0
    %1016 = vmatmul.mubr.f32.gmra.mxu0 %v928
    %v1017 = vpop.f32.mrf.mxu0
    %v1018 = vadd.f32 0.0, %v1017
    %v1019 = vpop.f32.mrf.mxu0
    %1020 = vmatprep.mubr.f32.mxu0 0.0
    %1021 = vmatmul.mubr.f32.gmra.mxu0 %v931
    %v1022 = vpop.f32.mrf.mxu0
    %v1023 = vadd.f32 0.0, %v1022
    %v1024 = vpop.f32.mrf.mxu0
    %1025 = vmatprep.mubr.f32.mxu0 0.0
    %1026 = vmatmul.mubr.f32.gmra.mxu0 %v934
    %v1027 = vpop.f32.mrf.mxu0
    %v1028 = vadd.f32 0.0, %v1027
    %v1029 = vpop.f32.mrf.mxu0
    %1030 = vmatprep.mubr.f32.mxu0 0.0
    %1031 = vmatmul.mubr.f32.gmra.mxu0 %v937
    %v1032 = vpop.f32.mrf.mxu0
    %v1033 = vadd.f32 0.0, %v1032
    %v1034 = vpop.f32.mrf.mxu0
    %1035 = vmatprep.mubr.f32.mxu0 0.0
    %1036 = vmatmul.mubr.f32.gmra.mxu0 %v940
    %v1037 = vpop.f32.mrf.mxu0
    %v1038 = vadd.f32 0.0, %v1037
    %v1039 = vpop.f32.mrf.mxu0
    %1040 = vmatprep.mubr.f32.mxu0 0.0
    %1041 = vmatmul.mubr.f32.gmra.mxu0 %v943
    %v1042 = vpop.f32.mrf.mxu0
    %v1043 = vadd.f32 0.0, %v1042
    %v1044 = vpop.f32.mrf.mxu0
    %1045 = vmatprep.mubr.f32.mxu0 0.0
    %1046 = vmatmul.mubr.f32.gmra.mxu0 %v946
    %v1047 = vpop.f32.mrf.mxu0
    %v1048 = vadd.f32 0.0, %v1047
    %v1049 = vpop.f32.mrf.mxu0
    %1050 = vmatprep.mubr.f32.mxu0 0.0
    %1051 = vmatmul.mubr.f32.gmra.mxu0 %v949
    %v1052 = vpop.f32.mrf.mxu0
    %v1053 = vadd.f32 0.0, %v1052
    %v1054 = vpop.f32.mrf.mxu0
    %1055 = vdwg.mxu0
    %v1056 = vmul.f32 %v865, %v734
    %v1057 = vmul.f32 %v870, %v735
    %v1058 = vmul.f32 %v875, %v736
    %v1059 = vmul.f32 %v880, %v737
    %v1060 = vmul.f32 %v885, %v738
    %v1061 = vmul.f32 %v890, %v739
    %v1062 = vmul.f32 %v895, %v740
    %v1063 = vmul.f32 %v900, %v741
    %v1064 = vmul.f32 %v1018, %v742
    %v1065 = vmul.f32 %v1023, %v743
    %v1066 = vmul.f32 %v1028, %v744
    %v1067 = vmul.f32 %v1033, %v745
    %v1068 = vmul.f32 %v1038, %v746
    %v1069 = vmul.f32 %v1043, %v747
    %v1070 = vmul.f32 %v1048, %v748
    %v1071 = vmul.f32 %v1053, %v749
    %s1072 = scalar_lea.vmem [#allocation2], 64
    %v1073 = vld [vmem:[%s1072] sm:$0xff]
    %v1074 = vld [vmem:[%s1072 + $0x8] sm:$0xff]
    %v1075 = vld [vmem:[%s1072 + $0x10] sm:$0xff]
    %v1076 = vld [vmem:[%s1072 + $0x18] sm:$0xff]
    %v1077 = vld [vmem:[%s1072 + $0x20] sm:$0xff]
    %v1078 = vld [vmem:[%s1072 + $0x28] sm:$0xff]
    %v1079 = vld [vmem:[%s1072 + $0x30] sm:$0xff]
    %v1080 = vld [vmem:[%s1072 + $0x38] sm:$0xff]
    %1081 = vrot.lane.b32.xlu0 %v180, 120
    %v1082 = vpop.permute.xlu0 %1081
    %1083 = vrot.lane.b32.xlu0 %v185, 120
    %v1084 = vpop.permute.xlu0 %1083
    %1085 = vrot.lane.b32.xlu0 %v190, 120
    %v1086 = vpop.permute.xlu0 %1085
    %1087 = vrot.lane.b32.xlu0 %v195, 120
    %v1088 = vpop.permute.xlu0 %1087
    %1089 = vrot.lane.b32.xlu0 %v200, 120
    %v1090 = vpop.permute.xlu0 %1089
    %1091 = vrot.lane.b32.xlu0 %v205, 120
    %v1092 = vpop.permute.xlu0 %1091
    %1093 = vrot.lane.b32.xlu0 %v210, 120
    %v1094 = vpop.permute.xlu0 %1093
    %1095 = vrot.lane.b32.xlu0 %v215, 120
    %v1096 = vpop.permute.xlu0 %1095
    %1097 = vrot.lane.b32.xlu0 %v180, 88
    %v1098 = vpop.permute.xlu0 %1097
    %1099 = vrot.lane.b32.xlu0 %v185, 88
    %v1100 = vpop.permute.xlu0 %1099
    %1101 = vrot.lane.b32.xlu0 %v190, 88
    %v1102 = vpop.permute.xlu0 %1101
    %1103 = vrot.lane.b32.xlu0 %v195, 88
    %v1104 = vpop.permute.xlu0 %1103
    %1105 = vrot.lane.b32.xlu0 %v200, 88
    %v1106 = vpop.permute.xlu0 %1105
    %1107 = vrot.lane.b32.xlu0 %v205, 88
    %v1108 = vpop.permute.xlu0 %1107
    %1109 = vrot.lane.b32.xlu0 %v210, 88
    %v1110 = vpop.permute.xlu0 %1109
    %1111 = vrot.lane.b32.xlu0 %v215, 88
    %v1112 = vpop.permute.xlu0 %1111
    %v1113 = vsel %vm290, %v1082, 0
    %v1115 = vsel %vm290, %v1084, 0
    %v1117 = vsel %vm290, %v1086, 0
    %v1119 = vsel %vm290, %v1088, 0
    %v1121 = vsel %vm290, %v1090, 0
    %v1123 = vsel %vm290, %v1092, 0
    %v1125 = vsel %vm290, %v1094, 0
    %v1127 = vsel %vm290, %v1096, 0
    %v1129 = vsel %vm290, %v1098, 0
    %v1131 = vsel %vm290, %v1100, 0
    %v1133 = vsel %vm290, %v1102, 0
    %v1135 = vsel %vm290, %v1104, 0
    %v1137 = vsel %vm290, %v1106, 0
    %v1139 = vsel %vm290, %v1108, 0
    %v1141 = vsel %vm290, %v1110, 0
    %v1143 = vsel %vm290, %v1112, 0
    %1145 = vmatprep.subr.mxu0 0.0
    %1146 = vmatpush1.xpose.msra.mxu0 0.0
    %1147 = vmatprep.subr.mxu0 0.0
    %1148 = vmatpush1.xpose.msra.mxu0 0.0
    %1149 = vmatprep.subr.mxu0 0.0
    %1150 = vmatpush1.xpose.msra.mxu0 0.0
    %1151 = vmatprep.subr.mxu0 0.0
    %1152 = vmatpush1.xpose.msra.mxu0 0.0
    %1153 = vmatprep.subr.mxu0 0.0
    %1154 = vmatpush1.xpose.msra.mxu0 0.0
    %1155 = vmatprep.subr.mxu0 0.0
    %1156 = vmatpush1.xpose.msra.mxu0 0.0
    %1157 = vmatprep.subr.mxu0 0.0
    %1158 = vmatpush1.xpose.msra.mxu0 0.0
    %1159 = vmatprep.subr.mxu0 0.0
    %1160 = vmatpush1.xpose.msra.mxu0 0.0
    %1161 = vmatprep.subr.mxu0 0.0
    %1162 = vmatpush1.xpose.msra.mxu0 %v1143
    %1163 = vmatprep.subr.mxu0 0.0
    %1164 = vmatpush1.xpose.msra.mxu0 %v1141
    %1165 = vmatprep.subr.mxu0 0.0
    %1166 = vmatpush1.xpose.msra.mxu0 %v1139
    %1167 = vmatprep.subr.mxu0 0.0
    %1168 = vmatpush1.xpose.msra.mxu0 %v1137
    %1169 = vmatprep.subr.mxu0 0.0
    %1170 = vmatpush1.xpose.msra.mxu0 %v1135
    %1171 = vmatprep.subr.mxu0 0.0
    %1172 = vmatpush1.xpose.msra.mxu0 %v1133
    %1173 = vmatprep.subr.mxu0 0.0
    %1174 = vmatpush1.xpose.msra.mxu0 %v1131
    %1175 = vmatprep.subr.mxu0 0.0
    %1176 = vmatpush1.xpose.msra.mxu0 %v1129
    %1177 = vmatprep.subr.mxu0 0.0
    %1178 = vmatpush2.xpose.msra.mxu0 0.0
    %1179 = vmatprep.subr.mxu0 0.0
    %1180 = vmatpush2.xpose.msra.mxu0 0.0
    %1181 = vmatprep.subr.mxu0 0.0
    %1182 = vmatpush2.xpose.msra.mxu0 0.0
    %1183 = vmatprep.subr.mxu0 0.0
    %1184 = vmatpush2.xpose.msra.mxu0 0.0
    %1185 = vmatprep.subr.mxu0 0.0
    %1186 = vmatpush2.xpose.msra.mxu0 0.0
    %1187 = vmatprep.subr.mxu0 0.0
    %1188 = vmatpush2.xpose.msra.mxu0 0.0
    %1189 = vmatprep.subr.mxu0 0.0
    %1190 = vmatpush2.xpose.msra.mxu0 0.0
    %1191 = vmatprep.subr.mxu0 0.0
    %1192 = vmatpush2.xpose.msra.mxu0 0.0
    %1193 = vmatprep.subr.mxu0 0.0
    %1194 = vmatpush2.xpose.msra.mxu0 0.0
    %1195 = vmatprep.subr.mxu0 0.0
    %1196 = vmatpush2.xpose.msra.mxu0 0.0
    %1197 = vmatprep.subr.mxu0 0.0
    %1198 = vmatpush2.xpose.msra.mxu0 0.0
    %1199 = vmatprep.subr.mxu0 0.0
    %1200 = vmatpush2.xpose.msra.mxu0 0.0
    %1201 = vmatprep.subr.mxu0 0.0
    %1202 = vmatpush2.xpose.msra.mxu0 0.0
    %1203 = vmatprep.subr.mxu0 0.0
    %1204 = vmatpush2.xpose.msra.mxu0 0.0
    %1205 = vmatprep.subr.mxu0 0.0
    %1206 = vmatpush2.xpose.msra.mxu0 0.0
    %1207 = vmatprep.subr.mxu0 0.0
    %1208 = vmatpush2.xpose.msra.mxu0 0.0
    %1209 = vmatprep.mubr.f32.mxu0 0.0
    %1210 = vmatmul.mubr.f32.gmra.mxu0 %v1113
    %v1211 = vpop.f32.mrf.mxu0
    %v1212 = vadd.f32 %v1073, %v1211
    %v1213 = vpop.f32.mrf.mxu0
    %1214 = vmatprep.mubr.f32.mxu0 0.0
    %1215 = vmatmul.mubr.f32.gmra.mxu0 %v1115
    %v1216 = vpop.f32.mrf.mxu0
    %v1217 = vadd.f32 %v1074, %v1216
    %v1218 = vpop.f32.mrf.mxu0
    %1219 = vmatprep.mubr.f32.mxu0 0.0
    %1220 = vmatmul.mubr.f32.gmra.mxu0 %v1117
    %v1221 = vpop.f32.mrf.mxu0
    %v1222 = vadd.f32 %v1075, %v1221
    %v1223 = vpop.f32.mrf.mxu0
    %1224 = vmatprep.mubr.f32.mxu0 0.0
    %1225 = vmatmul.mubr.f32.gmra.mxu0 %v1119
    %v1226 = vpop.f32.mrf.mxu0
    %v1227 = vadd.f32 %v1076, %v1226
    %v1228 = vpop.f32.mrf.mxu0
    %1229 = vmatprep.mubr.f32.mxu0 0.0
    %1230 = vmatmul.mubr.f32.gmra.mxu0 %v1121
    %v1231 = vpop.f32.mrf.mxu0
    %v1232 = vadd.f32 %v1077, %v1231
    %v1233 = vpop.f32.mrf.mxu0
    %1234 = vmatprep.mubr.f32.mxu0 0.0
    %1235 = vmatmul.mubr.f32.gmra.mxu0 %v1123
    %v1236 = vpop.f32.mrf.mxu0
    %v1237 = vadd.f32 %v1078, %v1236
    %v1238 = vpop.f32.mrf.mxu0
    %1239 = vmatprep.mubr.f32.mxu0 0.0
    %1240 = vmatmul.mubr.f32.gmra.mxu0 %v1125
    %v1241 = vpop.f32.mrf.mxu0
    %v1242 = vadd.f32 %v1079, %v1241
    %v1243 = vpop.f32.mrf.mxu0
    %1244 = vmatprep.mubr.f32.mxu0 0.0
    %1245 = vmatmul.mubr.f32.gmra.mxu0 %v1127
    %v1246 = vpop.f32.mrf.mxu0
    %v1247 = vadd.f32 %v1080, %v1246
    %v1248 = vpop.f32.mrf.mxu0
    %1249 = vdwg.mxu0
    %1250 = vrot.lane.b32.xlu0 %v220, 120
    %v1251 = vpop.permute.xlu0 %1250
    %1252 = vrot.lane.b32.xlu0 %v225, 120
    %v1253 = vpop.permute.xlu0 %1252
    %1254 = vrot.lane.b32.xlu0 %v230, 120
    %v1255 = vpop.permute.xlu0 %1254
    %1256 = vrot.lane.b32.xlu0 %v235, 120
    %v1257 = vpop.permute.xlu0 %1256
    %1258 = vrot.lane.b32.xlu0 %v240, 120
    %v1259 = vpop.permute.xlu0 %1258
    %1260 = vrot.lane.b32.xlu0 %v245, 120
    %v1261 = vpop.permute.xlu0 %1260
    %1262 = vrot.lane.b32.xlu0 %v250, 120
    %v1263 = vpop.permute.xlu0 %1262
    %1264 = vrot.lane.b32.xlu0 %v255, 120
    %v1265 = vpop.permute.xlu0 %1264
    %1266 = vrot.lane.b32.xlu0 %v220, 88
    %v1267 = vpop.permute.xlu0 %1266
    %1268 = vrot.lane.b32.xlu0 %v225, 88
    %v1269 = vpop.permute.xlu0 %1268
    %1270 = vrot.lane.b32.xlu0 %v230, 88
    %v1271 = vpop.permute.xlu0 %1270
    %1272 = vrot.lane.b32.xlu0 %v235, 88
    %v1273 = vpop.permute.xlu0 %1272
    %1274 = vrot.lane.b32.xlu0 %v240, 88
    %v1275 = vpop.permute.xlu0 %1274
    %1276 = vrot.lane.b32.xlu0 %v245, 88
    %v1277 = vpop.permute.xlu0 %1276
    %1278 = vrot.lane.b32.xlu0 %v250, 88
    %v1279 = vpop.permute.xlu0 %1278
    %1280 = vrot.lane.b32.xlu0 %v255, 88
    %v1281 = vpop.permute.xlu0 %1280
    %v1282 = vsel %vm290, %v1251, 0
    %v1284 = vsel %vm290, %v1253, 0
    %v1286 = vsel %vm290, %v1255, 0
    %v1288 = vsel %vm290, %v1257, 0
    %v1290 = vsel %vm290, %v1259, 0
    %v1292 = vsel %vm290, %v1261, 0
    %v1294 = vsel %vm290, %v1263, 0
    %v1296 = vsel %vm290, %v1265, 0
    %v1298 = vsel %vm290, %v1267, 0
    %v1300 = vsel %vm290, %v1269, 0
    %v1302 = vsel %vm290, %v1271, 0
    %v1304 = vsel %vm290, %v1273, 0
    %v1306 = vsel %vm290, %v1275, 0
    %v1308 = vsel %vm290, %v1277, 0
    %v1310 = vsel %vm290, %v1279, 0
    %v1312 = vsel %vm290, %v1281, 0
    %1314 = vmatprep.subr.mxu0 0.0
    %1315 = vmatpush1.xpose.msra.mxu0 0.0
    %1316 = vmatprep.subr.mxu0 0.0
    %1317 = vmatpush1.xpose.msra.mxu0 0.0
    %1318 = vmatprep.subr.mxu0 0.0
    %1319 = vmatpush1.xpose.msra.mxu0 0.0
    %1320 = vmatprep.subr.mxu0 0.0
    %1321 = vmatpush1.xpose.msra.mxu0 0.0
    %1322 = vmatprep.subr.mxu0 0.0
    %1323 = vmatpush1.xpose.msra.mxu0 0.0
    %1324 = vmatprep.subr.mxu0 0.0
    %1325 = vmatpush1.xpose.msra.mxu0 0.0
    %1326 = vmatprep.subr.mxu0 0.0
    %1327 = vmatpush1.xpose.msra.mxu0 0.0
    %1328 = vmatprep.subr.mxu0 0.0
    %1329 = vmatpush1.xpose.msra.mxu0 0.0
    %1330 = vmatprep.subr.mxu0 0.0
    %1331 = vmatpush1.xpose.msra.mxu0 %v1312
    %1332 = vmatprep.subr.mxu0 0.0
    %1333 = vmatpush1.xpose.msra.mxu0 %v1310
    %1334 = vmatprep.subr.mxu0 0.0
    %1335 = vmatpush1.xpose.msra.mxu0 %v1308
    %1336 = vmatprep.subr.mxu0 0.0
    %1337 = vmatpush1.xpose.msra.mxu0 %v1306
    %1338 = vmatprep.subr.mxu0 0.0
    %1339 = vmatpush1.xpose.msra.mxu0 %v1304
    %1340 = vmatprep.subr.mxu0 0.0
    %1341 = vmatpush1.xpose.msra.mxu0 %v1302
    %1342 = vmatprep.subr.mxu0 0.0
    %1343 = vmatpush1.xpose.msra.mxu0 %v1300
    %1344 = vmatprep.subr.mxu0 0.0
    %1345 = vmatpush1.xpose.msra.mxu0 %v1298
    %1346 = vmatprep.subr.mxu0 0.0
    %1347 = vmatpush2.xpose.msra.mxu0 0.0
    %1348 = vmatprep.subr.mxu0 0.0
    %1349 = vmatpush2.xpose.msra.mxu0 0.0
    %1350 = vmatprep.subr.mxu0 0.0
    %1351 = vmatpush2.xpose.msra.mxu0 0.0
    %1352 = vmatprep.subr.mxu0 0.0
    %1353 = vmatpush2.xpose.msra.mxu0 0.0
    %1354 = vmatprep.subr.mxu0 0.0
    %1355 = vmatpush2.xpose.msra.mxu0 0.0
    %1356 = vmatprep.subr.mxu0 0.0
    %1357 = vmatpush2.xpose.msra.mxu0 0.0
    %1358 = vmatprep.subr.mxu0 0.0
    %1359 = vmatpush2.xpose.msra.mxu0 0.0
    %1360 = vmatprep.subr.mxu0 0.0
    %1361 = vmatpush2.xpose.msra.mxu0 0.0
    %1362 = vmatprep.subr.mxu0 0.0
    %1363 = vmatpush2.xpose.msra.mxu0 0.0
    %1364 = vmatprep.subr.mxu0 0.0
    %1365 = vmatpush2.xpose.msra.mxu0 0.0
    %1366 = vmatprep.subr.mxu0 0.0
    %1367 = vmatpush2.xpose.msra.mxu0 0.0
    %1368 = vmatprep.subr.mxu0 0.0
    %1369 = vmatpush2.xpose.msra.mxu0 0.0
    %1370 = vmatprep.subr.mxu0 0.0
    %1371 = vmatpush2.xpose.msra.mxu0 0.0
    %1372 = vmatprep.subr.mxu0 0.0
    %1373 = vmatpush2.xpose.msra.mxu0 0.0
    %1374 = vmatprep.subr.mxu0 0.0
    %1375 = vmatpush2.xpose.msra.mxu0 0.0
    %1376 = vmatprep.subr.mxu0 0.0
    %1377 = vmatpush2.xpose.msra.mxu0 0.0
    %1378 = vmatprep.mubr.f32.mxu0 0.0
    %1379 = vmatmul.mubr.f32.gmra.mxu0 %v1282
    %v1380 = vpop.f32.mrf.mxu0
    %v1381 = vadd.f32 %v1073, %v1380
    %v1382 = vpop.f32.mrf.mxu0
    %1383 = vmatprep.mubr.f32.mxu0 0.0
    %1384 = vmatmul.mubr.f32.gmra.mxu0 %v1284
    %v1385 = vpop.f32.mrf.mxu0
    %v1386 = vadd.f32 %v1074, %v1385
    %v1387 = vpop.f32.mrf.mxu0
    %1388 = vmatprep.mubr.f32.mxu0 0.0
    %1389 = vmatmul.mubr.f32.gmra.mxu0 %v1286
    %v1390 = vpop.f32.mrf.mxu0
    %v1391 = vadd.f32 %v1075, %v1390
    %v1392 = vpop.f32.mrf.mxu0
    %1393 = vmatprep.mubr.f32.mxu0 0.0
    %1394 = vmatmul.mubr.f32.gmra.mxu0 %v1288
    %v1395 = vpop.f32.mrf.mxu0
    %v1396 = vadd.f32 %v1076, %v1395
    %v1397 = vpop.f32.mrf.mxu0
    %1398 = vmatprep.mubr.f32.mxu0 0.0
    %1399 = vmatmul.mubr.f32.gmra.mxu0 %v1290
    %v1400 = vpop.f32.mrf.mxu0
    %v1401 = vadd.f32 %v1077, %v1400
    %v1402 = vpop.f32.mrf.mxu0
    %1403 = vmatprep.mubr.f32.mxu0 0.0
    %1404 = vmatmul.mubr.f32.gmra.mxu0 %v1292
    %v1405 = vpop.f32.mrf.mxu0
    %v1406 = vadd.f32 %v1078, %v1405
    %v1407 = vpop.f32.mrf.mxu0
    %1408 = vmatprep.mubr.f32.mxu0 0.0
    %1409 = vmatmul.mubr.f32.gmra.mxu0 %v1294
    %v1410 = vpop.f32.mrf.mxu0
    %v1411 = vadd.f32 %v1079, %v1410
    %v1412 = vpop.f32.mrf.mxu0
    %1413 = vmatprep.mubr.f32.mxu0 0.0
    %1414 = vmatmul.mubr.f32.gmra.mxu0 %v1296
    %v1415 = vpop.f32.mrf.mxu0
    %v1416 = vadd.f32 %v1080, %v1415
    %v1417 = vpop.f32.mrf.mxu0
    %1418 = vdwg.mxu0
    %v1419 = vsel %vm589, %v1212, -inf
    %1420 = vmax.xlane.f32.xlu0 %v1419
    %v1421 = vpop.xlane.xlu0 %1420
    %v1422 = vsel %vm589, %v1217, -inf
    %1423 = vmax.xlane.f32.xlu0 %v1422
    %v1424 = vpop.xlane.xlu0 %1423
    %v1425 = vsel %vm589, %v1222, -inf
    %1426 = vmax.xlane.f32.xlu0 %v1425
    %v1427 = vpop.xlane.xlu0 %1426
    %v1428 = vsel %vm589, %v1227, -inf
    %1429 = vmax.xlane.f32.xlu0 %v1428
    %v1430 = vpop.xlane.xlu0 %1429
    %v1431 = vsel %vm589, %v1232, -inf
    %1432 = vmax.xlane.f32.xlu0 %v1431
    %v1433 = vpop.xlane.xlu0 %1432
    %v1434 = vsel %vm589, %v1237, -inf
    %1435 = vmax.xlane.f32.xlu0 %v1434
    %v1436 = vpop.xlane.xlu0 %1435
    %v1437 = vsel %vm589, %v1242, -inf
    %1438 = vmax.xlane.f32.xlu0 %v1437
    %v1439 = vpop.xlane.xlu0 %1438
    %v1440 = vsel %vm589, %v1247, -inf
    %1441 = vmax.xlane.f32.xlu0 %v1440
    %v1442 = vpop.xlane.xlu0 %1441
    %v1443 = vsel %vm589, %v1381, -inf
    %1444 = vmax.xlane.f32.xlu0 %v1443
    %v1445 = vpop.xlane.xlu0 %1444
    %v1446 = vsel %vm589, %v1386, -inf
    %1447 = vmax.xlane.f32.xlu0 %v1446
    %v1448 = vpop.xlane.xlu0 %1447
    %v1449 = vsel %vm589, %v1391, -inf
    %1450 = vmax.xlane.f32.xlu0 %v1449
    %v1451 = vpop.xlane.xlu0 %1450
    %v1452 = vsel %vm589, %v1396, -inf
    %1453 = vmax.xlane.f32.xlu0 %v1452
    %v1454 = vpop.xlane.xlu0 %1453
    %v1455 = vsel %vm589, %v1401, -inf
    %1456 = vmax.xlane.f32.xlu0 %v1455
    %v1457 = vpop.xlane.xlu0 %1456
    %v1458 = vsel %vm589, %v1406, -inf
    %1459 = vmax.xlane.f32.xlu0 %v1458
    %v1460 = vpop.xlane.xlu0 %1459
    %v1461 = vsel %vm589, %v1411, -inf
    %1462 = vmax.xlane.f32.xlu0 %v1461
    %v1463 = vpop.xlane.xlu0 %1462
    %v1464 = vsel %vm589, %v1416, -inf
    %1465 = vmax.xlane.f32.xlu0 %v1464
    %v1466 = vpop.xlane.xlu0 %1465
    %v1467 = vsub.f32 %v1212, %v1421
    %v1468 = vsub.f32 %v1217, %v1424
    %v1469 = vsub.f32 %v1222, %v1427
    %v1470 = vsub.f32 %v1227, %v1430
    %v1471 = vsub.f32 %v1232, %v1433
    %v1472 = vsub.f32 %v1237, %v1436
    %v1473 = vsub.f32 %v1242, %v1439
    %v1474 = vsub.f32 %v1247, %v1442
    %v1475 = vsub.f32 %v1381, %v1445
    %v1476 = vsub.f32 %v1386, %v1448
    %v1477 = vsub.f32 %v1391, %v1451
    %v1478 = vsub.f32 %v1396, %v1454
    %v1479 = vsub.f32 %v1401, %v1457
    %v1480 = vsub.f32 %v1406, %v1460
    %v1481 = vsub.f32 %v1411, %v1463
    %v1482 = vsub.f32 %v1416, %v1466
    %v1483 = vmul.f32 %v1467, 1.442695
    %v1484 = vpow.pop %v1483
    %v1485 = vmul.f32 %v1468, 1.442695
    %v1486 = vpow.pop %v1485
    %v1487 = vmul.f32 %v1469, 1.442695
    %v1488 = vpow.pop %v1487
    %v1489 = vmul.f32 %v1470, 1.442695
    %v1490 = vpow.pop %v1489
    %v1491 = vmul.f32 %v1471, 1.442695
    %v1492 = vpow.pop %v1491
    %v1493 = vmul.f32 %v1472, 1.442695
    %v1494 = vpow.pop %v1493
    %v1495 = vmul.f32 %v1473, 1.442695
    %v1496 = vpow.pop %v1495
    %v1497 = vmul.f32 %v1474, 1.442695
    %v1498 = vpow.pop %v1497
    %v1499 = vmul.f32 %v1475, 1.442695
    %v1500 = vpow.pop %v1499
    %v1501 = vmul.f32 %v1476, 1.442695
    %v1502 = vpow.pop %v1501
    %v1503 = vmul.f32 %v1477, 1.442695
    %v1504 = vpow.pop %v1503
    %v1505 = vmul.f32 %v1478, 1.442695
    %v1506 = vpow.pop %v1505
    %v1507 = vmul.f32 %v1479, 1.442695
    %v1508 = vpow.pop %v1507
    %v1509 = vmul.f32 %v1480, 1.442695
    %v1510 = vpow.pop %v1509
    %v1511 = vmul.f32 %v1481, 1.442695
    %v1512 = vpow.pop %v1511
    %v1513 = vmul.f32 %v1482, 1.442695
    %v1514 = vpow.pop %v1513
    %v1515 = vsel %vm589, %v1484, 0.0
    %1516 = vadd.xlane.f32.xlu0 %v1515
    %v1517 = vpop.xlane.xlu0 %1516
    %v1518 = vsel %vm589, %v1486, 0.0
    %1519 = vadd.xlane.f32.xlu0 %v1518
    %v1520 = vpop.xlane.xlu0 %1519
    %v1521 = vsel %vm589, %v1488, 0.0
    %1522 = vadd.xlane.f32.xlu0 %v1521
    %v1523 = vpop.xlane.xlu0 %1522
    %v1524 = vsel %vm589, %v1490, 0.0
    %1525 = vadd.xlane.f32.xlu0 %v1524
    %v1526 = vpop.xlane.xlu0 %1525
    %v1527 = vsel %vm589, %v1492, 0.0
    %1528 = vadd.xlane.f32.xlu0 %v1527
    %v1529 = vpop.xlane.xlu0 %1528
    %v1530 = vsel %vm589, %v1494, 0.0
    %1531 = vadd.xlane.f32.xlu0 %v1530
    %v1532 = vpop.xlane.xlu0 %1531
    %v1533 = vsel %vm589, %v1496, 0.0
    %1534 = vadd.xlane.f32.xlu0 %v1533
    %v1535 = vpop.xlane.xlu0 %1534
    %v1536 = vsel %vm589, %v1498, 0.0
    %1537 = vadd.xlane.f32.xlu0 %v1536
    %v1538 = vpop.xlane.xlu0 %1537
    %v1539 = vsel %vm589, %v1500, 0.0
    %1540 = vadd.xlane.f32.xlu0 %v1539
    %v1541 = vpop.xlane.xlu0 %1540
    %v1542 = vsel %vm589, %v1502, 0.0
    %1543 = vadd.xlane.f32.xlu0 %v1542
    %v1544 = vpop.xlane.xlu0 %1543
    %v1545 = vsel %vm589, %v1504, 0.0
    %1546 = vadd.xlane.f32.xlu0 %v1545
    %v1547 = vpop.xlane.xlu0 %1546
    %v1548 = vsel %vm589, %v1506, 0.0
    %1549 = vadd.xlane.f32.xlu0 %v1548
    %v1550 = vpop.xlane.xlu0 %1549
    %v1551 = vsel %vm589, %v1508, 0.0
    %1552 = vadd.xlane.f32.xlu0 %v1551
    %v1553 = vpop.xlane.xlu0 %1552
    %v1554 = vsel %vm589, %v1510, 0.0
    %1555 = vadd.xlane.f32.xlu0 %v1554
    %v1556 = vpop.xlane.xlu0 %1555
    %v1557 = vsel %vm589, %v1512, 0.0
    %1558 = vadd.xlane.f32.xlu0 %v1557
    %v1559 = vpop.xlane.xlu0 %1558
    %v1560 = vsel %vm589, %v1514, 0.0
    %1561 = vadd.xlane.f32.xlu0 %v1560
    %v1562 = vpop.xlane.xlu0 %1561
    %v1563 = vrcp.pop %v1517
    %v1564 = vrcp.pop %v1520
    %v1565 = vrcp.pop %v1523
    %v1566 = vrcp.pop %v1526
    %v1567 = vrcp.pop %v1529
    %v1568 = vrcp.pop %v1532
    %v1569 = vrcp.pop %v1535
    %v1570 = vrcp.pop %v1538
    %v1571 = vrcp.pop %v1541
    %v1572 = vrcp.pop %v1544
    %v1573 = vrcp.pop %v1547
    %v1574 = vrcp.pop %v1550
    %v1575 = vrcp.pop %v1553
    %v1576 = vrcp.pop %v1556
    %v1577 = vrcp.pop %v1559
    %v1578 = vrcp.pop %v1562
    %1579 = vrot.lane.b32.xlu0 %v180, 56
    %v1580 = vpop.permute.xlu0 %1579
    %1581 = vrot.lane.b32.xlu0 %v185, 56
    %v1582 = vpop.permute.xlu0 %1581
    %1583 = vrot.lane.b32.xlu0 %v190, 56
    %v1584 = vpop.permute.xlu0 %1583
    %1585 = vrot.lane.b32.xlu0 %v195, 56
    %v1586 = vpop.permute.xlu0 %1585
    %1587 = vrot.lane.b32.xlu0 %v200, 56
    %v1588 = vpop.permute.xlu0 %1587
    %1589 = vrot.lane.b32.xlu0 %v205, 56
    %v1590 = vpop.permute.xlu0 %1589
    %1591 = vrot.lane.b32.xlu0 %v210, 56
    %v1592 = vpop.permute.xlu0 %1591
    %1593 = vrot.lane.b32.xlu0 %v215, 56
    %v1594 = vpop.permute.xlu0 %1593
    %v1604 = vsel %vm589, %v1484, 0
    %v1607 = vsel %vm589, %v1486, 0
    %v1610 = vsel %vm589, %v1488, 0
    %v1613 = vsel %vm589, %v1490, 0
    %v1616 = vsel %vm589, %v1492, 0
    %v1619 = vsel %vm589, %v1494, 0
    %v1622 = vsel %vm589, %v1496, 0
    %v1625 = vsel %vm589, %v1498, 0
    %1627 = vmatprep.subr.mxu0 0.0
    %1628 = vmatpush1.msra.mxu0 0.0
    %1629 = vmatprep.subr.mxu0 0.0
    %1630 = vmatpush1.msra.mxu0 0.0
    %1631 = vmatprep.subr.mxu0 0.0
    %1632 = vmatpush1.msra.mxu0 0.0
    %1633 = vmatprep.subr.mxu0 0.0
    %1634 = vmatpush1.msra.mxu0 0.0
    %1635 = vmatprep.subr.mxu0 0.0
    %1636 = vmatpush1.msra.mxu0 0.0
    %1637 = vmatprep.subr.mxu0 0.0
    %1638 = vmatpush1.msra.mxu0 0.0
    %1639 = vmatprep.subr.mxu0 0.0
    %1640 = vmatpush1.msra.mxu0 0.0
    %1641 = vmatprep.subr.mxu0 0.0
    %1642 = vmatpush1.msra.mxu0 0.0
    %1643 = vmatprep.subr.mxu0 0.0
    %1644 = vmatpush1.msra.mxu0 %v1594
    %1645 = vmatprep.subr.mxu0 0.0
    %1646 = vmatpush1.msra.mxu0 %v1592
    %1647 = vmatprep.subr.mxu0 0.0
    %1648 = vmatpush1.msra.mxu0 %v1590
    %1649 = vmatprep.subr.mxu0 0.0
    %1650 = vmatpush1.msra.mxu0 %v1588
    %1651 = vmatprep.subr.mxu0 0.0
    %1652 = vmatpush1.msra.mxu0 %v1586
    %1653 = vmatprep.subr.mxu0 0.0
    %1654 = vmatpush1.msra.mxu0 %v1584
    %1655 = vmatprep.subr.mxu0 0.0
    %1656 = vmatpush1.msra.mxu0 %v1582
    %1657 = vmatprep.subr.mxu0 0.0
    %1658 = vmatpush1.msra.mxu0 %v1580
    %1659 = vmatprep.subr.mxu0 0.0
    %1660 = vmatpush2.msra.mxu0 0.0
    %1661 = vmatprep.subr.mxu0 0.0
    %1662 = vmatpush2.msra.mxu0 0.0
    %1663 = vmatprep.subr.mxu0 0.0
    %1664 = vmatpush2.msra.mxu0 0.0
    %1665 = vmatprep.subr.mxu0 0.0
    %1666 = vmatpush2.msra.mxu0 0.0
    %1667 = vmatprep.subr.mxu0 0.0
    %1668 = vmatpush2.msra.mxu0 0.0
    %1669 = vmatprep.subr.mxu0 0.0
    %1670 = vmatpush2.msra.mxu0 0.0
    %1671 = vmatprep.subr.mxu0 0.0
    %1672 = vmatpush2.msra.mxu0 0.0
    %1673 = vmatprep.subr.mxu0 0.0
    %1674 = vmatpush2.msra.mxu0 0.0
    %1675 = vmatprep.subr.mxu0 0.0
    %1676 = vmatpush2.msra.mxu0 0.0
    %1677 = vmatprep.subr.mxu0 0.0
    %1678 = vmatpush2.msra.mxu0 0.0
    %1679 = vmatprep.subr.mxu0 0.0
    %1680 = vmatpush2.msra.mxu0 0.0
    %1681 = vmatprep.subr.mxu0 0.0
    %1682 = vmatpush2.msra.mxu0 0.0
    %1683 = vmatprep.subr.mxu0 0.0
    %1684 = vmatpush2.msra.mxu0 0.0
    %1685 = vmatprep.subr.mxu0 0.0
    %1686 = vmatpush2.msra.mxu0 0.0
    %1687 = vmatprep.subr.mxu0 0.0
    %1688 = vmatpush2.msra.mxu0 0.0
    %1689 = vmatprep.subr.mxu0 0.0
    %1690 = vmatpush2.msra.mxu0 0.0
    %1691 = vmatprep.mubr.f32.mxu0 0.0
    %1692 = vmatmul.mubr.f32.gmra.mxu0 %v1604
    %v1693 = vpop.f32.mrf.mxu0
    %v1694 = vadd.f32 0.0, %v1693
    %v1695 = vpop.f32.mrf.mxu0
    %1696 = vmatprep.mubr.f32.mxu0 0.0
    %1697 = vmatmul.mubr.f32.gmra.mxu0 %v1607
    %v1698 = vpop.f32.mrf.mxu0
    %v1699 = vadd.f32 0.0, %v1698
    %v1700 = vpop.f32.mrf.mxu0
    %1701 = vmatprep.mubr.f32.mxu0 0.0
    %1702 = vmatmul.mubr.f32.gmra.mxu0 %v1610
    %v1703 = vpop.f32.mrf.mxu0
    %v1704 = vadd.f32 0.0, %v1703
    %v1705 = vpop.f32.mrf.mxu0
    %1706 = vmatprep.mubr.f32.mxu0 0.0
    %1707 = vmatmul.mubr.f32.gmra.mxu0 %v1613
    %v1708 = vpop.f32.mrf.mxu0
    %v1709 = vadd.f32 0.0, %v1708
    %v1710 = vpop.f32.mrf.mxu0
    %1711 = vmatprep.mubr.f32.mxu0 0.0
    %1712 = vmatmul.mubr.f32.gmra.mxu0 %v1616
    %v1713 = vpop.f32.mrf.mxu0
    %v1714 = vadd.f32 0.0, %v1713
    %v1715 = vpop.f32.mrf.mxu0
    %1716 = vmatprep.mubr.f32.mxu0 0.0
    %1717 = vmatmul.mubr.f32.gmra.mxu0 %v1619
    %v1718 = vpop.f32.mrf.mxu0
    %v1719 = vadd.f32 0.0, %v1718
    %v1720 = vpop.f32.mrf.mxu0
    %1721 = vmatprep.mubr.f32.mxu0 0.0
    %1722 = vmatmul.mubr.f32.gmra.mxu0 %v1622
    %v1723 = vpop.f32.mrf.mxu0
    %v1724 = vadd.f32 0.0, %v1723
    %v1725 = vpop.f32.mrf.mxu0
    %1726 = vmatprep.mubr.f32.mxu0 0.0
    %1727 = vmatmul.mubr.f32.gmra.mxu0 %v1625
    %v1728 = vpop.f32.mrf.mxu0
    %v1729 = vadd.f32 0.0, %v1728
    %v1730 = vpop.f32.mrf.mxu0
    %1731 = vdwg.mxu0
    %1732 = vrot.lane.b32.xlu0 %v220, 56
    %v1733 = vpop.permute.xlu0 %1732
    %1734 = vrot.lane.b32.xlu0 %v225, 56
    %v1735 = vpop.permute.xlu0 %1734
    %1736 = vrot.lane.b32.xlu0 %v230, 56
    %v1737 = vpop.permute.xlu0 %1736
    %1738 = vrot.lane.b32.xlu0 %v235, 56
    %v1739 = vpop.permute.xlu0 %1738
    %1740 = vrot.lane.b32.xlu0 %v240, 56
    %v1741 = vpop.permute.xlu0 %1740
    %1742 = vrot.lane.b32.xlu0 %v245, 56
    %v1743 = vpop.permute.xlu0 %1742
    %1744 = vrot.lane.b32.xlu0 %v250, 56
    %v1745 = vpop.permute.xlu0 %1744
    %1746 = vrot.lane.b32.xlu0 %v255, 56
    %v1747 = vpop.permute.xlu0 %1746
    %v1757 = vsel %vm589, %v1500, 0
    %v1760 = vsel %vm589, %v1502, 0
    %v1763 = vsel %vm589, %v1504, 0
    %v1766 = vsel %vm589, %v1506, 0
    %v1769 = vsel %vm589, %v1508, 0
    %v1772 = vsel %vm589, %v1510, 0
    %v1775 = vsel %vm589, %v1512, 0
    %v1778 = vsel %vm589, %v1514, 0
    %1780 = vmatprep.subr.mxu0 0.0
    %1781 = vmatpush1.msra.mxu0 0.0
    %1782 = vmatprep.subr.mxu0 0.0
    %1783 = vmatpush1.msra.mxu0 0.0
    %1784 = vmatprep.subr.mxu0 0.0
    %1785 = vmatpush1.msra.mxu0 0.0
    %1786 = vmatprep.subr.mxu0 0.0
    %1787 = vmatpush1.msra.mxu0 0.0
    %1788 = vmatprep.subr.mxu0 0.0
    %1789 = vmatpush1.msra.mxu0 0.0
    %1790 = vmatprep.subr.mxu0 0.0
    %1791 = vmatpush1.msra.mxu0 0.0
    %1792 = vmatprep.subr.mxu0 0.0
    %1793 = vmatpush1.msra.mxu0 0.0
    %1794 = vmatprep.subr.mxu0 0.0
    %1795 = vmatpush1.msra.mxu0 0.0
    %1796 = vmatprep.subr.mxu0 0.0
    %1797 = vmatpush1.msra.mxu0 %v1747
    %1798 = vmatprep.subr.mxu0 0.0
    %1799 = vmatpush1.msra.mxu0 %v1745
    %1800 = vmatprep.subr.mxu0 0.0
    %1801 = vmatpush1.msra.mxu0 %v1743
    %1802 = vmatprep.subr.mxu0 0.0
    %1803 = vmatpush1.msra.mxu0 %v1741
    %1804 = vmatprep.subr.mxu0 0.0
    %1805 = vmatpush1.msra.mxu0 %v1739
    %1806 = vmatprep.subr.mxu0 0.0
    %1807 = vmatpush1.msra.mxu0 %v1737
    %1808 = vmatprep.subr.mxu0 0.0
    %1809 = vmatpush1.msra.mxu0 %v1735
    %1810 = vmatprep.subr.mxu0 0.0
    %1811 = vmatpush1.msra.mxu0 %v1733
    %1812 = vmatprep.subr.mxu0 0.0
    %1813 = vmatpush2.msra.mxu0 0.0
    %1814 = vmatprep.subr.mxu0 0.0
    %1815 = vmatpush2.msra.mxu0 0.0
    %1816 = vmatprep.subr.mxu0 0.0
    %1817 = vmatpush2.msra.mxu0 0.0
    %1818 = vmatprep.subr.mxu0 0.0
    %1819 = vmatpush2.msra.mxu0 0.0
    %1820 = vmatprep.subr.mxu0 0.0
    %1821 = vmatpush2.msra.mxu0 0.0
    %1822 = vmatprep.subr.mxu0 0.0
    %1823 = vmatpush2.msra.mxu0 0.0
    %1824 = vmatprep.subr.mxu0 0.0
    %1825 = vmatpush2.msra.mxu0 0.0
    %1826 = vmatprep.subr.mxu0 0.0
    %1827 = vmatpush2.msra.mxu0 0.0
    %1828 = vmatprep.subr.mxu0 0.0
    %1829 = vmatpush2.msra.mxu0 0.0
    %1830 = vmatprep.subr.mxu0 0.0
    %1831 = vmatpush2.msra.mxu0 0.0
    %1832 = vmatprep.subr.mxu0 0.0
    %1833 = vmatpush2.msra.mxu0 0.0
    %1834 = vmatprep.subr.mxu0 0.0
    %1835 = vmatpush2.msra.mxu0 0.0
    %1836 = vmatprep.subr.mxu0 0.0
    %1837 = vmatpush2.msra.mxu0 0.0
    %1838 = vmatprep.subr.mxu0 0.0
    %1839 = vmatpush2.msra.mxu0 0.0
    %1840 = vmatprep.subr.mxu0 0.0
    %1841 = vmatpush2.msra.mxu0 0.0
    %1842 = vmatprep.subr.mxu0 0.0
    %1843 = vmatpush2.msra.mxu0 0.0
    %1844 = vmatprep.mubr.f32.mxu0 0.0
    %1845 = vmatmul.mubr.f32.gmra.mxu0 %v1757
    %v1846 = vpop.f32.mrf.mxu0
    %v1847 = vadd.f32 0.0, %v1846
    %v1848 = vpop.f32.mrf.mxu0
    %1849 = vmatprep.mubr.f32.mxu0 0.0
    %1850 = vmatmul.mubr.f32.gmra.mxu0 %v1760
    %v1851 = vpop.f32.mrf.mxu0
    %v1852 = vadd.f32 0.0, %v1851
    %v1853 = vpop.f32.mrf.mxu0
    %1854 = vmatprep.mubr.f32.mxu0 0.0
    %1855 = vmatmul.mubr.f32.gmra.mxu0 %v1763
    %v1856 = vpop.f32.mrf.mxu0
    %v1857 = vadd.f32 0.0, %v1856
    %v1858 = vpop.f32.mrf.mxu0
    %1859 = vmatprep.mubr.f32.mxu0 0.0
    %1860 = vmatmul.mubr.f32.gmra.mxu0 %v1766
    %v1861 = vpop.f32.mrf.mxu0
    %v1862 = vadd.f32 0.0, %v1861
    %v1863 = vpop.f32.mrf.mxu0
    %1864 = vmatprep.mubr.f32.mxu0 0.0
    %1865 = vmatmul.mubr.f32.gmra.mxu0 %v1769
    %v1866 = vpop.f32.mrf.mxu0
    %v1867 = vadd.f32 0.0, %v1866
    %v1868 = vpop.f32.mrf.mxu0
    %1869 = vmatprep.mubr.f32.mxu0 0.0
    %1870 = vmatmul.mubr.f32.gmra.mxu0 %v1772
    %v1871 = vpop.f32.mrf.mxu0
    %v1872 = vadd.f32 0.0, %v1871
    %v1873 = vpop.f32.mrf.mxu0
    %1874 = vmatprep.mubr.f32.mxu0 0.0
    %1875 = vmatmul.mubr.f32.gmra.mxu0 %v1775
    %v1876 = vpop.f32.mrf.mxu0
    %v1877 = vadd.f32 0.0, %v1876
    %v1878 = vpop.f32.mrf.mxu0
    %1879 = vmatprep.mubr.f32.mxu0 0.0
    %1880 = vmatmul.mubr.f32.gmra.mxu0 %v1778
    %v1881 = vpop.f32.mrf.mxu0
    %v1882 = vadd.f32 0.0, %v1881
    %v1883 = vpop.f32.mrf.mxu0
    %1884 = vdwg.mxu0
    %v1885 = vmul.f32 %v1694, %v1563
    %v1886 = vmul.f32 %v1699, %v1564
    %v1887 = vmul.f32 %v1704, %v1565
    %v1888 = vmul.f32 %v1709, %v1566
    %v1889 = vmul.f32 %v1714, %v1567
    %v1890 = vmul.f32 %v1719, %v1568
    %v1891 = vmul.f32 %v1724, %v1569
    %v1892 = vmul.f32 %v1729, %v1570
    %v1893 = vmul.f32 %v1847, %v1571
    %v1894 = vmul.f32 %v1852, %v1572
    %v1895 = vmul.f32 %v1857, %v1573
    %v1896 = vmul.f32 %v1862, %v1574
    %v1897 = vmul.f32 %v1867, %v1575
    %v1898 = vmul.f32 %v1872, %v1576
    %v1899 = vmul.f32 %v1877, %v1577
    %v1900 = vmul.f32 %v1882, %v1578
    %s1901 = scalar_lea.vmem [#allocation2], 128
    %v1902 = vld [vmem:[%s1901] sm:$0xff]
    %v1903 = vld [vmem:[%s1901 + $0x8] sm:$0xff]
    %v1904 = vld [vmem:[%s1901 + $0x10] sm:$0xff]
    %v1905 = vld [vmem:[%s1901 + $0x18] sm:$0xff]
    %v1906 = vld [vmem:[%s1901 + $0x20] sm:$0xff]
    %v1907 = vld [vmem:[%s1901 + $0x28] sm:$0xff]
    %v1908 = vld [vmem:[%s1901 + $0x30] sm:$0xff]
    %v1909 = vld [vmem:[%s1901 + $0x38] sm:$0xff]
    %1910 = vrot.lane.b32.xlu0 %v180, 112
    %v1911 = vpop.permute.xlu0 %1910
    %1912 = vrot.lane.b32.xlu0 %v185, 112
    %v1913 = vpop.permute.xlu0 %1912
    %1914 = vrot.lane.b32.xlu0 %v190, 112
    %v1915 = vpop.permute.xlu0 %1914
    %1916 = vrot.lane.b32.xlu0 %v195, 112
    %v1917 = vpop.permute.xlu0 %1916
    %1918 = vrot.lane.b32.xlu0 %v200, 112
    %v1919 = vpop.permute.xlu0 %1918
    %1920 = vrot.lane.b32.xlu0 %v205, 112
    %v1921 = vpop.permute.xlu0 %1920
    %1922 = vrot.lane.b32.xlu0 %v210, 112
    %v1923 = vpop.permute.xlu0 %1922
    %1924 = vrot.lane.b32.xlu0 %v215, 112
    %v1925 = vpop.permute.xlu0 %1924
    %1926 = vrot.lane.b32.xlu0 %v180, 80
    %v1927 = vpop.permute.xlu0 %1926
    %1928 = vrot.lane.b32.xlu0 %v185, 80
    %v1929 = vpop.permute.xlu0 %1928
    %1930 = vrot.lane.b32.xlu0 %v190, 80
    %v1931 = vpop.permute.xlu0 %1930
    %1932 = vrot.lane.b32.xlu0 %v195, 80
    %v1933 = vpop.permute.xlu0 %1932
    %1934 = vrot.lane.b32.xlu0 %v200, 80
    %v1935 = vpop.permute.xlu0 %1934
    %1936 = vrot.lane.b32.xlu0 %v205, 80
    %v1937 = vpop.permute.xlu0 %1936
    %1938 = vrot.lane.b32.xlu0 %v210, 80
    %v1939 = vpop.permute.xlu0 %1938
    %1940 = vrot.lane.b32.xlu0 %v215, 80
    %v1941 = vpop.permute.xlu0 %1940
    %v1942 = vsel %vm290, %v1911, 0
    %v1944 = vsel %vm290, %v1913, 0
    %v1946 = vsel %vm290, %v1915, 0
    %v1948 = vsel %vm290, %v1917, 0
    %v1950 = vsel %vm290, %v1919, 0
    %v1952 = vsel %vm290, %v1921, 0
    %v1954 = vsel %vm290, %v1923, 0
    %v1956 = vsel %vm290, %v1925, 0
    %v1958 = vsel %vm290, %v1927, 0
    %v1960 = vsel %vm290, %v1929, 0
    %v1962 = vsel %vm290, %v1931, 0
    %v1964 = vsel %vm290, %v1933, 0
    %v1966 = vsel %vm290, %v1935, 0
    %v1968 = vsel %vm290, %v1937, 0
    %v1970 = vsel %vm290, %v1939, 0
    %v1972 = vsel %vm290, %v1941, 0
    %1974 = vmatprep.subr.mxu0 0.0
    %1975 = vmatpush1.xpose.msra.mxu0 0.0
    %1976 = vmatprep.subr.mxu0 0.0
    %1977 = vmatpush1.xpose.msra.mxu0 0.0
    %1978 = vmatprep.subr.mxu0 0.0
    %1979 = vmatpush1.xpose.msra.mxu0 0.0
    %1980 = vmatprep.subr.mxu0 0.0
    %1981 = vmatpush1.xpose.msra.mxu0 0.0
    %1982 = vmatprep.subr.mxu0 0.0
    %1983 = vmatpush1.xpose.msra.mxu0 0.0
    %1984 = vmatprep.subr.mxu0 0.0
    %1985 = vmatpush1.xpose.msra.mxu0 0.0
    %1986 = vmatprep.subr.mxu0 0.0
    %1987 = vmatpush1.xpose.msra.mxu0 0.0
    %1988 = vmatprep.subr.mxu0 0.0
    %1989 = vmatpush1.xpose.msra.mxu0 0.0
    %1990 = vmatprep.subr.mxu0 0.0
    %1991 = vmatpush1.xpose.msra.mxu0 %v1972
    %1992 = vmatprep.subr.mxu0 0.0
    %1993 = vmatpush1.xpose.msra.mxu0 %v1970
    %1994 = vmatprep.subr.mxu0 0.0
    %1995 = vmatpush1.xpose.msra.mxu0 %v1968
    %1996 = vmatprep.subr.mxu0 0.0
    %1997 = vmatpush1.xpose.msra.mxu0 %v1966
    %1998 = vmatprep.subr.mxu0 0.0
    %1999 = vmatpush1.xpose.msra.mxu0 %v1964
    %2000 = vmatprep.subr.mxu0 0.0
    %2001 = vmatpush1.xpose.msra.mxu0 %v1962
    %2002 = vmatprep.subr.mxu0 0.0
    %2003 = vmatpush1.xpose.msra.mxu0 %v1960
    %2004 = vmatprep.subr.mxu0 0.0
    %2005 = vmatpush1.xpose.msra.mxu0 %v1958
    %2006 = vmatprep.subr.mxu0 0.0
    %2007 = vmatpush2.xpose.msra.mxu0 0.0
    %2008 = vmatprep.subr.mxu0 0.0
    %2009 = vmatpush2.xpose.msra.mxu0 0.0
    %2010 = vmatprep.subr.mxu0 0.0
    %2011 = vmatpush2.xpose.msra.mxu0 0.0
    %2012 = vmatprep.subr.mxu0 0.0
    %2013 = vmatpush2.xpose.msra.mxu0 0.0
    %2014 = vmatprep.subr.mxu0 0.0
    %2015 = vmatpush2.xpose.msra.mxu0 0.0
    %2016 = vmatprep.subr.mxu0 0.0
    %2017 = vmatpush2.xpose.msra.mxu0 0.0
    %2018 = vmatprep.subr.mxu0 0.0
    %2019 = vmatpush2.xpose.msra.mxu0 0.0
    %2020 = vmatprep.subr.mxu0 0.0
    %2021 = vmatpush2.xpose.msra.mxu0 0.0
    %2022 = vmatprep.subr.mxu0 0.0
    %2023 = vmatpush2.xpose.msra.mxu0 0.0
    %2024 = vmatprep.subr.mxu0 0.0
    %2025 = vmatpush2.xpose.msra.mxu0 0.0
    %2026 = vmatprep.subr.mxu0 0.0
    %2027 = vmatpush2.xpose.msra.mxu0 0.0
    %2028 = vmatprep.subr.mxu0 0.0
    %2029 = vmatpush2.xpose.msra.mxu0 0.0
    %2030 = vmatprep.subr.mxu0 0.0
    %2031 = vmatpush2.xpose.msra.mxu0 0.0
    %2032 = vmatprep.subr.mxu0 0.0
    %2033 = vmatpush2.xpose.msra.mxu0 0.0
    %2034 = vmatprep.subr.mxu0 0.0
    %2035 = vmatpush2.xpose.msra.mxu0 0.0
    %2036 = vmatprep.subr.mxu0 0.0
    %2037 = vmatpush2.xpose.msra.mxu0 0.0
    %2038 = vmatprep.mubr.f32.mxu0 0.0
    %2039 = vmatmul.mubr.f32.gmra.mxu0 %v1942
    %v2040 = vpop.f32.mrf.mxu0
    %v2041 = vadd.f32 %v1902, %v2040
    %v2042 = vpop.f32.mrf.mxu0
    %2043 = vmatprep.mubr.f32.mxu0 0.0
    %2044 = vmatmul.mubr.f32.gmra.mxu0 %v1944
    %v2045 = vpop.f32.mrf.mxu0
    %v2046 = vadd.f32 %v1903, %v2045
    %v2047 = vpop.f32.mrf.mxu0
    %2048 = vmatprep.mubr.f32.mxu0 0.0
    %2049 = vmatmul.mubr.f32.gmra.mxu0 %v1946
    %v2050 = vpop.f32.mrf.mxu0
    %v2051 = vadd.f32 %v1904, %v2050
    %v2052 = vpop.f32.mrf.mxu0
    %2053 = vmatprep.mubr.f32.mxu0 0.0
    %2054 = vmatmul.mubr.f32.gmra.mxu0 %v1948
    %v2055 = vpop.f32.mrf.mxu0
    %v2056 = vadd.f32 %v1905, %v2055
    %v2057 = vpop.f32.mrf.mxu0
    %2058 = vmatprep.mubr.f32.mxu0 0.0
    %2059 = vmatmul.mubr.f32.gmra.mxu0 %v1950
    %v2060 = vpop.f32.mrf.mxu0
    %v2061 = vadd.f32 %v1906, %v2060
    %v2062 = vpop.f32.mrf.mxu0
    %2063 = vmatprep.mubr.f32.mxu0 0.0
    %2064 = vmatmul.mubr.f32.gmra.mxu0 %v1952
    %v2065 = vpop.f32.mrf.mxu0
    %v2066 = vadd.f32 %v1907, %v2065
    %v2067 = vpop.f32.mrf.mxu0
    %2068 = vmatprep.mubr.f32.mxu0 0.0
    %2069 = vmatmul.mubr.f32.gmra.mxu0 %v1954
    %v2070 = vpop.f32.mrf.mxu0
    %v2071 = vadd.f32 %v1908, %v2070
    %v2072 = vpop.f32.mrf.mxu0
    %2073 = vmatprep.mubr.f32.mxu0 0.0
    %2074 = vmatmul.mubr.f32.gmra.mxu0 %v1956
    %v2075 = vpop.f32.mrf.mxu0
    %v2076 = vadd.f32 %v1909, %v2075
    %v2077 = vpop.f32.mrf.mxu0
    %2078 = vdwg.mxu0
    %2079 = vrot.lane.b32.xlu0 %v220, 112
    %v2080 = vpop.permute.xlu0 %2079
    %2081 = vrot.lane.b32.xlu0 %v225, 112
    %v2082 = vpop.permute.xlu0 %2081
    %2083 = vrot.lane.b32.xlu0 %v230, 112
    %v2084 = vpop.permute.xlu0 %2083
    %2085 = vrot.lane.b32.xlu0 %v235, 112
    %v2086 = vpop.permute.xlu0 %2085
    %2087 = vrot.lane.b32.xlu0 %v240, 112
    %v2088 = vpop.permute.xlu0 %2087
    %2089 = vrot.lane.b32.xlu0 %v245, 112
    %v2090 = vpop.permute.xlu0 %2089
    %2091 = vrot.lane.b32.xlu0 %v250, 112
    %v2092 = vpop.permute.xlu0 %2091
    %2093 = vrot.lane.b32.xlu0 %v255, 112
    %v2094 = vpop.permute.xlu0 %2093
    %2095 = vrot.lane.b32.xlu0 %v220, 80
    %v2096 = vpop.permute.xlu0 %2095
    %2097 = vrot.lane.b32.xlu0 %v225, 80
    %v2098 = vpop.permute.xlu0 %2097
    %2099 = vrot.lane.b32.xlu0 %v230, 80
    %v2100 = vpop.permute.xlu0 %2099
    %2101 = vrot.lane.b32.xlu0 %v235, 80
    %v2102 = vpop.permute.xlu0 %2101
    %2103 = vrot.lane.b32.xlu0 %v240, 80
    %v2104 = vpop.permute.xlu0 %2103
    %2105 = vrot.lane.b32.xlu0 %v245, 80
    %v2106 = vpop.permute.xlu0 %2105
    %2107 = vrot.lane.b32.xlu0 %v250, 80
    %v2108 = vpop.permute.xlu0 %2107
    %2109 = vrot.lane.b32.xlu0 %v255, 80
    %v2110 = vpop.permute.xlu0 %2109
    %v2111 = vsel %vm290, %v2080, 0
    %v2113 = vsel %vm290, %v2082, 0
    %v2115 = vsel %vm290, %v2084, 0
    %v2117 = vsel %vm290, %v2086, 0
    %v2119 = vsel %vm290, %v2088, 0
    %v2121 = vsel %vm290, %v2090, 0
    %v2123 = vsel %vm290, %v2092, 0
    %v2125 = vsel %vm290, %v2094, 0
    %v2127 = vsel %vm290, %v2096, 0
    %v2129 = vsel %vm290, %v2098, 0
    %v2131 = vsel %vm290, %v2100, 0
    %v2133 = vsel %vm290, %v2102, 0
    %v2135 = vsel %vm290, %v2104, 0
    %v2137 = vsel %vm290, %v2106, 0
    %v2139 = vsel %vm290, %v2108, 0
    %v2141 = vsel %vm290, %v2110, 0
    %2143 = vmatprep.subr.mxu0 0.0
    %2144 = vmatpush1.xpose.msra.mxu0 0.0
    %2145 = vmatprep.subr.mxu0 0.0
    %2146 = vmatpush1.xpose.msra.mxu0 0.0
    %2147 = vmatprep.subr.mxu0 0.0
    %2148 = vmatpush1.xpose.msra.mxu0 0.0
    %2149 = vmatprep.subr.mxu0 0.0
    %2150 = vmatpush1.xpose.msra.mxu0 0.0
    %2151 = vmatprep.subr.mxu0 0.0
    %2152 = vmatpush1.xpose.msra.mxu0 0.0
    %2153 = vmatprep.subr.mxu0 0.0
    %2154 = vmatpush1.xpose.msra.mxu0 0.0
    %2155 = vmatprep.subr.mxu0 0.0
    %2156 = vmatpush1.xpose.msra.mxu0 0.0
    %2157 = vmatprep.subr.mxu0 0.0
    %2158 = vmatpush1.xpose.msra.mxu0 0.0
    %2159 = vmatprep.subr.mxu0 0.0
    %2160 = vmatpush1.xpose.msra.mxu0 %v2141
    %2161 = vmatprep.subr.mxu0 0.0
    %2162 = vmatpush1.xpose.msra.mxu0 %v2139
    %2163 = vmatprep.subr.mxu0 0.0
    %2164 = vmatpush1.xpose.msra.mxu0 %v2137
    %2165 = vmatprep.subr.mxu0 0.0
    %2166 = vmatpush1.xpose.msra.mxu0 %v2135
    %2167 = vmatprep.subr.mxu0 0.0
    %2168 = vmatpush1.xpose.msra.mxu0 %v2133
    %2169 = vmatprep.subr.mxu0 0.0
    %2170 = vmatpush1.xpose.msra.mxu0 %v2131
    %2171 = vmatprep.subr.mxu0 0.0
    %2172 = vmatpush1.xpose.msra.mxu0 %v2129
    %2173 = vmatprep.subr.mxu0 0.0
    %2174 = vmatpush1.xpose.msra.mxu0 %v2127
    %2175 = vmatprep.subr.mxu0 0.0
    %2176 = vmatpush2.xpose.msra.mxu0 0.0
    %2177 = vmatprep.subr.mxu0 0.0
    %2178 = vmatpush2.xpose.msra.mxu0 0.0
    %2179 = vmatprep.subr.mxu0 0.0
    %2180 = vmatpush2.xpose.msra.mxu0 0.0
    %2181 = vmatprep.subr.mxu0 0.0
    %2182 = vmatpush2.xpose.msra.mxu0 0.0
    %2183 = vmatprep.subr.mxu0 0.0
    %2184 = vmatpush2.xpose.msra.mxu0 0.0
    %2185 = vmatprep.subr.mxu0 0.0
    %2186 = vmatpush2.xpose.msra.mxu0 0.0
    %2187 = vmatprep.subr.mxu0 0.0
    %2188 = vmatpush2.xpose.msra.mxu0 0.0
    %2189 = vmatprep.subr.mxu0 0.0
    %2190 = vmatpush2.xpose.msra.mxu0 0.0
    %2191 = vmatprep.subr.mxu0 0.0
    %2192 = vmatpush2.xpose.msra.mxu0 0.0
    %2193 = vmatprep.subr.mxu0 0.0
    %2194 = vmatpush2.xpose.msra.mxu0 0.0
    %2195 = vmatprep.subr.mxu0 0.0
    %2196 = vmatpush2.xpose.msra.mxu0 0.0
    %2197 = vmatprep.subr.mxu0 0.0
    %2198 = vmatpush2.xpose.msra.mxu0 0.0
    %2199 = vmatprep.subr.mxu0 0.0
    %2200 = vmatpush2.xpose.msra.mxu0 0.0
    %2201 = vmatprep.subr.mxu0 0.0
    %2202 = vmatpush2.xpose.msra.mxu0 0.0
    %2203 = vmatprep.subr.mxu0 0.0
    %2204 = vmatpush2.xpose.msra.mxu0 0.0
    %2205 = vmatprep.subr.mxu0 0.0
    %2206 = vmatpush2.xpose.msra.mxu0 0.0
    %2207 = vmatprep.mubr.f32.mxu0 0.0
    %2208 = vmatmul.mubr.f32.gmra.mxu0 %v2111
    %v2209 = vpop.f32.mrf.mxu0
    %v2210 = vadd.f32 %v1902, %v2209
    %v2211 = vpop.f32.mrf.mxu0
    %2212 = vmatprep.mubr.f32.mxu0 0.0
    %2213 = vmatmul.mubr.f32.gmra.mxu0 %v2113
    %v2214 = vpop.f32.mrf.mxu0
    %v2215 = vadd.f32 %v1903, %v2214
    %v2216 = vpop.f32.mrf.mxu0
    %2217 = vmatprep.mubr.f32.mxu0 0.0
    %2218 = vmatmul.mubr.f32.gmra.mxu0 %v2115
    %v2219 = vpop.f32.mrf.mxu0
    %v2220 = vadd.f32 %v1904, %v2219
    %v2221 = vpop.f32.mrf.mxu0
    %2222 = vmatprep.mubr.f32.mxu0 0.0
    %2223 = vmatmul.mubr.f32.gmra.mxu0 %v2117
    %v2224 = vpop.f32.mrf.mxu0
    %v2225 = vadd.f32 %v1905, %v2224
    %v2226 = vpop.f32.mrf.mxu0
    %2227 = vmatprep.mubr.f32.mxu0 0.0
    %2228 = vmatmul.mubr.f32.gmra.mxu0 %v2119
    %v2229 = vpop.f32.mrf.mxu0
    %v2230 = vadd.f32 %v1906, %v2229
    %v2231 = vpop.f32.mrf.mxu0
    %2232 = vmatprep.mubr.f32.mxu0 0.0
    %2233 = vmatmul.mubr.f32.gmra.mxu0 %v2121
    %v2234 = vpop.f32.mrf.mxu0
    %v2235 = vadd.f32 %v1907, %v2234
    %v2236 = vpop.f32.mrf.mxu0
    %2237 = vmatprep.mubr.f32.mxu0 0.0
    %2238 = vmatmul.mubr.f32.gmra.mxu0 %v2123
    %v2239 = vpop.f32.mrf.mxu0
    %v2240 = vadd.f32 %v1908, %v2239
    %v2241 = vpop.f32.mrf.mxu0
    %2242 = vmatprep.mubr.f32.mxu0 0.0
    %2243 = vmatmul.mubr.f32.gmra.mxu0 %v2125
    %v2244 = vpop.f32.mrf.mxu0
    %v2245 = vadd.f32 %v1909, %v2244
    %v2246 = vpop.f32.mrf.mxu0
    %2247 = vdwg.mxu0
    %v2248 = vsel %vm589, %v2041, -inf
    %2249 = vmax.xlane.f32.xlu0 %v2248
    %v2250 = vpop.xlane.xlu0 %2249
    %v2251 = vsel %vm589, %v2046, -inf
    %2252 = vmax.xlane.f32.xlu0 %v2251
    %v2253 = vpop.xlane.xlu0 %2252
    %v2254 = vsel %vm589, %v2051, -inf
    %2255 = vmax.xlane.f32.xlu0 %v2254
    %v2256 = vpop.xlane.xlu0 %2255
    %v2257 = vsel %vm589, %v2056, -inf
    %2258 = vmax.xlane.f32.xlu0 %v2257
    %v2259 = vpop.xlane.xlu0 %2258
    %v2260 = vsel %vm589, %v2061, -inf
    %2261 = vmax.xlane.f32.xlu0 %v2260
    %v2262 = vpop.xlane.xlu0 %2261
    %v2263 = vsel %vm589, %v2066, -inf
    %2264 = vmax.xlane.f32.xlu0 %v2263
    %v2265 = vpop.xlane.xlu0 %2264
    %v2266 = vsel %vm589, %v2071, -inf
    %2267 = vmax.xlane.f32.xlu0 %v2266
    %v2268 = vpop.xlane.xlu0 %2267
    %v2269 = vsel %vm589, %v2076, -inf
    %2270 = vmax.xlane.f32.xlu0 %v2269
    %v2271 = vpop.xlane.xlu0 %2270
    %v2272 = vsel %vm589, %v2210, -inf
    %2273 = vmax.xlane.f32.xlu0 %v2272
    %v2274 = vpop.xlane.xlu0 %2273
    %v2275 = vsel %vm589, %v2215, -inf
    %2276 = vmax.xlane.f32.xlu0 %v2275
    %v2277 = vpop.xlane.xlu0 %2276
    %v2278 = vsel %vm589, %v2220, -inf
    %2279 = vmax.xlane.f32.xlu0 %v2278
    %v2280 = vpop.xlane.xlu0 %2279
    %v2281 = vsel %vm589, %v2225, -inf
    %2282 = vmax.xlane.f32.xlu0 %v2281
    %v2283 = vpop.xlane.xlu0 %2282
    %v2284 = vsel %vm589, %v2230, -inf
    %2285 = vmax.xlane.f32.xlu0 %v2284
    %v2286 = vpop.xlane.xlu0 %2285
    %v2287 = vsel %vm589, %v2235, -inf
    %2288 = vmax.xlane.f32.xlu0 %v2287
    %v2289 = vpop.xlane.xlu0 %2288
    %v2290 = vsel %vm589, %v2240, -inf
    %2291 = vmax.xlane.f32.xlu0 %v2290
    %v2292 = vpop.xlane.xlu0 %2291
    %v2293 = vsel %vm589, %v2245, -inf
    %2294 = vmax.xlane.f32.xlu0 %v2293
    %v2295 = vpop.xlane.xlu0 %2294
    %v2296 = vsub.f32 %v2041, %v2250
    %v2297 = vsub.f32 %v2046, %v2253
    %v2298 = vsub.f32 %v2051, %v2256
    %v2299 = vsub.f32 %v2056, %v2259
    %v2300 = vsub.f32 %v2061, %v2262
    %v2301 = vsub.f32 %v2066, %v2265
    %v2302 = vsub.f32 %v2071, %v2268
    %v2303 = vsub.f32 %v2076, %v2271
    %v2304 = vsub.f32 %v2210, %v2274
    %v2305 = vsub.f32 %v2215, %v2277
    %v2306 = vsub.f32 %v2220, %v2280
    %v2307 = vsub.f32 %v2225, %v2283
    %v2308 = vsub.f32 %v2230, %v2286
    %v2309 = vsub.f32 %v2235, %v2289
    %v2310 = vsub.f32 %v2240, %v2292
    %v2311 = vsub.f32 %v2245, %v2295
    %v2312 = vmul.f32 %v2296, 1.442695
    %v2313 = vpow.pop %v2312
    %v2314 = vmul.f32 %v2297, 1.442695
    %v2315 = vpow.pop %v2314
    %v2316 = vmul.f32 %v2298, 1.442695
    %v2317 = vpow.pop %v2316
    %v2318 = vmul.f32 %v2299, 1.442695
    %v2319 = vpow.pop %v2318
    %v2320 = vmul.f32 %v2300, 1.442695
    %v2321 = vpow.pop %v2320
    %v2322 = vmul.f32 %v2301, 1.442695
    %v2323 = vpow.pop %v2322
    %v2324 = vmul.f32 %v2302, 1.442695
    %v2325 = vpow.pop %v2324
    %v2326 = vmul.f32 %v2303, 1.442695
    %v2327 = vpow.pop %v2326
    %v2328 = vmul.f32 %v2304, 1.442695
    %v2329 = vpow.pop %v2328
    %v2330 = vmul.f32 %v2305, 1.442695
    %v2331 = vpow.pop %v2330
    %v2332 = vmul.f32 %v2306, 1.442695
    %v2333 = vpow.pop %v2332
    %v2334 = vmul.f32 %v2307, 1.442695
    %v2335 = vpow.pop %v2334
    %v2336 = vmul.f32 %v2308, 1.442695
    %v2337 = vpow.pop %v2336
    %v2338 = vmul.f32 %v2309, 1.442695
    %v2339 = vpow.pop %v2338
    %v2340 = vmul.f32 %v2310, 1.442695
    %v2341 = vpow.pop %v2340
    %v2342 = vmul.f32 %v2311, 1.442695
    %v2343 = vpow.pop %v2342
    %v2344 = vsel %vm589, %v2313, 0.0
    %2345 = vadd.xlane.f32.xlu0 %v2344
    %v2346 = vpop.xlane.xlu0 %2345
    %v2347 = vsel %vm589, %v2315, 0.0
    %2348 = vadd.xlane.f32.xlu0 %v2347
    %v2349 = vpop.xlane.xlu0 %2348
    %v2350 = vsel %vm589, %v2317, 0.0
    %2351 = vadd.xlane.f32.xlu0 %v2350
    %v2352 = vpop.xlane.xlu0 %2351
    %v2353 = vsel %vm589, %v2319, 0.0
    %2354 = vadd.xlane.f32.xlu0 %v2353
    %v2355 = vpop.xlane.xlu0 %2354
    %v2356 = vsel %vm589, %v2321, 0.0
    %2357 = vadd.xlane.f32.xlu0 %v2356
    %v2358 = vpop.xlane.xlu0 %2357
    %v2359 = vsel %vm589, %v2323, 0.0
    %2360 = vadd.xlane.f32.xlu0 %v2359
    %v2361 = vpop.xlane.xlu0 %2360
    %v2362 = vsel %vm589, %v2325, 0.0
    %2363 = vadd.xlane.f32.xlu0 %v2362
    %v2364 = vpop.xlane.xlu0 %2363
    %v2365 = vsel %vm589, %v2327, 0.0
    %2366 = vadd.xlane.f32.xlu0 %v2365
    %v2367 = vpop.xlane.xlu0 %2366
    %v2368 = vsel %vm589, %v2329, 0.0
    %2369 = vadd.xlane.f32.xlu0 %v2368
    %v2370 = vpop.xlane.xlu0 %2369
    %v2371 = vsel %vm589, %v2331, 0.0
    %2372 = vadd.xlane.f32.xlu0 %v2371
    %v2373 = vpop.xlane.xlu0 %2372
    %v2374 = vsel %vm589, %v2333, 0.0
    %2375 = vadd.xlane.f32.xlu0 %v2374
    %v2376 = vpop.xlane.xlu0 %2375
    %v2377 = vsel %vm589, %v2335, 0.0
    %2378 = vadd.xlane.f32.xlu0 %v2377
    %v2379 = vpop.xlane.xlu0 %2378
    %v2380 = vsel %vm589, %v2337, 0.0
    %2381 = vadd.xlane.f32.xlu0 %v2380
    %v2382 = vpop.xlane.xlu0 %2381
    %v2383 = vsel %vm589, %v2339, 0.0
    %2384 = vadd.xlane.f32.xlu0 %v2383
    %v2385 = vpop.xlane.xlu0 %2384
    %v2386 = vsel %vm589, %v2341, 0.0
    %2387 = vadd.xlane.f32.xlu0 %v2386
    %v2388 = vpop.xlane.xlu0 %2387
    %v2389 = vsel %vm589, %v2343, 0.0
    %2390 = vadd.xlane.f32.xlu0 %v2389
    %v2391 = vpop.xlane.xlu0 %2390
    %v2392 = vrcp.pop %v2346
    %v2393 = vrcp.pop %v2349
    %v2394 = vrcp.pop %v2352
    %v2395 = vrcp.pop %v2355
    %v2396 = vrcp.pop %v2358
    %v2397 = vrcp.pop %v2361
    %v2398 = vrcp.pop %v2364
    %v2399 = vrcp.pop %v2367
    %v2400 = vrcp.pop %v2370
    %v2401 = vrcp.pop %v2373
    %v2402 = vrcp.pop %v2376
    %v2403 = vrcp.pop %v2379
    %v2404 = vrcp.pop %v2382
    %v2405 = vrcp.pop %v2385
    %v2406 = vrcp.pop %v2388
    %v2407 = vrcp.pop %v2391
    %2408 = vrot.lane.b32.xlu0 %v180, 48
    %v2409 = vpop.permute.xlu0 %2408
    %2410 = vrot.lane.b32.xlu0 %v185, 48
    %v2411 = vpop.permute.xlu0 %2410
    %2412 = vrot.lane.b32.xlu0 %v190, 48
    %v2413 = vpop.permute.xlu0 %2412
    %2414 = vrot.lane.b32.xlu0 %v195, 48
    %v2415 = vpop.permute.xlu0 %2414
    %2416 = vrot.lane.b32.xlu0 %v200, 48
    %v2417 = vpop.permute.xlu0 %2416
    %2418 = vrot.lane.b32.xlu0 %v205, 48
    %v2419 = vpop.permute.xlu0 %2418
    %2420 = vrot.lane.b32.xlu0 %v210, 48
    %v2421 = vpop.permute.xlu0 %2420
    %2422 = vrot.lane.b32.xlu0 %v215, 48
    %v2423 = vpop.permute.xlu0 %2422
    %v2433 = vsel %vm589, %v2313, 0
    %v2436 = vsel %vm589, %v2315, 0
    %v2439 = vsel %vm589, %v2317, 0
    %v2442 = vsel %vm589, %v2319, 0
    %v2445 = vsel %vm589, %v2321, 0
    %v2448 = vsel %vm589, %v2323, 0
    %v2451 = vsel %vm589, %v2325, 0
    %v2454 = vsel %vm589, %v2327, 0
    %2456 = vmatprep.subr.mxu0 0.0
    %2457 = vmatpush1.msra.mxu0 0.0
    %2458 = vmatprep.subr.mxu0 0.0
    %2459 = vmatpush1.msra.mxu0 0.0
    %2460 = vmatprep.subr.mxu0 0.0
    %2461 = vmatpush1.msra.mxu0 0.0
    %2462 = vmatprep.subr.mxu0 0.0
    %2463 = vmatpush1.msra.mxu0 0.0
    %2464 = vmatprep.subr.mxu0 0.0
    %2465 = vmatpush1.msra.mxu0 0.0
    %2466 = vmatprep.subr.mxu0 0.0
    %2467 = vmatpush1.msra.mxu0 0.0
    %2468 = vmatprep.subr.mxu0 0.0
    %2469 = vmatpush1.msra.mxu0 0.0
    %2470 = vmatprep.subr.mxu0 0.0
    %2471 = vmatpush1.msra.mxu0 0.0
    %2472 = vmatprep.subr.mxu0 0.0
    %2473 = vmatpush1.msra.mxu0 %v2423
    %2474 = vmatprep.subr.mxu0 0.0
    %2475 = vmatpush1.msra.mxu0 %v2421
    %2476 = vmatprep.subr.mxu0 0.0
    %2477 = vmatpush1.msra.mxu0 %v2419
    %2478 = vmatprep.subr.mxu0 0.0
    %2479 = vmatpush1.msra.mxu0 %v2417
    %2480 = vmatprep.subr.mxu0 0.0
    %2481 = vmatpush1.msra.mxu0 %v2415
    %2482 = vmatprep.subr.mxu0 0.0
    %2483 = vmatpush1.msra.mxu0 %v2413
    %2484 = vmatprep.subr.mxu0 0.0
    %2485 = vmatpush1.msra.mxu0 %v2411
    %2486 = vmatprep.subr.mxu0 0.0
    %2487 = vmatpush1.msra.mxu0 %v2409
    %2488 = vmatprep.subr.mxu0 0.0
    %2489 = vmatpush2.msra.mxu0 0.0
    %2490 = vmatprep.subr.mxu0 0.0
    %2491 = vmatpush2.msra.mxu0 0.0
    %2492 = vmatprep.subr.mxu0 0.0
    %2493 = vmatpush2.msra.mxu0 0.0
    %2494 = vmatprep.subr.mxu0 0.0
    %2495 = vmatpush2.msra.mxu0 0.0
    %2496 = vmatprep.subr.mxu0 0.0
    %2497 = vmatpush2.msra.mxu0 0.0
    %2498 = vmatprep.subr.mxu0 0.0
    %2499 = vmatpush2.msra.mxu0 0.0
    %2500 = vmatprep.subr.mxu0 0.0
    %2501 = vmatpush2.msra.mxu0 0.0
    %2502 = vmatprep.subr.mxu0 0.0
    %2503 = vmatpush2.msra.mxu0 0.0
    %2504 = vmatprep.subr.mxu0 0.0
    %2505 = vmatpush2.msra.mxu0 0.0
    %2506 = vmatprep.subr.mxu0 0.0
    %2507 = vmatpush2.msra.mxu0 0.0
    %2508 = vmatprep.subr.mxu0 0.0
    %2509 = vmatpush2.msra.mxu0 0.0
    %2510 = vmatprep.subr.mxu0 0.0
    %2511 = vmatpush2.msra.mxu0 0.0
    %2512 = vmatprep.subr.mxu0 0.0
    %2513 = vmatpush2.msra.mxu0 0.0
    %2514 = vmatprep.subr.mxu0 0.0
    %2515 = vmatpush2.msra.mxu0 0.0
    %2516 = vmatprep.subr.mxu0 0.0
    %2517 = vmatpush2.msra.mxu0 0.0
    %2518 = vmatprep.subr.mxu0 0.0
    %2519 = vmatpush2.msra.mxu0 0.0
    %2520 = vmatprep.mubr.f32.mxu0 0.0
    %2521 = vmatmul.mubr.f32.gmra.mxu0 %v2433
    %v2522 = vpop.f32.mrf.mxu0
    %v2523 = vadd.f32 0.0, %v2522
    %v2524 = vpop.f32.mrf.mxu0
    %2525 = vmatprep.mubr.f32.mxu0 0.0
    %2526 = vmatmul.mubr.f32.gmra.mxu0 %v2436
    %v2527 = vpop.f32.mrf.mxu0
    %v2528 = vadd.f32 0.0, %v2527
    %v2529 = vpop.f32.mrf.mxu0
    %2530 = vmatprep.mubr.f32.mxu0 0.0
    %2531 = vmatmul.mubr.f32.gmra.mxu0 %v2439
    %v2532 = vpop.f32.mrf.mxu0
    %v2533 = vadd.f32 0.0, %v2532
    %v2534 = vpop.f32.mrf.mxu0
    %2535 = vmatprep.mubr.f32.mxu0 0.0
    %2536 = vmatmul.mubr.f32.gmra.mxu0 %v2442
    %v2537 = vpop.f32.mrf.mxu0
    %v2538 = vadd.f32 0.0, %v2537
    %v2539 = vpop.f32.mrf.mxu0
    %2540 = vmatprep.mubr.f32.mxu0 0.0
    %2541 = vmatmul.mubr.f32.gmra.mxu0 %v2445
    %v2542 = vpop.f32.mrf.mxu0
    %v2543 = vadd.f32 0.0, %v2542
    %v2544 = vpop.f32.mrf.mxu0
    %2545 = vmatprep.mubr.f32.mxu0 0.0
    %2546 = vmatmul.mubr.f32.gmra.mxu0 %v2448
    %v2547 = vpop.f32.mrf.mxu0
    %v2548 = vadd.f32 0.0, %v2547
    %v2549 = vpop.f32.mrf.mxu0
    %2550 = vmatprep.mubr.f32.mxu0 0.0
    %2551 = vmatmul.mubr.f32.gmra.mxu0 %v2451
    %v2552 = vpop.f32.mrf.mxu0
    %v2553 = vadd.f32 0.0, %v2552
    %v2554 = vpop.f32.mrf.mxu0
    %2555 = vmatprep.mubr.f32.mxu0 0.0
    %2556 = vmatmul.mubr.f32.gmra.mxu0 %v2454
    %v2557 = vpop.f32.mrf.mxu0
    %v2558 = vadd.f32 0.0, %v2557
    %v2559 = vpop.f32.mrf.mxu0
    %2560 = vdwg.mxu0
    %2561 = vrot.lane.b32.xlu0 %v220, 48
    %v2562 = vpop.permute.xlu0 %2561
    %2563 = vrot.lane.b32.xlu0 %v225, 48
    %v2564 = vpop.permute.xlu0 %2563
    %2565 = vrot.lane.b32.xlu0 %v230, 48
    %v2566 = vpop.permute.xlu0 %2565
    %2567 = vrot.lane.b32.xlu0 %v235, 48
    %v2568 = vpop.permute.xlu0 %2567
    %2569 = vrot.lane.b32.xlu0 %v240, 48
    %v2570 = vpop.permute.xlu0 %2569
    %2571 = vrot.lane.b32.xlu0 %v245, 48
    %v2572 = vpop.permute.xlu0 %2571
    %2573 = vrot.lane.b32.xlu0 %v250, 48
    %v2574 = vpop.permute.xlu0 %2573
    %2575 = vrot.lane.b32.xlu0 %v255, 48
    %v2576 = vpop.permute.xlu0 %2575
    %v2586 = vsel %vm589, %v2329, 0
    %v2589 = vsel %vm589, %v2331, 0
    %v2592 = vsel %vm589, %v2333, 0
    %v2595 = vsel %vm589, %v2335, 0
    %v2598 = vsel %vm589, %v2337, 0
    %v2601 = vsel %vm589, %v2339, 0
    %v2604 = vsel %vm589, %v2341, 0
    %v2607 = vsel %vm589, %v2343, 0
    %2609 = vmatprep.subr.mxu0 0.0
    %2610 = vmatpush1.msra.mxu0 0.0
    %2611 = vmatprep.subr.mxu0 0.0
    %2612 = vmatpush1.msra.mxu0 0.0
    %2613 = vmatprep.subr.mxu0 0.0
    %2614 = vmatpush1.msra.mxu0 0.0
    %2615 = vmatprep.subr.mxu0 0.0
    %2616 = vmatpush1.msra.mxu0 0.0
    %2617 = vmatprep.subr.mxu0 0.0
    %2618 = vmatpush1.msra.mxu0 0.0
    %2619 = vmatprep.subr.mxu0 0.0
    %2620 = vmatpush1.msra.mxu0 0.0
    %2621 = vmatprep.subr.mxu0 0.0
    %2622 = vmatpush1.msra.mxu0 0.0
    %2623 = vmatprep.subr.mxu0 0.0
    %2624 = vmatpush1.msra.mxu0 0.0
    %2625 = vmatprep.subr.mxu0 0.0
    %2626 = vmatpush1.msra.mxu0 %v2576
    %2627 = vmatprep.subr.mxu0 0.0
    %2628 = vmatpush1.msra.mxu0 %v2574
    %2629 = vmatprep.subr.mxu0 0.0
    %2630 = vmatpush1.msra.mxu0 %v2572
    %2631 = vmatprep.subr.mxu0 0.0
    %2632 = vmatpush1.msra.mxu0 %v2570
    %2633 = vmatprep.subr.mxu0 0.0
    %2634 = vmatpush1.msra.mxu0 %v2568
    %2635 = vmatprep.subr.mxu0 0.0
    %2636 = vmatpush1.msra.mxu0 %v2566
    %2637 = vmatprep.subr.mxu0 0.0
    %2638 = vmatpush1.msra.mxu0 %v2564
    %2639 = vmatprep.subr.mxu0 0.0
    %2640 = vmatpush1.msra.mxu0 %v2562
    %2641 = vmatprep.subr.mxu0 0.0
    %2642 = vmatpush2.msra.mxu0 0.0
    %2643 = vmatprep.subr.mxu0 0.0
    %2644 = vmatpush2.msra.mxu0 0.0
    %2645 = vmatprep.subr.mxu0 0.0
    %2646 = vmatpush2.msra.mxu0 0.0
    %2647 = vmatprep.subr.mxu0 0.0
    %2648 = vmatpush2.msra.mxu0 0.0
    %2649 = vmatprep.subr.mxu0 0.0
    %2650 = vmatpush2.msra.mxu0 0.0
    %2651 = vmatprep.subr.mxu0 0.0
    %2652 = vmatpush2.msra.mxu0 0.0
    %2653 = vmatprep.subr.mxu0 0.0
    %2654 = vmatpush2.msra.mxu0 0.0
    %2655 = vmatprep.subr.mxu0 0.0
    %2656 = vmatpush2.msra.mxu0 0.0
    %2657 = vmatprep.subr.mxu0 0.0
    %2658 = vmatpush2.msra.mxu0 0.0
    %2659 = vmatprep.subr.mxu0 0.0
    %2660 = vmatpush2.msra.mxu0 0.0
    %2661 = vmatprep.subr.mxu0 0.0
    %2662 = vmatpush2.msra.mxu0 0.0
    %2663 = vmatprep.subr.mxu0 0.0
    %2664 = vmatpush2.msra.mxu0 0.0
    %2665 = vmatprep.subr.mxu0 0.0
    %2666 = vmatpush2.msra.mxu0 0.0
    %2667 = vmatprep.subr.mxu0 0.0
    %2668 = vmatpush2.msra.mxu0 0.0
    %2669 = vmatprep.subr.mxu0 0.0
    %2670 = vmatpush2.msra.mxu0 0.0
    %2671 = vmatprep.subr.mxu0 0.0
    %2672 = vmatpush2.msra.mxu0 0.0
    %2673 = vmatprep.mubr.f32.mxu0 0.0
    %2674 = vmatmul.mubr.f32.gmra.mxu0 %v2586
    %v2675 = vpop.f32.mrf.mxu0
    %v2676 = vadd.f32 0.0, %v2675
    %v2677 = vpop.f32.mrf.mxu0
    %2678 = vmatprep.mubr.f32.mxu0 0.0
    %2679 = vmatmul.mubr.f32.gmra.mxu0 %v2589
    %v2680 = vpop.f32.mrf.mxu0
    %v2681 = vadd.f32 0.0, %v2680
    %v2682 = vpop.f32.mrf.mxu0
    %2683 = vmatprep.mubr.f32.mxu0 0.0
    %2684 = vmatmul.mubr.f32.gmra.mxu0 %v2592
    %v2685 = vpop.f32.mrf.mxu0
    %v2686 = vadd.f32 0.0, %v2685
    %v2687 = vpop.f32.mrf.mxu0
    %2688 = vmatprep.mubr.f32.mxu0 0.0
    %2689 = vmatmul.mubr.f32.gmra.mxu0 %v2595
    %v2690 = vpop.f32.mrf.mxu0
    %v2691 = vadd.f32 0.0, %v2690
    %v2692 = vpop.f32.mrf.mxu0
    %2693 = vmatprep.mubr.f32.mxu0 0.0
    %2694 = vmatmul.mubr.f32.gmra.mxu0 %v2598
    %v2695 = vpop.f32.mrf.mxu0
    %v2696 = vadd.f32 0.0, %v2695
    %v2697 = vpop.f32.mrf.mxu0
    %2698 = vmatprep.mubr.f32.mxu0 0.0
    %2699 = vmatmul.mubr.f32.gmra.mxu0 %v2601
    %v2700 = vpop.f32.mrf.mxu0
    %v2701 = vadd.f32 0.0, %v2700
    %v2702 = vpop.f32.mrf.mxu0
    %2703 = vmatprep.mubr.f32.mxu0 0.0
    %2704 = vmatmul.mubr.f32.gmra.mxu0 %v2604
    %v2705 = vpop.f32.mrf.mxu0
    %v2706 = vadd.f32 0.0, %v2705
    %v2707 = vpop.f32.mrf.mxu0
    %2708 = vmatprep.mubr.f32.mxu0 0.0
    %2709 = vmatmul.mubr.f32.gmra.mxu0 %v2607
    %v2710 = vpop.f32.mrf.mxu0
    %v2711 = vadd.f32 0.0, %v2710
    %v2712 = vpop.f32.mrf.mxu0
    %2713 = vdwg.mxu0
    %v2714 = vmul.f32 %v2523, %v2392
    %v2715 = vmul.f32 %v2528, %v2393
    %v2716 = vmul.f32 %v2533, %v2394
    %v2717 = vmul.f32 %v2538, %v2395
    %v2718 = vmul.f32 %v2543, %v2396
    %v2719 = vmul.f32 %v2548, %v2397
    %v2720 = vmul.f32 %v2553, %v2398
    %v2721 = vmul.f32 %v2558, %v2399
    %v2722 = vmul.f32 %v2676, %v2400
    %v2723 = vmul.f32 %v2681, %v2401
    %v2724 = vmul.f32 %v2686, %v2402
    %v2725 = vmul.f32 %v2691, %v2403
    %v2726 = vmul.f32 %v2696, %v2404
    %v2727 = vmul.f32 %v2701, %v2405
    %v2728 = vmul.f32 %v2706, %v2406
    %v2729 = vmul.f32 %v2711, %v2407
    %s2730 = scalar_lea.vmem [#allocation2], 192
    %v2731 = vld [vmem:[%s2730] sm:$0xff]
    %v2732 = vld [vmem:[%s2730 + $0x8] sm:$0xff]
    %v2733 = vld [vmem:[%s2730 + $0x10] sm:$0xff]
    %v2734 = vld [vmem:[%s2730 + $0x18] sm:$0xff]
    %v2735 = vld [vmem:[%s2730 + $0x20] sm:$0xff]
    %v2736 = vld [vmem:[%s2730 + $0x28] sm:$0xff]
    %v2737 = vld [vmem:[%s2730 + $0x30] sm:$0xff]
    %v2738 = vld [vmem:[%s2730 + $0x38] sm:$0xff]
    %2739 = vrot.lane.b32.xlu0 %v180, 104
    %v2740 = vpop.permute.xlu0 %2739
    %2741 = vrot.lane.b32.xlu0 %v185, 104
    %v2742 = vpop.permute.xlu0 %2741
    %2743 = vrot.lane.b32.xlu0 %v190, 104
    %v2744 = vpop.permute.xlu0 %2743
    %2745 = vrot.lane.b32.xlu0 %v195, 104
    %v2746 = vpop.permute.xlu0 %2745
    %2747 = vrot.lane.b32.xlu0 %v200, 104
    %v2748 = vpop.permute.xlu0 %2747
    %2749 = vrot.lane.b32.xlu0 %v205, 104
    %v2750 = vpop.permute.xlu0 %2749
    %2751 = vrot.lane.b32.xlu0 %v210, 104
    %v2752 = vpop.permute.xlu0 %2751
    %2753 = vrot.lane.b32.xlu0 %v215, 104
    %v2754 = vpop.permute.xlu0 %2753
    %2755 = vrot.lane.b32.xlu0 %v180, 72
    %v2756 = vpop.permute.xlu0 %2755
    %2757 = vrot.lane.b32.xlu0 %v185, 72
    %v2758 = vpop.permute.xlu0 %2757
    %2759 = vrot.lane.b32.xlu0 %v190, 72
    %v2760 = vpop.permute.xlu0 %2759
    %2761 = vrot.lane.b32.xlu0 %v195, 72
    %v2762 = vpop.permute.xlu0 %2761
    %2763 = vrot.lane.b32.xlu0 %v200, 72
    %v2764 = vpop.permute.xlu0 %2763
    %2765 = vrot.lane.b32.xlu0 %v205, 72
    %v2766 = vpop.permute.xlu0 %2765
    %2767 = vrot.lane.b32.xlu0 %v210, 72
    %v2768 = vpop.permute.xlu0 %2767
    %2769 = vrot.lane.b32.xlu0 %v215, 72
    %v2770 = vpop.permute.xlu0 %2769
    %v2771 = vsel %vm290, %v2740, 0
    %v2773 = vsel %vm290, %v2742, 0
    %v2775 = vsel %vm290, %v2744, 0
    %v2777 = vsel %vm290, %v2746, 0
    %v2779 = vsel %vm290, %v2748, 0
    %v2781 = vsel %vm290, %v2750, 0
    %v2783 = vsel %vm290, %v2752, 0
    %v2785 = vsel %vm290, %v2754, 0
    %v2787 = vsel %vm290, %v2756, 0
    %v2789 = vsel %vm290, %v2758, 0
    %v2791 = vsel %vm290, %v2760, 0
    %v2793 = vsel %vm290, %v2762, 0
    %v2795 = vsel %vm290, %v2764, 0
    %v2797 = vsel %vm290, %v2766, 0
    %v2799 = vsel %vm290, %v2768, 0
    %v2801 = vsel %vm290, %v2770, 0
    %2803 = vmatprep.subr.mxu0 0.0
    %2804 = vmatpush1.xpose.msra.mxu0 0.0
    %2805 = vmatprep.subr.mxu0 0.0
    %2806 = vmatpush1.xpose.msra.mxu0 0.0
    %2807 = vmatprep.subr.mxu0 0.0
    %2808 = vmatpush1.xpose.msra.mxu0 0.0
    %2809 = vmatprep.subr.mxu0 0.0
    %2810 = vmatpush1.xpose.msra.mxu0 0.0
    %2811 = vmatprep.subr.mxu0 0.0
    %2812 = vmatpush1.xpose.msra.mxu0 0.0
    %2813 = vmatprep.subr.mxu0 0.0
    %2814 = vmatpush1.xpose.msra.mxu0 0.0
    %2815 = vmatprep.subr.mxu0 0.0
    %2816 = vmatpush1.xpose.msra.mxu0 0.0
    %2817 = vmatprep.subr.mxu0 0.0
    %2818 = vmatpush1.xpose.msra.mxu0 0.0
    %2819 = vmatprep.subr.mxu0 0.0
    %2820 = vmatpush1.xpose.msra.mxu0 %v2801
    %2821 = vmatprep.subr.mxu0 0.0
    %2822 = vmatpush1.xpose.msra.mxu0 %v2799
    %2823 = vmatprep.subr.mxu0 0.0
    %2824 = vmatpush1.xpose.msra.mxu0 %v2797
    %2825 = vmatprep.subr.mxu0 0.0
    %2826 = vmatpush1.xpose.msra.mxu0 %v2795
    %2827 = vmatprep.subr.mxu0 0.0
    %2828 = vmatpush1.xpose.msra.mxu0 %v2793
    %2829 = vmatprep.subr.mxu0 0.0
    %2830 = vmatpush1.xpose.msra.mxu0 %v2791
    %2831 = vmatprep.subr.mxu0 0.0
    %2832 = vmatpush1.xpose.msra.mxu0 %v2789
    %2833 = vmatprep.subr.mxu0 0.0
    %2834 = vmatpush1.xpose.msra.mxu0 %v2787
    %2835 = vmatprep.subr.mxu0 0.0
    %2836 = vmatpush2.xpose.msra.mxu0 0.0
    %2837 = vmatprep.subr.mxu0 0.0
    %2838 = vmatpush2.xpose.msra.mxu0 0.0
    %2839 = vmatprep.subr.mxu0 0.0
    %2840 = vmatpush2.xpose.msra.mxu0 0.0
    %2841 = vmatprep.subr.mxu0 0.0
    %2842 = vmatpush2.xpose.msra.mxu0 0.0
    %2843 = vmatprep.subr.mxu0 0.0
    %2844 = vmatpush2.xpose.msra.mxu0 0.0
    %2845 = vmatprep.subr.mxu0 0.0
    %2846 = vmatpush2.xpose.msra.mxu0 0.0
    %2847 = vmatprep.subr.mxu0 0.0
    %2848 = vmatpush2.xpose.msra.mxu0 0.0
    %2849 = vmatprep.subr.mxu0 0.0
    %2850 = vmatpush2.xpose.msra.mxu0 0.0
    %2851 = vmatprep.subr.mxu0 0.0
    %2852 = vmatpush2.xpose.msra.mxu0 0.0
    %2853 = vmatprep.subr.mxu0 0.0
    %2854 = vmatpush2.xpose.msra.mxu0 0.0
    %2855 = vmatprep.subr.mxu0 0.0
    %2856 = vmatpush2.xpose.msra.mxu0 0.0
    %2857 = vmatprep.subr.mxu0 0.0
    %2858 = vmatpush2.xpose.msra.mxu0 0.0
    %2859 = vmatprep.subr.mxu0 0.0
    %2860 = vmatpush2.xpose.msra.mxu0 0.0
    %2861 = vmatprep.subr.mxu0 0.0
    %2862 = vmatpush2.xpose.msra.mxu0 0.0
    %2863 = vmatprep.subr.mxu0 0.0
    %2864 = vmatpush2.xpose.msra.mxu0 0.0
    %2865 = vmatprep.subr.mxu0 0.0
    %2866 = vmatpush2.xpose.msra.mxu0 0.0
    %2867 = vmatprep.mubr.f32.mxu0 0.0
    %2868 = vmatmul.mubr.f32.gmra.mxu0 %v2771
    %v2869 = vpop.f32.mrf.mxu0
    %v2870 = vadd.f32 %v2731, %v2869
    %v2871 = vpop.f32.mrf.mxu0
    %2872 = vmatprep.mubr.f32.mxu0 0.0
    %2873 = vmatmul.mubr.f32.gmra.mxu0 %v2773
    %v2874 = vpop.f32.mrf.mxu0
    %v2875 = vadd.f32 %v2732, %v2874
    %v2876 = vpop.f32.mrf.mxu0
    %2877 = vmatprep.mubr.f32.mxu0 0.0
    %2878 = vmatmul.mubr.f32.gmra.mxu0 %v2775
    %v2879 = vpop.f32.mrf.mxu0
    %v2880 = vadd.f32 %v2733, %v2879
    %v2881 = vpop.f32.mrf.mxu0
    %2882 = vmatprep.mubr.f32.mxu0 0.0
    %2883 = vmatmul.mubr.f32.gmra.mxu0 %v2777
    %v2884 = vpop.f32.mrf.mxu0
    %v2885 = vadd.f32 %v2734, %v2884
    %v2886 = vpop.f32.mrf.mxu0
    %2887 = vmatprep.mubr.f32.mxu0 0.0
    %2888 = vmatmul.mubr.f32.gmra.mxu0 %v2779
    %v2889 = vpop.f32.mrf.mxu0
    %v2890 = vadd.f32 %v2735, %v2889
    %v2891 = vpop.f32.mrf.mxu0
    %2892 = vmatprep.mubr.f32.mxu0 0.0
    %2893 = vmatmul.mubr.f32.gmra.mxu0 %v2781
    %v2894 = vpop.f32.mrf.mxu0
    %v2895 = vadd.f32 %v2736, %v2894
    %v2896 = vpop.f32.mrf.mxu0
    %2897 = vmatprep.mubr.f32.mxu0 0.0
    %2898 = vmatmul.mubr.f32.gmra.mxu0 %v2783
    %v2899 = vpop.f32.mrf.mxu0
    %v2900 = vadd.f32 %v2737, %v2899
    %v2901 = vpop.f32.mrf.mxu0
    %2902 = vmatprep.mubr.f32.mxu0 0.0
    %2903 = vmatmul.mubr.f32.gmra.mxu0 %v2785
    %v2904 = vpop.f32.mrf.mxu0
    %v2905 = vadd.f32 %v2738, %v2904
    %v2906 = vpop.f32.mrf.mxu0
    %2907 = vdwg.mxu0
    %2908 = vrot.lane.b32.xlu0 %v220, 104
    %v2909 = vpop.permute.xlu0 %2908
    %2910 = vrot.lane.b32.xlu0 %v225, 104
    %v2911 = vpop.permute.xlu0 %2910
    %2912 = vrot.lane.b32.xlu0 %v230, 104
    %v2913 = vpop.permute.xlu0 %2912
    %2914 = vrot.lane.b32.xlu0 %v235, 104
    %v2915 = vpop.permute.xlu0 %2914
    %2916 = vrot.lane.b32.xlu0 %v240, 104
    %v2917 = vpop.permute.xlu0 %2916
    %2918 = vrot.lane.b32.xlu0 %v245, 104
    %v2919 = vpop.permute.xlu0 %2918
    %2920 = vrot.lane.b32.xlu0 %v250, 104
    %v2921 = vpop.permute.xlu0 %2920
    %2922 = vrot.lane.b32.xlu0 %v255, 104
    %v2923 = vpop.permute.xlu0 %2922
    %2924 = vrot.lane.b32.xlu0 %v220, 72
    %v2925 = vpop.permute.xlu0 %2924
    %2926 = vrot.lane.b32.xlu0 %v225, 72
    %v2927 = vpop.permute.xlu0 %2926
    %2928 = vrot.lane.b32.xlu0 %v230, 72
    %v2929 = vpop.permute.xlu0 %2928
    %2930 = vrot.lane.b32.xlu0 %v235, 72
    %v2931 = vpop.permute.xlu0 %2930
    %2932 = vrot.lane.b32.xlu0 %v240, 72
    %v2933 = vpop.permute.xlu0 %2932
    %2934 = vrot.lane.b32.xlu0 %v245, 72
    %v2935 = vpop.permute.xlu0 %2934
    %2936 = vrot.lane.b32.xlu0 %v250, 72
    %v2937 = vpop.permute.xlu0 %2936
    %2938 = vrot.lane.b32.xlu0 %v255, 72
    %v2939 = vpop.permute.xlu0 %2938
    %v2940 = vsel %vm290, %v2909, 0
    %v2942 = vsel %vm290, %v2911, 0
    %v2944 = vsel %vm290, %v2913, 0
    %v2946 = vsel %vm290, %v2915, 0
    %v2948 = vsel %vm290, %v2917, 0
    %v2950 = vsel %vm290, %v2919, 0
    %v2952 = vsel %vm290, %v2921, 0
    %v2954 = vsel %vm290, %v2923, 0
    %v2956 = vsel %vm290, %v2925, 0
    %v2958 = vsel %vm290, %v2927, 0
    %v2960 = vsel %vm290, %v2929, 0
    %v2962 = vsel %vm290, %v2931, 0
    %v2964 = vsel %vm290, %v2933, 0
    %v2966 = vsel %vm290, %v2935, 0
    %v2968 = vsel %vm290, %v2937, 0
    %v2970 = vsel %vm290, %v2939, 0
    %2972 = vmatprep.subr.mxu0 0.0
    %2973 = vmatpush1.xpose.msra.mxu0 0.0
    %2974 = vmatprep.subr.mxu0 0.0
    %2975 = vmatpush1.xpose.msra.mxu0 0.0
    %2976 = vmatprep.subr.mxu0 0.0
    %2977 = vmatpush1.xpose.msra.mxu0 0.0
    %2978 = vmatprep.subr.mxu0 0.0
    %2979 = vmatpush1.xpose.msra.mxu0 0.0
    %2980 = vmatprep.subr.mxu0 0.0
    %2981 = vmatpush1.xpose.msra.mxu0 0.0
    %2982 = vmatprep.subr.mxu0 0.0
    %2983 = vmatpush1.xpose.msra.mxu0 0.0
    %2984 = vmatprep.subr.mxu0 0.0
    %2985 = vmatpush1.xpose.msra.mxu0 0.0
    %2986 = vmatprep.subr.mxu0 0.0
    %2987 = vmatpush1.xpose.msra.mxu0 0.0
    %2988 = vmatprep.subr.mxu0 0.0
    %2989 = vmatpush1.xpose.msra.mxu0 %v2970
    %2990 = vmatprep.subr.mxu0 0.0
    %2991 = vmatpush1.xpose.msra.mxu0 %v2968
    %2992 = vmatprep.subr.mxu0 0.0
    %2993 = vmatpush1.xpose.msra.mxu0 %v2966
    %2994 = vmatprep.subr.mxu0 0.0
    %2995 = vmatpush1.xpose.msra.mxu0 %v2964
    %2996 = vmatprep.subr.mxu0 0.0
    %2997 = vmatpush1.xpose.msra.mxu0 %v2962
    %2998 = vmatprep.subr.mxu0 0.0
    %2999 = vmatpush1.xpose.msra.mxu0 %v2960
    %3000 = vmatprep.subr.mxu0 0.0
    %3001 = vmatpush1.xpose.msra.mxu0 %v2958
    %3002 = vmatprep.subr.mxu0 0.0
    %3003 = vmatpush1.xpose.msra.mxu0 %v2956
    %3004 = vmatprep.subr.mxu0 0.0
    %3005 = vmatpush2.xpose.msra.mxu0 0.0
    %3006 = vmatprep.subr.mxu0 0.0
    %3007 = vmatpush2.xpose.msra.mxu0 0.0
    %3008 = vmatprep.subr.mxu0 0.0
    %3009 = vmatpush2.xpose.msra.mxu0 0.0
    %3010 = vmatprep.subr.mxu0 0.0
    %3011 = vmatpush2.xpose.msra.mxu0 0.0
    %3012 = vmatprep.subr.mxu0 0.0
    %3013 = vmatpush2.xpose.msra.mxu0 0.0
    %3014 = vmatprep.subr.mxu0 0.0
    %3015 = vmatpush2.xpose.msra.mxu0 0.0
    %3016 = vmatprep.subr.mxu0 0.0
    %3017 = vmatpush2.xpose.msra.mxu0 0.0
    %3018 = vmatprep.subr.mxu0 0.0
    %3019 = vmatpush2.xpose.msra.mxu0 0.0
    %3020 = vmatprep.subr.mxu0 0.0
    %3021 = vmatpush2.xpose.msra.mxu0 0.0
    %3022 = vmatprep.subr.mxu0 0.0
    %3023 = vmatpush2.xpose.msra.mxu0 0.0
    %3024 = vmatprep.subr.mxu0 0.0
    %3025 = vmatpush2.xpose.msra.mxu0 0.0
    %3026 = vmatprep.subr.mxu0 0.0
    %3027 = vmatpush2.xpose.msra.mxu0 0.0
    %3028 = vmatprep.subr.mxu0 0.0
    %3029 = vmatpush2.xpose.msra.mxu0 0.0
    %3030 = vmatprep.subr.mxu0 0.0
    %3031 = vmatpush2.xpose.msra.mxu0 0.0
    %3032 = vmatprep.subr.mxu0 0.0
    %3033 = vmatpush2.xpose.msra.mxu0 0.0
    %3034 = vmatprep.subr.mxu0 0.0
    %3035 = vmatpush2.xpose.msra.mxu0 0.0
    %3036 = vmatprep.mubr.f32.mxu0 0.0
    %3037 = vmatmul.mubr.f32.gmra.mxu0 %v2940
    %v3038 = vpop.f32.mrf.mxu0
    %v3039 = vadd.f32 %v2731, %v3038
    %v3040 = vpop.f32.mrf.mxu0
    %3041 = vmatprep.mubr.f32.mxu0 0.0
    %3042 = vmatmul.mubr.f32.gmra.mxu0 %v2942
    %v3043 = vpop.f32.mrf.mxu0
    %v3044 = vadd.f32 %v2732, %v3043
    %v3045 = vpop.f32.mrf.mxu0
    %3046 = vmatprep.mubr.f32.mxu0 0.0
    %3047 = vmatmul.mubr.f32.gmra.mxu0 %v2944
    %v3048 = vpop.f32.mrf.mxu0
    %v3049 = vadd.f32 %v2733, %v3048
    %v3050 = vpop.f32.mrf.mxu0
    %3051 = vmatprep.mubr.f32.mxu0 0.0
    %3052 = vmatmul.mubr.f32.gmra.mxu0 %v2946
    %v3053 = vpop.f32.mrf.mxu0
    %v3054 = vadd.f32 %v2734, %v3053
    %v3055 = vpop.f32.mrf.mxu0
    %3056 = vmatprep.mubr.f32.mxu0 0.0
    %3057 = vmatmul.mubr.f32.gmra.mxu0 %v2948
    %v3058 = vpop.f32.mrf.mxu0
    %v3059 = vadd.f32 %v2735, %v3058
    %v3060 = vpop.f32.mrf.mxu0
    %3061 = vmatprep.mubr.f32.mxu0 0.0
    %3062 = vmatmul.mubr.f32.gmra.mxu0 %v2950
    %v3063 = vpop.f32.mrf.mxu0
    %v3064 = vadd.f32 %v2736, %v3063
    %v3065 = vpop.f32.mrf.mxu0
    %3066 = vmatprep.mubr.f32.mxu0 0.0
    %3067 = vmatmul.mubr.f32.gmra.mxu0 %v2952
    %v3068 = vpop.f32.mrf.mxu0
    %v3069 = vadd.f32 %v2737, %v3068
    %v3070 = vpop.f32.mrf.mxu0
    %3071 = vmatprep.mubr.f32.mxu0 0.0
    %3072 = vmatmul.mubr.f32.gmra.mxu0 %v2954
    %v3073 = vpop.f32.mrf.mxu0
    %v3074 = vadd.f32 %v2738, %v3073
    %v3075 = vpop.f32.mrf.mxu0
    %3076 = vdwg.mxu0
    %v3077 = vsel %vm589, %v2870, -inf
    %3078 = vmax.xlane.f32.xlu0 %v3077
    %v3079 = vpop.xlane.xlu0 %3078
    %v3080 = vsel %vm589, %v2875, -inf
    %3081 = vmax.xlane.f32.xlu0 %v3080
    %v3082 = vpop.xlane.xlu0 %3081
    %v3083 = vsel %vm589, %v2880, -inf
    %3084 = vmax.xlane.f32.xlu0 %v3083
    %v3085 = vpop.xlane.xlu0 %3084
    %v3086 = vsel %vm589, %v2885, -inf
    %3087 = vmax.xlane.f32.xlu0 %v3086
    %v3088 = vpop.xlane.xlu0 %3087
    %v3089 = vsel %vm589, %v2890, -inf
    %3090 = vmax.xlane.f32.xlu0 %v3089
    %v3091 = vpop.xlane.xlu0 %3090
    %v3092 = vsel %vm589, %v2895, -inf
    %3093 = vmax.xlane.f32.xlu0 %v3092
    %v3094 = vpop.xlane.xlu0 %3093
    %v3095 = vsel %vm589, %v2900, -inf
    %3096 = vmax.xlane.f32.xlu0 %v3095
    %v3097 = vpop.xlane.xlu0 %3096
    %v3098 = vsel %vm589, %v2905, -inf
    %3099 = vmax.xlane.f32.xlu0 %v3098
    %v3100 = vpop.xlane.xlu0 %3099
    %v3101 = vsel %vm589, %v3039, -inf
    %3102 = vmax.xlane.f32.xlu0 %v3101
    %v3103 = vpop.xlane.xlu0 %3102
    %v3104 = vsel %vm589, %v3044, -inf
    %3105 = vmax.xlane.f32.xlu0 %v3104
    %v3106 = vpop.xlane.xlu0 %3105
    %v3107 = vsel %vm589, %v3049, -inf
    %3108 = vmax.xlane.f32.xlu0 %v3107
    %v3109 = vpop.xlane.xlu0 %3108
    %v3110 = vsel %vm589, %v3054, -inf
    %3111 = vmax.xlane.f32.xlu0 %v3110
    %v3112 = vpop.xlane.xlu0 %3111
    %v3113 = vsel %vm589, %v3059, -inf
    %3114 = vmax.xlane.f32.xlu0 %v3113
    %v3115 = vpop.xlane.xlu0 %3114
    %v3116 = vsel %vm589, %v3064, -inf
    %3117 = vmax.xlane.f32.xlu0 %v3116
    %v3118 = vpop.xlane.xlu0 %3117
    %v3119 = vsel %vm589, %v3069, -inf
    %3120 = vmax.xlane.f32.xlu0 %v3119
    %v3121 = vpop.xlane.xlu0 %3120
    %v3122 = vsel %vm589, %v3074, -inf
    %3123 = vmax.xlane.f32.xlu0 %v3122
    %v3124 = vpop.xlane.xlu0 %3123
    %v3125 = vsub.f32 %v2870, %v3079
    %v3126 = vsub.f32 %v2875, %v3082
    %v3127 = vsub.f32 %v2880, %v3085
    %v3128 = vsub.f32 %v2885, %v3088
    %v3129 = vsub.f32 %v2890, %v3091
    %v3130 = vsub.f32 %v2895, %v3094
    %v3131 = vsub.f32 %v2900, %v3097
    %v3132 = vsub.f32 %v2905, %v3100
    %v3133 = vsub.f32 %v3039, %v3103
    %v3134 = vsub.f32 %v3044, %v3106
    %v3135 = vsub.f32 %v3049, %v3109
    %v3136 = vsub.f32 %v3054, %v3112
    %v3137 = vsub.f32 %v3059, %v3115
    %v3138 = vsub.f32 %v3064, %v3118
    %v3139 = vsub.f32 %v3069, %v3121
    %v3140 = vsub.f32 %v3074, %v3124
    %v3141 = vmul.f32 %v3125, 1.442695
    %v3142 = vpow.pop %v3141
    %v3143 = vmul.f32 %v3126, 1.442695
    %v3144 = vpow.pop %v3143
    %v3145 = vmul.f32 %v3127, 1.442695
    %v3146 = vpow.pop %v3145
    %v3147 = vmul.f32 %v3128, 1.442695
    %v3148 = vpow.pop %v3147
    %v3149 = vmul.f32 %v3129, 1.442695
    %v3150 = vpow.pop %v3149
    %v3151 = vmul.f32 %v3130, 1.442695
    %v3152 = vpow.pop %v3151
    %v3153 = vmul.f32 %v3131, 1.442695
    %v3154 = vpow.pop %v3153
    %v3155 = vmul.f32 %v3132, 1.442695
    %v3156 = vpow.pop %v3155
    %v3157 = vmul.f32 %v3133, 1.442695
    %v3158 = vpow.pop %v3157
    %v3159 = vmul.f32 %v3134, 1.442695
    %v3160 = vpow.pop %v3159
    %v3161 = vmul.f32 %v3135, 1.442695
    %v3162 = vpow.pop %v3161
    %v3163 = vmul.f32 %v3136, 1.442695
    %v3164 = vpow.pop %v3163
    %v3165 = vmul.f32 %v3137, 1.442695
    %v3166 = vpow.pop %v3165
    %v3167 = vmul.f32 %v3138, 1.442695
    %v3168 = vpow.pop %v3167
    %v3169 = vmul.f32 %v3139, 1.442695
    %v3170 = vpow.pop %v3169
    %v3171 = vmul.f32 %v3140, 1.442695
    %v3172 = vpow.pop %v3171
    %v3173 = vsel %vm589, %v3142, 0.0
    %3174 = vadd.xlane.f32.xlu0 %v3173
    %v3175 = vpop.xlane.xlu0 %3174
    %v3176 = vsel %vm589, %v3144, 0.0
    %3177 = vadd.xlane.f32.xlu0 %v3176
    %v3178 = vpop.xlane.xlu0 %3177
    %v3179 = vsel %vm589, %v3146, 0.0
    %3180 = vadd.xlane.f32.xlu0 %v3179
    %v3181 = vpop.xlane.xlu0 %3180
    %v3182 = vsel %vm589, %v3148, 0.0
    %3183 = vadd.xlane.f32.xlu0 %v3182
    %v3184 = vpop.xlane.xlu0 %3183
    %v3185 = vsel %vm589, %v3150, 0.0
    %3186 = vadd.xlane.f32.xlu0 %v3185
    %v3187 = vpop.xlane.xlu0 %3186
    %v3188 = vsel %vm589, %v3152, 0.0
    %3189 = vadd.xlane.f32.xlu0 %v3188
    %v3190 = vpop.xlane.xlu0 %3189
    %v3191 = vsel %vm589, %v3154, 0.0
    %3192 = vadd.xlane.f32.xlu0 %v3191
    %v3193 = vpop.xlane.xlu0 %3192
    %v3194 = vsel %vm589, %v3156, 0.0
    %3195 = vadd.xlane.f32.xlu0 %v3194
    %v3196 = vpop.xlane.xlu0 %3195
    %v3197 = vsel %vm589, %v3158, 0.0
    %3198 = vadd.xlane.f32.xlu0 %v3197
    %v3199 = vpop.xlane.xlu0 %3198
    %v3200 = vsel %vm589, %v3160, 0.0
    %3201 = vadd.xlane.f32.xlu0 %v3200
    %v3202 = vpop.xlane.xlu0 %3201
    %v3203 = vsel %vm589, %v3162, 0.0
    %3204 = vadd.xlane.f32.xlu0 %v3203
    %v3205 = vpop.xlane.xlu0 %3204
    %v3206 = vsel %vm589, %v3164, 0.0
    %3207 = vadd.xlane.f32.xlu0 %v3206
    %v3208 = vpop.xlane.xlu0 %3207
    %v3209 = vsel %vm589, %v3166, 0.0
    %3210 = vadd.xlane.f32.xlu0 %v3209
    %v3211 = vpop.xlane.xlu0 %3210
    %v3212 = vsel %vm589, %v3168, 0.0
    %3213 = vadd.xlane.f32.xlu0 %v3212
    %v3214 = vpop.xlane.xlu0 %3213
    %v3215 = vsel %vm589, %v3170, 0.0
    %3216 = vadd.xlane.f32.xlu0 %v3215
    %v3217 = vpop.xlane.xlu0 %3216
    %v3218 = vsel %vm589, %v3172, 0.0
    %3219 = vadd.xlane.f32.xlu0 %v3218
    %v3220 = vpop.xlane.xlu0 %3219
    %v3221 = vrcp.pop %v3175
    %v3222 = vrcp.pop %v3178
    %v3223 = vrcp.pop %v3181
    %v3224 = vrcp.pop %v3184
    %v3225 = vrcp.pop %v3187
    %v3226 = vrcp.pop %v3190
    %v3227 = vrcp.pop %v3193
    %v3228 = vrcp.pop %v3196
    %v3229 = vrcp.pop %v3199
    %v3230 = vrcp.pop %v3202
    %v3231 = vrcp.pop %v3205
    %v3232 = vrcp.pop %v3208
    %v3233 = vrcp.pop %v3211
    %v3234 = vrcp.pop %v3214
    %v3235 = vrcp.pop %v3217
    %v3236 = vrcp.pop %v3220
    %3237 = vrot.lane.b32.xlu0 %v180, 40
    %v3238 = vpop.permute.xlu0 %3237
    %3239 = vrot.lane.b32.xlu0 %v185, 40
    %v3240 = vpop.permute.xlu0 %3239
    %3241 = vrot.lane.b32.xlu0 %v190, 40
    %v3242 = vpop.permute.xlu0 %3241
    %3243 = vrot.lane.b32.xlu0 %v195, 40
    %v3244 = vpop.permute.xlu0 %3243
    %3245 = vrot.lane.b32.xlu0 %v200, 40
    %v3246 = vpop.permute.xlu0 %3245
    %3247 = vrot.lane.b32.xlu0 %v205, 40
    %v3248 = vpop.permute.xlu0 %3247
    %3249 = vrot.lane.b32.xlu0 %v210, 40
    %v3250 = vpop.permute.xlu0 %3249
    %3251 = vrot.lane.b32.xlu0 %v215, 40
    %v3252 = vpop.permute.xlu0 %3251
    %v3262 = vsel %vm589, %v3142, 0
    %v3265 = vsel %vm589, %v3144, 0
    %v3268 = vsel %vm589, %v3146, 0
    %v3271 = vsel %vm589, %v3148, 0
    %v3274 = vsel %vm589, %v3150, 0
    %v3277 = vsel %vm589, %v3152, 0
    %v3280 = vsel %vm589, %v3154, 0
    %v3283 = vsel %vm589, %v3156, 0
    %3285 = vmatprep.subr.mxu0 0.0
    %3286 = vmatpush1.msra.mxu0 0.0
    %3287 = vmatprep.subr.mxu0 0.0
    %3288 = vmatpush1.msra.mxu0 0.0
    %3289 = vmatprep.subr.mxu0 0.0
    %3290 = vmatpush1.msra.mxu0 0.0
    %3291 = vmatprep.subr.mxu0 0.0
    %3292 = vmatpush1.msra.mxu0 0.0
    %3293 = vmatprep.subr.mxu0 0.0
    %3294 = vmatpush1.msra.mxu0 0.0
    %3295 = vmatprep.subr.mxu0 0.0
    %3296 = vmatpush1.msra.mxu0 0.0
    %3297 = vmatprep.subr.mxu0 0.0
    %3298 = vmatpush1.msra.mxu0 0.0
    %3299 = vmatprep.subr.mxu0 0.0
    %3300 = vmatpush1.msra.mxu0 0.0
    %3301 = vmatprep.subr.mxu0 0.0
    %3302 = vmatpush1.msra.mxu0 %v3252
    %3303 = vmatprep.subr.mxu0 0.0
    %3304 = vmatpush1.msra.mxu0 %v3250
    %3305 = vmatprep.subr.mxu0 0.0
    %3306 = vmatpush1.msra.mxu0 %v3248
    %3307 = vmatprep.subr.mxu0 0.0
    %3308 = vmatpush1.msra.mxu0 %v3246
    %3309 = vmatprep.subr.mxu0 0.0
    %3310 = vmatpush1.msra.mxu0 %v3244
    %3311 = vmatprep.subr.mxu0 0.0
    %3312 = vmatpush1.msra.mxu0 %v3242
    %3313 = vmatprep.subr.mxu0 0.0
    %3314 = vmatpush1.msra.mxu0 %v3240
    %3315 = vmatprep.subr.mxu0 0.0
    %3316 = vmatpush1.msra.mxu0 %v3238
    %3317 = vmatprep.subr.mxu0 0.0
    %3318 = vmatpush2.msra.mxu0 0.0
    %3319 = vmatprep.subr.mxu0 0.0
    %3320 = vmatpush2.msra.mxu0 0.0
    %3321 = vmatprep.subr.mxu0 0.0
    %3322 = vmatpush2.msra.mxu0 0.0
    %3323 = vmatprep.subr.mxu0 0.0
    %3324 = vmatpush2.msra.mxu0 0.0
    %3325 = vmatprep.subr.mxu0 0.0
    %3326 = vmatpush2.msra.mxu0 0.0
    %3327 = vmatprep.subr.mxu0 0.0
    %3328 = vmatpush2.msra.mxu0 0.0
    %3329 = vmatprep.subr.mxu0 0.0
    %3330 = vmatpush2.msra.mxu0 0.0
    %3331 = vmatprep.subr.mxu0 0.0
    %3332 = vmatpush2.msra.mxu0 0.0
    %3333 = vmatprep.subr.mxu0 0.0
    %3334 = vmatpush2.msra.mxu0 0.0
    %3335 = vmatprep.subr.mxu0 0.0
    %3336 = vmatpush2.msra.mxu0 0.0
    %3337 = vmatprep.subr.mxu0 0.0
    %3338 = vmatpush2.msra.mxu0 0.0
    %3339 = vmatprep.subr.mxu0 0.0
    %3340 = vmatpush2.msra.mxu0 0.0
    %3341 = vmatprep.subr.mxu0 0.0
    %3342 = vmatpush2.msra.mxu0 0.0
    %3343 = vmatprep.subr.mxu0 0.0
    %3344 = vmatpush2.msra.mxu0 0.0
    %3345 = vmatprep.subr.mxu0 0.0
    %3346 = vmatpush2.msra.mxu0 0.0
    %3347 = vmatprep.subr.mxu0 0.0
    %3348 = vmatpush2.msra.mxu0 0.0
    %3349 = vmatprep.mubr.f32.mxu0 0.0
    %3350 = vmatmul.mubr.f32.gmra.mxu0 %v3262
    %v3351 = vpop.f32.mrf.mxu0
    %v3352 = vadd.f32 0.0, %v3351
    %v3353 = vpop.f32.mrf.mxu0
    %3354 = vmatprep.mubr.f32.mxu0 0.0
    %3355 = vmatmul.mubr.f32.gmra.mxu0 %v3265
    %v3356 = vpop.f32.mrf.mxu0
    %v3357 = vadd.f32 0.0, %v3356
    %v3358 = vpop.f32.mrf.mxu0
    %3359 = vmatprep.mubr.f32.mxu0 0.0
    %3360 = vmatmul.mubr.f32.gmra.mxu0 %v3268
    %v3361 = vpop.f32.mrf.mxu0
    %v3362 = vadd.f32 0.0, %v3361
    %v3363 = vpop.f32.mrf.mxu0
    %3364 = vmatprep.mubr.f32.mxu0 0.0
    %3365 = vmatmul.mubr.f32.gmra.mxu0 %v3271
    %v3366 = vpop.f32.mrf.mxu0
    %v3367 = vadd.f32 0.0, %v3366
    %v3368 = vpop.f32.mrf.mxu0
    %3369 = vmatprep.mubr.f32.mxu0 0.0
    %3370 = vmatmul.mubr.f32.gmra.mxu0 %v3274
    %v3371 = vpop.f32.mrf.mxu0
    %v3372 = vadd.f32 0.0, %v3371
    %v3373 = vpop.f32.mrf.mxu0
    %3374 = vmatprep.mubr.f32.mxu0 0.0
    %3375 = vmatmul.mubr.f32.gmra.mxu0 %v3277
    %v3376 = vpop.f32.mrf.mxu0
    %v3377 = vadd.f32 0.0, %v3376
    %v3378 = vpop.f32.mrf.mxu0
    %3379 = vmatprep.mubr.f32.mxu0 0.0
    %3380 = vmatmul.mubr.f32.gmra.mxu0 %v3280
    %v3381 = vpop.f32.mrf.mxu0
    %v3382 = vadd.f32 0.0, %v3381
    %v3383 = vpop.f32.mrf.mxu0
    %3384 = vmatprep.mubr.f32.mxu0 0.0
    %3385 = vmatmul.mubr.f32.gmra.mxu0 %v3283
    %v3386 = vpop.f32.mrf.mxu0
    %v3387 = vadd.f32 0.0, %v3386
    %v3388 = vpop.f32.mrf.mxu0
    %3389 = vdwg.mxu0
    %3390 = vrot.lane.b32.xlu0 %v220, 40
    %v3391 = vpop.permute.xlu0 %3390
    %3392 = vrot.lane.b32.xlu0 %v225, 40
    %v3393 = vpop.permute.xlu0 %3392
    %3394 = vrot.lane.b32.xlu0 %v230, 40
    %v3395 = vpop.permute.xlu0 %3394
    %3396 = vrot.lane.b32.xlu0 %v235, 40
    %v3397 = vpop.permute.xlu0 %3396
    %3398 = vrot.lane.b32.xlu0 %v240, 40
    %v3399 = vpop.permute.xlu0 %3398
    %3400 = vrot.lane.b32.xlu0 %v245, 40
    %v3401 = vpop.permute.xlu0 %3400
    %3402 = vrot.lane.b32.xlu0 %v250, 40
    %v3403 = vpop.permute.xlu0 %3402
    %3404 = vrot.lane.b32.xlu0 %v255, 40
    %v3405 = vpop.permute.xlu0 %3404
    %v3415 = vsel %vm589, %v3158, 0
    %v3418 = vsel %vm589, %v3160, 0
    %v3421 = vsel %vm589, %v3162, 0
    %v3424 = vsel %vm589, %v3164, 0
    %v3427 = vsel %vm589, %v3166, 0
    %v3430 = vsel %vm589, %v3168, 0
    %v3433 = vsel %vm589, %v3170, 0
    %v3436 = vsel %vm589, %v3172, 0
    %3438 = vmatprep.subr.mxu0 0.0
    %3439 = vmatpush1.msra.mxu0 0.0
    %3440 = vmatprep.subr.mxu0 0.0
    %3441 = vmatpush1.msra.mxu0 0.0
    %3442 = vmatprep.subr.mxu0 0.0
    %3443 = vmatpush1.msra.mxu0 0.0
    %3444 = vmatprep.subr.mxu0 0.0
    %3445 = vmatpush1.msra.mxu0 0.0
    %3446 = vmatprep.subr.mxu0 0.0
    %3447 = vmatpush1.msra.mxu0 0.0
    %3448 = vmatprep.subr.mxu0 0.0
    %3449 = vmatpush1.msra.mxu0 0.0
    %3450 = vmatprep.subr.mxu0 0.0
    %3451 = vmatpush1.msra.mxu0 0.0
    %3452 = vmatprep.subr.mxu0 0.0
    %3453 = vmatpush1.msra.mxu0 0.0
    %3454 = vmatprep.subr.mxu0 0.0
    %3455 = vmatpush1.msra.mxu0 %v3405
    %3456 = vmatprep.subr.mxu0 0.0
    %3457 = vmatpush1.msra.mxu0 %v3403
    %3458 = vmatprep.subr.mxu0 0.0
    %3459 = vmatpush1.msra.mxu0 %v3401
    %3460 = vmatprep.subr.mxu0 0.0
    %3461 = vmatpush1.msra.mxu0 %v3399
    %3462 = vmatprep.subr.mxu0 0.0
    %3463 = vmatpush1.msra.mxu0 %v3397
    %3464 = vmatprep.subr.mxu0 0.0
    %3465 = vmatpush1.msra.mxu0 %v3395
    %3466 = vmatprep.subr.mxu0 0.0
    %3467 = vmatpush1.msra.mxu0 %v3393
    %3468 = vmatprep.subr.mxu0 0.0
    %3469 = vmatpush1.msra.mxu0 %v3391
    %3470 = vmatprep.subr.mxu0 0.0
    %3471 = vmatpush2.msra.mxu0 0.0
    %3472 = vmatprep.subr.mxu0 0.0
    %3473 = vmatpush2.msra.mxu0 0.0
    %3474 = vmatprep.subr.mxu0 0.0
    %3475 = vmatpush2.msra.mxu0 0.0
    %3476 = vmatprep.subr.mxu0 0.0
    %3477 = vmatpush2.msra.mxu0 0.0
    %3478 = vmatprep.subr.mxu0 0.0
    %3479 = vmatpush2.msra.mxu0 0.0
    %3480 = vmatprep.subr.mxu0 0.0
    %3481 = vmatpush2.msra.mxu0 0.0
    %3482 = vmatprep.subr.mxu0 0.0
    %3483 = vmatpush2.msra.mxu0 0.0
    %3484 = vmatprep.subr.mxu0 0.0
    %3485 = vmatpush2.msra.mxu0 0.0
    %3486 = vmatprep.subr.mxu0 0.0
    %3487 = vmatpush2.msra.mxu0 0.0
    %3488 = vmatprep.subr.mxu0 0.0
    %3489 = vmatpush2.msra.mxu0 0.0
    %3490 = vmatprep.subr.mxu0 0.0
    %3491 = vmatpush2.msra.mxu0 0.0
    %3492 = vmatprep.subr.mxu0 0.0
    %3493 = vmatpush2.msra.mxu0 0.0
    %3494 = vmatprep.subr.mxu0 0.0
    %3495 = vmatpush2.msra.mxu0 0.0
    %3496 = vmatprep.subr.mxu0 0.0
    %3497 = vmatpush2.msra.mxu0 0.0
    %3498 = vmatprep.subr.mxu0 0.0
    %3499 = vmatpush2.msra.mxu0 0.0
    %3500 = vmatprep.subr.mxu0 0.0
    %3501 = vmatpush2.msra.mxu0 0.0
    %3502 = vmatprep.mubr.f32.mxu0 0.0
    %3503 = vmatmul.mubr.f32.gmra.mxu0 %v3415
    %v3504 = vpop.f32.mrf.mxu0
    %v3505 = vadd.f32 0.0, %v3504
    %v3506 = vpop.f32.mrf.mxu0
    %3507 = vmatprep.mubr.f32.mxu0 0.0
    %3508 = vmatmul.mubr.f32.gmra.mxu0 %v3418
    %v3509 = vpop.f32.mrf.mxu0
    %v3510 = vadd.f32 0.0, %v3509
    %v3511 = vpop.f32.mrf.mxu0
    %3512 = vmatprep.mubr.f32.mxu0 0.0
    %3513 = vmatmul.mubr.f32.gmra.mxu0 %v3421
    %v3514 = vpop.f32.mrf.mxu0
    %v3515 = vadd.f32 0.0, %v3514
    %v3516 = vpop.f32.mrf.mxu0
    %3517 = vmatprep.mubr.f32.mxu0 0.0
    %3518 = vmatmul.mubr.f32.gmra.mxu0 %v3424
    %v3519 = vpop.f32.mrf.mxu0
    %v3520 = vadd.f32 0.0, %v3519
    %v3521 = vpop.f32.mrf.mxu0
    %3522 = vmatprep.mubr.f32.mxu0 0.0
    %3523 = vmatmul.mubr.f32.gmra.mxu0 %v3427
    %v3524 = vpop.f32.mrf.mxu0
    %v3525 = vadd.f32 0.0, %v3524
    %v3526 = vpop.f32.mrf.mxu0
    %3527 = vmatprep.mubr.f32.mxu0 0.0
    %3528 = vmatmul.mubr.f32.gmra.mxu0 %v3430
    %v3529 = vpop.f32.mrf.mxu0
    %v3530 = vadd.f32 0.0, %v3529
    %v3531 = vpop.f32.mrf.mxu0
    %3532 = vmatprep.mubr.f32.mxu0 0.0
    %3533 = vmatmul.mubr.f32.gmra.mxu0 %v3433
    %v3534 = vpop.f32.mrf.mxu0
    %v3535 = vadd.f32 0.0, %v3534
    %v3536 = vpop.f32.mrf.mxu0
    %3537 = vmatprep.mubr.f32.mxu0 0.0
    %3538 = vmatmul.mubr.f32.gmra.mxu0 %v3436
    %v3539 = vpop.f32.mrf.mxu0
    %v3540 = vadd.f32 0.0, %v3539
    %v3541 = vpop.f32.mrf.mxu0
    %3542 = vdwg.mxu0
    %v3543 = vmul.f32 %v3352, %v3221
    %v3544 = vmul.f32 %v3357, %v3222
    %v3545 = vmul.f32 %v3362, %v3223
    %v3546 = vmul.f32 %v3367, %v3224
    %v3547 = vmul.f32 %v3372, %v3225
    %v3548 = vmul.f32 %v3377, %v3226
    %v3549 = vmul.f32 %v3382, %v3227
    %v3550 = vmul.f32 %v3387, %v3228
    %v3551 = vmul.f32 %v3505, %v3229
    %v3552 = vmul.f32 %v3510, %v3230
    %v3553 = vmul.f32 %v3515, %v3231
    %v3554 = vmul.f32 %v3520, %v3232
    %v3555 = vmul.f32 %v3525, %v3233
    %v3556 = vmul.f32 %v3530, %v3234
    %v3557 = vmul.f32 %v3535, %v3235
    %v3558 = vmul.f32 %v3540, %v3236
    %3575 = vrot.lane.b32.xlu0 %v1885, 8
    %v3576 = vpop.permute.xlu0 %3575
    %3577 = vrot.lane.b32.xlu0 %v1886, 8
    %v3578 = vpop.permute.xlu0 %3577
    %3579 = vrot.lane.b32.xlu0 %v1887, 8
    %v3580 = vpop.permute.xlu0 %3579
    %3581 = vrot.lane.b32.xlu0 %v1888, 8
    %v3582 = vpop.permute.xlu0 %3581
    %3583 = vrot.lane.b32.xlu0 %v1889, 8
    %v3584 = vpop.permute.xlu0 %3583
    %3585 = vrot.lane.b32.xlu0 %v1890, 8
    %v3586 = vpop.permute.xlu0 %3585
    %3587 = vrot.lane.b32.xlu0 %v1891, 8
    %v3588 = vpop.permute.xlu0 %3587
    %3589 = vrot.lane.b32.xlu0 %v1892, 8
    %v3590 = vpop.permute.xlu0 %3589
    %3591 = vrot.lane.b32.xlu0 %v1893, 8
    %v3592 = vpop.permute.xlu0 %3591
    %3593 = vrot.lane.b32.xlu0 %v1894, 8
    %v3594 = vpop.permute.xlu0 %3593
    %3595 = vrot.lane.b32.xlu0 %v1895, 8
    %v3596 = vpop.permute.xlu0 %3595
    %3597 = vrot.lane.b32.xlu0 %v1896, 8
    %v3598 = vpop.permute.xlu0 %3597
    %3599 = vrot.lane.b32.xlu0 %v1897, 8
    %v3600 = vpop.permute.xlu0 %3599
    %3601 = vrot.lane.b32.xlu0 %v1898, 8
    %v3602 = vpop.permute.xlu0 %3601
    %3603 = vrot.lane.b32.xlu0 %v1899, 8
    %v3604 = vpop.permute.xlu0 %3603
    %3605 = vrot.lane.b32.xlu0 %v1900, 8
    %v3606 = vpop.permute.xlu0 %3605
    %3639 = vrot.lane.b32.xlu0 %v2714, 16
    %v3640 = vpop.permute.xlu0 %3639
    %3641 = vrot.lane.b32.xlu0 %v2715, 16
    %v3642 = vpop.permute.xlu0 %3641
    %3643 = vrot.lane.b32.xlu0 %v2716, 16
    %v3644 = vpop.permute.xlu0 %3643
    %3645 = vrot.lane.b32.xlu0 %v2717, 16
    %v3646 = vpop.permute.xlu0 %3645
    %3647 = vrot.lane.b32.xlu0 %v2718, 16
    %v3648 = vpop.permute.xlu0 %3647
    %3649 = vrot.lane.b32.xlu0 %v2719, 16
    %v3650 = vpop.permute.xlu0 %3649
    %3651 = vrot.lane.b32.xlu0 %v2720, 16
    %v3652 = vpop.permute.xlu0 %3651
    %3653 = vrot.lane.b32.xlu0 %v2721, 16
    %v3654 = vpop.permute.xlu0 %3653
    %3655 = vrot.lane.b32.xlu0 %v2722, 16
    %v3656 = vpop.permute.xlu0 %3655
    %3657 = vrot.lane.b32.xlu0 %v2723, 16
    %v3658 = vpop.permute.xlu0 %3657
    %3659 = vrot.lane.b32.xlu0 %v2724, 16
    %v3660 = vpop.permute.xlu0 %3659
    %3661 = vrot.lane.b32.xlu0 %v2725, 16
    %v3662 = vpop.permute.xlu0 %3661
    %3663 = vrot.lane.b32.xlu0 %v2726, 16
    %v3664 = vpop.permute.xlu0 %3663
    %3665 = vrot.lane.b32.xlu0 %v2727, 16
    %v3666 = vpop.permute.xlu0 %3665
    %3667 = vrot.lane.b32.xlu0 %v2728, 16
    %v3668 = vpop.permute.xlu0 %3667
    %3669 = vrot.lane.b32.xlu0 %v2729, 16
    %v3670 = vpop.permute.xlu0 %3669
    %3703 = vrot.lane.b32.xlu0 %v3543, 24
    %v3704 = vpop.permute.xlu0 %3703
    %3705 = vrot.lane.b32.xlu0 %v3544, 24
    %v3706 = vpop.permute.xlu0 %3705
    %3707 = vrot.lane.b32.xlu0 %v3545, 24
    %v3708 = vpop.permute.xlu0 %3707
    %3709 = vrot.lane.b32.xlu0 %v3546, 24
    %v3710 = vpop.permute.xlu0 %3709
    %3711 = vrot.lane.b32.xlu0 %v3547, 24
    %v3712 = vpop.permute.xlu0 %3711
    %3713 = vrot.lane.b32.xlu0 %v3548, 24
    %v3714 = vpop.permute.xlu0 %3713
    %3715 = vrot.lane.b32.xlu0 %v3549, 24
    %v3716 = vpop.permute.xlu0 %3715
    %3717 = vrot.lane.b32.xlu0 %v3550, 24
    %v3718 = vpop.permute.xlu0 %3717
    %3719 = vrot.lane.b32.xlu0 %v3551, 24
    %v3720 = vpop.permute.xlu0 %3719
    %3721 = vrot.lane.b32.xlu0 %v3552, 24
    %v3722 = vpop.permute.xlu0 %3721
    %3723 = vrot.lane.b32.xlu0 %v3553, 24
    %v3724 = vpop.permute.xlu0 %3723
    %3725 = vrot.lane.b32.xlu0 %v3554, 24
    %v3726 = vpop.permute.xlu0 %3725
    %3727 = vrot.lane.b32.xlu0 %v3555, 24
    %v3728 = vpop.permute.xlu0 %3727
    %3729 = vrot.lane.b32.xlu0 %v3556, 24
    %v3730 = vpop.permute.xlu0 %3729
    %3731 = vrot.lane.b32.xlu0 %v3557, 24
    %v3732 = vpop.permute.xlu0 %3731
    %3733 = vrot.lane.b32.xlu0 %v3558, 24
    %v3734 = vpop.permute.xlu0 %3733
    %v3751 = vsel %vm290, %v1056, %v3576
    %v3752 = vsel %vm290, %v1057, %v3578
    %v3753 = vsel %vm290, %v1058, %v3580
    %v3754 = vsel %vm290, %v1059, %v3582
    %v3755 = vsel %vm290, %v1060, %v3584
    %v3756 = vsel %vm290, %v1061, %v3586
    %v3757 = vsel %vm290, %v1062, %v3588
    %v3758 = vsel %vm290, %v1063, %v3590
    %v3759 = vsel %vm290, %v1064, %v3592
    %v3760 = vsel %vm290, %v1065, %v3594
    %v3761 = vsel %vm290, %v1066, %v3596
    %v3762 = vsel %vm290, %v1067, %v3598
    %v3763 = vsel %vm290, %v1068, %v3600
    %v3764 = vsel %vm290, %v1069, %v3602
    %v3765 = vsel %vm290, %v1070, %v3604
    %v3766 = vsel %vm290, %v1071, %v3606
    %vm3767 = vcmask 130048
    %v3768 = vsel %vm3767, %v3751, %v3640
    %v3769 = vsel %vm3767, %v3752, %v3642
    %v3770 = vsel %vm3767, %v3753, %v3644
    %v3771 = vsel %vm3767, %v3754, %v3646
    %v3772 = vsel %vm3767, %v3755, %v3648
    %v3773 = vsel %vm3767, %v3756, %v3650
    %v3774 = vsel %vm3767, %v3757, %v3652
    %v3775 = vsel %vm3767, %v3758, %v3654
    %v3776 = vsel %vm3767, %v3759, %v3656
    %v3777 = vsel %vm3767, %v3760, %v3658
    %v3778 = vsel %vm3767, %v3761, %v3660
    %v3779 = vsel %vm3767, %v3762, %v3662
    %v3780 = vsel %vm3767, %v3763, %v3664
    %v3781 = vsel %vm3767, %v3764, %v3666
    %v3782 = vsel %vm3767, %v3765, %v3668
    %v3783 = vsel %vm3767, %v3766, %v3670
    %vm3784 = vcmask 195584
    %v3785 = vsel %vm3784, %v3768, %v3704
    %v3786 = vsel %vm3784, %v3769, %v3706
    %v3787 = vsel %vm3784, %v3770, %v3708
    %v3788 = vsel %vm3784, %v3771, %v3710
    %v3789 = vsel %vm3784, %v3772, %v3712
    %v3790 = vsel %vm3784, %v3773, %v3714
    %v3791 = vsel %vm3784, %v3774, %v3716
    %v3792 = vsel %vm3784, %v3775, %v3718
    %v3793 = vsel %vm3784, %v3776, %v3720
    %v3794 = vsel %vm3784, %v3777, %v3722
    %v3795 = vsel %vm3784, %v3778, %v3724
    %v3796 = vsel %vm3784, %v3779, %v3726
    %v3797 = vsel %vm3784, %v3780, %v3728
    %v3798 = vsel %vm3784, %v3781, %v3730
    %v3799 = vsel %vm3784, %v3782, %v3732
    %v3800 = vsel %vm3784, %v3783, %v3734
    %v3801 = vld [vmem:[%s3] sm:$0xff]
    %v3802 = vld [vmem:[%s3 + $0x8] sm:$0xff]
    %v3803 = vld [vmem:[%s3 + $0x10] sm:$0xff]
    %v3804 = vld [vmem:[%s3 + $0x18] sm:$0xff]
    %v3805 = vld [vmem:[%s4] sm:$0x1]
    %v3807 = vlaneseq
    %v3808 = vshrl.u32 %v3807, 7
    %v3809 = vsub.s32 0, %v3808
    %v3810 = vrot.slane %v3805, %v3809
    %v3813 = vsel %vm64, %v3785, 0
    %v3816 = vsel %vm64, %v3786, 0
    %v3819 = vsel %vm64, %v3787, 0
    %v3822 = vsel %vm64, %v3788, 0
    %v3825 = vsel %vm64, %v3789, 0
    %v3828 = vsel %vm64, %v3790, 0
    %v3831 = vsel %vm64, %v3791, 0
    %v3834 = vsel %vm64, %v3792, 0
    %v3837 = vsel %vm64, %v3793, 0
    %v3840 = vsel %vm64, %v3794, 0
    %v3843 = vsel %vm64, %v3795, 0
    %v3846 = vsel %vm64, %v3796, 0
    %v3849 = vsel %vm64, %v3797, 0
    %v3852 = vsel %vm64, %v3798, 0
    %v3855 = vsel %vm64, %v3799, 0
    %v3858 = vsel %vm64, %v3800, 0
    %3860 = vmatprep.subr.mxu0 0.0
    %3861 = vmatpush1.msra.mxu0 0.0
    %3862 = vmatprep.subr.mxu0 0.0
    %3863 = vmatpush1.msra.mxu0 0.0
    %3864 = vmatprep.subr.mxu0 0.0
    %3865 = vmatpush1.msra.mxu0 0.0
    %3866 = vmatprep.subr.mxu0 0.0
    %3867 = vmatpush1.msra.mxu0 0.0
    %3868 = vmatprep.subr.mxu0 0.0
    %3869 = vmatpush1.msra.mxu0 0.0
    %3870 = vmatprep.subr.mxu0 0.0
    %3871 = vmatpush1.msra.mxu0 0.0
    %3872 = vmatprep.subr.mxu0 0.0
    %3873 = vmatpush1.msra.mxu0 0.0
    %3874 = vmatprep.subr.mxu0 0.0
    %3875 = vmatpush1.msra.mxu0 0.0
    %3876 = vmatprep.subr.mxu0 0.0
    %3877 = vmatpush1.msra.mxu0 0.0
    %3878 = vmatprep.subr.mxu0 0.0
    %3879 = vmatpush1.msra.mxu0 0.0
    %3880 = vmatprep.subr.mxu0 0.0
    %3881 = vmatpush1.msra.mxu0 0.0
    %3882 = vmatprep.subr.mxu0 0.0
    %3883 = vmatpush1.msra.mxu0 0.0
    %3884 = vmatprep.subr.mxu0 0.0
    %3885 = vmatpush1.msra.mxu0 %v3804
    %3886 = vmatprep.subr.mxu0 0.0
    %3887 = vmatpush1.msra.mxu0 %v3803
    %3888 = vmatprep.subr.mxu0 0.0
    %3889 = vmatpush1.msra.mxu0 %v3802
    %3890 = vmatprep.subr.mxu0 0.0
    %3891 = vmatpush1.msra.mxu0 %v3801
    %3892 = vmatprep.subr.mxu0 0.0
    %3893 = vmatpush2.msra.mxu0 0.0
    %3894 = vmatprep.subr.mxu0 0.0
    %3895 = vmatpush2.msra.mxu0 0.0
    %3896 = vmatprep.subr.mxu0 0.0
    %3897 = vmatpush2.msra.mxu0 0.0
    %3898 = vmatprep.subr.mxu0 0.0
    %3899 = vmatpush2.msra.mxu0 0.0
    %3900 = vmatprep.subr.mxu0 0.0
    %3901 = vmatpush2.msra.mxu0 0.0
    %3902 = vmatprep.subr.mxu0 0.0
    %3903 = vmatpush2.msra.mxu0 0.0
    %3904 = vmatprep.subr.mxu0 0.0
    %3905 = vmatpush2.msra.mxu0 0.0
    %3906 = vmatprep.subr.mxu0 0.0
    %3907 = vmatpush2.msra.mxu0 0.0
    %3908 = vmatprep.subr.mxu0 0.0
    %3909 = vmatpush2.msra.mxu0 0.0
    %3910 = vmatprep.subr.mxu0 0.0
    %3911 = vmatpush2.msra.mxu0 0.0
    %3912 = vmatprep.subr.mxu0 0.0
    %3913 = vmatpush2.msra.mxu0 0.0
    %3914 = vmatprep.subr.mxu0 0.0
    %3915 = vmatpush2.msra.mxu0 0.0
    %3916 = vmatprep.subr.mxu0 0.0
    %3917 = vmatpush2.msra.mxu0 0.0
    %3918 = vmatprep.subr.mxu0 0.0
    %3919 = vmatpush2.msra.mxu0 0.0
    %3920 = vmatprep.subr.mxu0 0.0
    %3921 = vmatpush2.msra.mxu0 0.0
    %3922 = vmatprep.subr.mxu0 0.0
    %3923 = vmatpush2.msra.mxu0 0.0
    %3924 = vmatprep.mubr.f32.mxu0 0.0
    %3925 = vmatmul.mubr.f32.gmra.mxu0 %v3813
    %v3926 = vpop.f32.mrf.mxu0
    %v3927 = vadd.f32 %v3810, %v3926
    %v3928 = vpop.f32.mrf.mxu0
    %3929 = vmatprep.mubr.f32.mxu0 0.0
    %3930 = vmatmul.mubr.f32.gmra.mxu0 %v3816
    %v3931 = vpop.f32.mrf.mxu0
    %v3932 = vadd.f32 %v3810, %v3931
    %v3933 = vpop.f32.mrf.mxu0
    %3934 = vmatprep.mubr.f32.mxu0 0.0
    %3935 = vmatmul.mubr.f32.gmra.mxu0 %v3819
    %v3936 = vpop.f32.mrf.mxu0
    %v3937 = vadd.f32 %v3810, %v3936
    %v3938 = vpop.f32.mrf.mxu0
    %3939 = vmatprep.mubr.f32.mxu0 0.0
    %3940 = vmatmul.mubr.f32.gmra.mxu0 %v3822
    %v3941 = vpop.f32.mrf.mxu0
    %v3942 = vadd.f32 %v3810, %v3941
    %v3943 = vpop.f32.mrf.mxu0
    %3944 = vmatprep.mubr.f32.mxu0 0.0
    %3945 = vmatmul.mubr.f32.gmra.mxu0 %v3825
    %v3946 = vpop.f32.mrf.mxu0
    %v3947 = vadd.f32 %v3810, %v3946
    %v3948 = vpop.f32.mrf.mxu0
    %3949 = vmatprep.mubr.f32.mxu0 0.0
    %3950 = vmatmul.mubr.f32.gmra.mxu0 %v3828
    %v3951 = vpop.f32.mrf.mxu0
    %v3952 = vadd.f32 %v3810, %v3951
    %v3953 = vpop.f32.mrf.mxu0
    %3954 = vmatprep.mubr.f32.mxu0 0.0
    %3955 = vmatmul.mubr.f32.gmra.mxu0 %v3831
    %v3956 = vpop.f32.mrf.mxu0
    %v3957 = vadd.f32 %v3810, %v3956
    %v3958 = vpop.f32.mrf.mxu0
    %3959 = vmatprep.mubr.f32.mxu0 0.0
    %3960 = vmatmul.mubr.f32.gmra.mxu0 %v3834
    %v3961 = vpop.f32.mrf.mxu0
    %v3962 = vadd.f32 %v3810, %v3961
    %v3963 = vpop.f32.mrf.mxu0
    %3964 = vmatprep.mubr.f32.mxu0 0.0
    %3965 = vmatmul.mubr.f32.gmra.mxu0 %v3837
    %v3966 = vpop.f32.mrf.mxu0
    %v3967 = vadd.f32 %v3810, %v3966
    %v3968 = vpop.f32.mrf.mxu0
    %3969 = vmatprep.mubr.f32.mxu0 0.0
    %3970 = vmatmul.mubr.f32.gmra.mxu0 %v3840
    %v3971 = vpop.f32.mrf.mxu0
    %v3972 = vadd.f32 %v3810, %v3971
    %v3973 = vpop.f32.mrf.mxu0
    %3974 = vmatprep.mubr.f32.mxu0 0.0
    %3975 = vmatmul.mubr.f32.gmra.mxu0 %v3843
    %v3976 = vpop.f32.mrf.mxu0
    %v3977 = vadd.f32 %v3810, %v3976
    %v3978 = vpop.f32.mrf.mxu0
    %3979 = vmatprep.mubr.f32.mxu0 0.0
    %3980 = vmatmul.mubr.f32.gmra.mxu0 %v3846
    %v3981 = vpop.f32.mrf.mxu0
    %v3982 = vadd.f32 %v3810, %v3981
    %v3983 = vpop.f32.mrf.mxu0
    %3984 = vmatprep.mubr.f32.mxu0 0.0
    %3985 = vmatmul.mubr.f32.gmra.mxu0 %v3849
    %v3986 = vpop.f32.mrf.mxu0
    %v3987 = vadd.f32 %v3810, %v3986
    %v3988 = vpop.f32.mrf.mxu0
    %3989 = vmatprep.mubr.f32.mxu0 0.0
    %3990 = vmatmul.mubr.f32.gmra.mxu0 %v3852
    %v3991 = vpop.f32.mrf.mxu0
    %v3992 = vadd.f32 %v3810, %v3991
    %v3993 = vpop.f32.mrf.mxu0
    %3994 = vmatprep.mubr.f32.mxu0 0.0
    %3995 = vmatmul.mubr.f32.gmra.mxu0 %v3855
    %v3996 = vpop.f32.mrf.mxu0
    %v3997 = vadd.f32 %v3810, %v3996
    %v3998 = vpop.f32.mrf.mxu0
    %3999 = vmatprep.mubr.f32.mxu0 0.0
    %4000 = vmatmul.mubr.f32.gmra.mxu0 %v3858
    %v4001 = vpop.f32.mrf.mxu0
    %v4002 = vadd.f32 %v3810, %v4001
    %v4003 = vpop.f32.mrf.mxu0
    %4004 = vdwg.mxu0
    %4005 = vst.msk [vmem:[%s6] sm:$0xff] %vm64, %v3927
    %4006 = vst.msk [vmem:[%s6 + $0x8] sm:$0xff] %vm64, %v3932
    %4007 = vst.msk [vmem:[%s6 + $0x10] sm:$0xff] %vm64, %v3937
    %4008 = vst.msk [vmem:[%s6 + $0x18] sm:$0xff] %vm64, %v3942
    %4009 = vst.msk [vmem:[%s6 + $0x20] sm:$0xff] %vm64, %v3947
    %4010 = vst.msk [vmem:[%s6 + $0x28] sm:$0xff] %vm64, %v3952
    %4011 = vst.msk [vmem:[%s6 + $0x30] sm:$0xff] %vm64, %v3957
    %4012 = vst.msk [vmem:[%s6 + $0x38] sm:$0xff] %vm64, %v3962
    %4013 = vst.msk [vmem:[%s6 + $0x40] sm:$0xff] %vm64, %v3967
    %4014 = vst.msk [vmem:[%s6 + $0x48] sm:$0xff] %vm64, %v3972
    %4015 = vst.msk [vmem:[%s6 + $0x50] sm:$0xff] %vm64, %v3977
    %4016 = vst.msk [vmem:[%s6 + $0x58] sm:$0xff] %vm64, %v3982
    %4017 = vst.msk [vmem:[%s6 + $0x60] sm:$0xff] %vm64, %v3987
    %4018 = vst.msk [vmem:[%s6 + $0x68] sm:$0xff] %vm64, %v3992
    %4019 = vst.msk [vmem:[%s6 + $0x70] sm:$0xff] %vm64, %v3997
    %4020 = vst.msk [vmem:[%s6 + $0x78] sm:$0xff] %vm64, %v4002
    // Predicated region
    $region30: #{tpu_custom_call.1} parent=1 // pred_check
      _
    $region31: #{tpu_custom_call.1} parent=1 // pred_check_branch
      %4022 = sbr.rel (0) target = $region33
    $region32: #{tpu_custom_call.1} parent=1 // pred_region
      _
    $region33: #{tpu_custom_call.1} parent=1 // pred_fallthru
      _
    // Predicated region
    $region34: #{tpu_custom_call.1} parent=1 // pred_check
      _
    $region35: #{tpu_custom_call.1} parent=1 // pred_check_branch
      %4024 = sbr.rel (0) target = $region37
    $region36: #{tpu_custom_call.1} parent=1 // pred_region
      _
    $region37: #{tpu_custom_call.1} parent=1 // pred_fallthru
      _
    %4025 = vsyncpa [#allocation3], 1

</llo_original>
